<compile_context>
chip_gen: v5e
topology: v5e:2x2
jax: 0.10.0
libtpu: 0.0.40
codegen_flags: <defaults>
</compile_context>

<pallas_src>
import functools

import jax
import jax.numpy as jnp
from jax import lax
from jax.experimental import pallas as pl
from jax.experimental.pallas import tpu as pltpu

# Whole-array-in-VMEM spec (all tensors here are KB-sized; no grid tiling).
VMEM = pl.BlockSpec(memory_space=pltpu.MemorySpace.VMEM)


# ----------------------------- fused kernel ----------------------------------


def _vit_fused_kernel(
    # inputs
    xp_ref, pw_ref, pb_ref, cls_ref, pos_ref,
    ln1g_ref, ln1b_ref, qkvw_ref, qkvb_ref, projw_ref, projb_ref,
    ln2g_ref, ln2b_ref, fc1w_ref, fc1b_ref, fc2w_ref, fc2b_ref,
    fng_ref, fnb_ref, hw_ref, hb_ref,
    # output
    o_ref,
    # scratch (single buffer, reused for token assembly AND attn output)
    scr,
    *, bsz, n_tok, heads, eps):
  d = pw_ref.shape[1]
  depth = qkvw_ref.shape[0]
  n_patch = n_tok - 1
  dh = d // heads
  scale = dh ** -0.5

  def ln(v, gamma, beta):
    mu = jnp.mean(v, axis=-1, keepdims=True)
    var = jnp.mean(jnp.square(v - mu), axis=-1, keepdims=True)
    return (v - mu) * lax.rsqrt(var + eps) * gamma + beta

  # ---- patch embed (Conv2d k=p s=p == unfold + matmul) + cls + pos embed ----
  tokens = jnp.dot(xp_ref[...], pw_ref[...],
                   preferred_element_type=jnp.float32) + pb_ref[...]   # (B*P, D)
  cls_row = cls_ref[...] + pos_ref[0:1, :]                             # (1, D)
  pos_patch = pos_ref[1:n_tok, :]                                      # (P, D)
  # Assemble (B*N, D) token matrix by writing disjoint row ranges of the
  # persistent VMEM scratch (no jnp.concatenate, no extra HBM round trips).
  for b in range(bsz):
    r0 = b * n_tok
    scr[r0:r0 + 1, :] = cls_row
    scr[r0 + 1:r0 + n_tok, :] = (
        tokens[b * n_patch:(b + 1) * n_patch, :] + pos_patch)
  x = scr[...]                                                         # (B*N, D)

  # ---- transformer blocks (depth small & static -> fully unrolled) ----------
  for l in range(depth):
    # Attention branch: LN1 -> QKV -> per-(batch,head) softmax attn -> proj.
    hn = ln(x, ln1g_ref[l], ln1b_ref[l])
    qkv = jnp.dot(hn, qkvw_ref[l],
                  preferred_element_type=jnp.float32) + qkvb_ref[l]    # (B*N, 3D)
    for b in range(bsz):
      r0 = b * n_tok
      for h in range(heads):
        c0 = h * dh
        q = qkv[r0:r0 + n_tok, c0:c0 + dh] * scale                     # (N, dh)
        k = qkv[r0:r0 + n_tok, d + c0:d + c0 + dh]
        v = qkv[r0:r0 + n_tok, 2 * d + c0:2 * d + c0 + dh]
        s = jnp.einsum("nd,md->nm", q, k,
                       preferred_element_type=jnp.float32)             # (N, N)
        s = s - jnp.max(s, axis=-1, keepdims=True)
        p = jnp.exp(s)
        p = p * pl.reciprocal(jnp.sum(p, axis=-1, keepdims=True), approx=True)
        # Head-merge is implicit: write straight into the (B*N, D) layout.
        scr[r0:r0 + n_tok, c0:c0 + dh] = jnp.dot(
            p, v, preferred_element_type=jnp.float32)
    ao = jnp.dot(scr[...], projw_ref[l],
                 preferred_element_type=jnp.float32) + projb_ref[l]
    x = x + ao                                                         # residual

    # MLP branch: LN2 -> fc1 -> exact erf GELU -> fc2 -> residual.
    hm = ln(x, ln2g_ref[l], ln2b_ref[l])
    hm = jnp.dot(hm, fc1w_ref[l],
                 preferred_element_type=jnp.float32) + fc1b_ref[l]
    hm = 0.5 * hm * (1.0 + lax.erf(hm * 0.7071067811865476))
    hm = jnp.dot(hm, fc2w_ref[l],
                 preferred_element_type=jnp.float32) + fc2b_ref[l]
    x = x + hm                                                         # residual

  # ---- global pool over patch tokens via a single MXU matmul ----------------
  # pool_m[b, r] = 1/n_patch iff row r is a patch token of batch b (cls and
  # other batches get weight 0) — equivalent to x[:, 1:, :].mean(dim=1).
  row_b = lax.broadcasted_iota(jnp.int32, (bsz, bsz * n_tok), 0)
  col = lax.broadcasted_iota(jnp.int32, (bsz, bsz * n_tok), 1)
  t = col - row_b * n_tok
  pool_m = jnp.where((t >= 1) & (t < n_tok),
                     jnp.float32(1.0 / n_patch), jnp.float32(0.0))
  pooled = jnp.dot(pool_m, x, preferred_element_type=jnp.float32)      # (B, D)

  # ---- fc_norm (LayerNorm) + head (Linear -> 4 classes), one full store -----
  y = ln(pooled, fng_ref[...], fnb_ref[...])
  o_ref[...] = (jnp.dot(y, hw_ref[...], preferred_element_type=jnp.float32)
                + hb_ref[...]).astype(o_ref.dtype)


# ----------------------------- wrapper ----------------------------------------


def vit_forward(x, params, *, patch=8, heads=4, eps=1e-6):
  # x: (B, C, H, W) float32, NCHW like PyTorch.
  bsz, c, hh, ww = x.shape
  p = patch
  gh, gw = hh // p, ww // p
  n_patch = gh * gw
  n_tok = n_patch + 1
  d = params["patch_w"].shape[1]
  nc = params["head_w"].shape[1]

  # Patch unfold: pure layout glue feeding the fused kernel input.
  xp = x.reshape(bsz, c, gh, p, gw, p).transpose(0, 2, 4, 1, 3, 5)
  xp = xp.reshape(bsz * n_patch, c * p * p)

  kern = functools.partial(_vit_fused_kernel, bsz=bsz, n_tok=n_tok,
                           heads=heads, eps=eps)
  return pl.pallas_call(
      kern,
      out_shape=jax.ShapeDtypeStruct((bsz, nc), jnp.float32),
      in_specs=[VMEM] * 21,
      out_specs=VMEM,
      scratch_shapes=[
          pltpu.VMEM((bsz * n_tok, d), jnp.float32),   # token / attn-out buffer
      ],
  )(xp,
    params["patch_w"], params["patch_b"], params["cls_token"], params["pos_embed"],
    params["ln1_g"], params["ln1_b"], params["qkv_w"], params["qkv_b"],
    params["proj_w"], params["proj_b"], params["ln2_g"], params["ln2_b"],
    params["fc1_w"], params["fc1_b"], params["fc2_w"], params["fc2_b"],
    params["fc_norm_g"], params["fc_norm_b"], params["head_w"], params["head_b"])


# ----------------------------- params -----------------------------------------


def init_params(key, *, in_chans=3, patch=8, img=16, dim=32, depth=2, heads=4,
                mlp_ratio=4, num_classes=4):
  gh = img // patch
  n_tok = gh * gh + 1
  hidden = dim * mlp_ratio
  keys = iter(jax.random.split(key, 8))

  def w(shape, std=0.02):
    return jax.random.normal(next(keys), shape, jnp.float32) * std

  # Per-block parameters are stacked along a leading depth axis so the fused
  # kernel can index them statically per layer with no extra launches.
  return dict(
      patch_w=w((in_chans * patch * patch, dim)),       # conv as matmul
      patch_b=jnp.zeros((1, dim), jnp.float32),
      cls_token=w((1, dim)),
      pos_embed=w((n_tok, dim)),
      ln1_g=jnp.ones((depth, 1, dim), jnp.float32),
      ln1_b=jnp.zeros((depth, 1, dim), jnp.float32),
      qkv_w=w((depth, dim, 3 * dim)),
      qkv_b=jnp.zeros((depth, 1, 3 * dim), jnp.float32),
      proj_w=w((depth, dim, dim)),
      proj_b=jnp.zeros((depth, 1, dim), jnp.float32),
      ln2_g=jnp.ones((depth, 1, dim), jnp.float32),
      ln2_b=jnp.zeros((depth, 1, dim), jnp.float32),
      fc1_w=w((depth, dim, hidden)),
      fc1_b=jnp.zeros((depth, 1, hidden), jnp.float32),
      fc2_w=w((depth, hidden, dim)),
      fc2_b=jnp.zeros((depth, 1, dim), jnp.float32),
      fc_norm_g=jnp.ones((1, dim), jnp.float32),
      fc_norm_b=jnp.zeros((1, dim), jnp.float32),
      head_w=w((dim, num_classes), std=2e-5),           # trunc_normal_(std=2e-5)
      head_b=jnp.zeros((1, num_classes), jnp.float32),
  )


# ----------------------------- main -------------------------------------------


if __name__ == "__main__":
  key = jax.random.PRNGKey(0)
  pkey, xkey = jax.random.split(key)

  # small ViT config: img 16, patch 8 -> 4 patches (+1 cls), dim 32, 2 blocks,
  # 4 heads, mlp_ratio 4, num_classes=4 (as in OnClassify_v3).
  params = init_params(pkey, in_chans=3, patch=8, img=16, dim=32, depth=2,
                       heads=4, mlp_ratio=4, num_classes=4)

  x = jax.random.normal(xkey, (2, 3, 16, 16), jnp.float32)  # NCHW like PyTorch
  fwd = jax.jit(functools.partial(vit_forward, patch=8, heads=4))
  y = jax.block_until_ready(fwd(x, params))
  assert y.shape == (2, 4) and y.dtype == jnp.float32
  print("KERNEL_OK")
</pallas_src>

<mosaic_0001>
module attributes {stable_mosaic.version = 11 : i64} {
  func.func @_vit_fused_kernel(%arg0: memref<8x192xf32, #tpu.memory_space<vmem>>, %arg1: memref<192x32xf32, #tpu.memory_space<vmem>>, %arg2: memref<1x32xf32, #tpu.memory_space<vmem>>, %arg3: memref<1x32xf32, #tpu.memory_space<vmem>>, %arg4: memref<5x32xf32, #tpu.memory_space<vmem>>, %arg5: memref<2x1x32xf32, #tpu.memory_space<vmem>>, %arg6: memref<2x1x32xf32, #tpu.memory_space<vmem>>, %arg7: memref<2x32x96xf32, #tpu.memory_space<vmem>>, %arg8: memref<2x1x96xf32, #tpu.memory_space<vmem>>, %arg9: memref<2x32x32xf32, #tpu.memory_space<vmem>>, %arg10: memref<2x1x32xf32, #tpu.memory_space<vmem>>, %arg11: memref<2x1x32xf32, #tpu.memory_space<vmem>>, %arg12: memref<2x1x32xf32, #tpu.memory_space<vmem>>, %arg13: memref<2x32x128xf32, #tpu.memory_space<vmem>>, %arg14: memref<2x1x128xf32, #tpu.memory_space<vmem>>, %arg15: memref<2x128x32xf32, #tpu.memory_space<vmem>>, %arg16: memref<2x1x32xf32, #tpu.memory_space<vmem>>, %arg17: memref<1x32xf32, #tpu.memory_space<vmem>>, %arg18: memref<1x32xf32, #tpu.memory_space<vmem>>, %arg19: memref<32x4xf32, #tpu.memory_space<vmem>>, %arg20: memref<1x4xf32, #tpu.memory_space<vmem>>, %arg21: memref<2x4xf32, #tpu.memory_space<vmem>>, %arg22: memref<10x32xf32, #tpu.memory_space<vmem>>) attributes {dimension_semantics = [], scalar_prefetch = 0 : i64, scratch_operands = 1 : i64, tpu.core_type = #tpu.core_type<tc>} {
    %c0 = arith.constant 0 : index
    %c0_0 = arith.constant 0 : index
    %0 = vector.load %arg0[%c0, %c0_0] : memref<8x192xf32, #tpu.memory_space<vmem>>, vector<8x192xf32>
    %c0_1 = arith.constant 0 : index
    %c0_2 = arith.constant 0 : index
    %1 = vector.load %arg1[%c0_1, %c0_2] : memref<192x32xf32, #tpu.memory_space<vmem>>, vector<192x32xf32>
    %cst = arith.constant dense<0.000000e+00> : vector<8x32xf32>
    %2 = tpu.matmul %0, %1, %cst {dimension_numbers = #tpu.dot_dimension_numbers<[1], [0], [0], [1], [0, 0, 1, 1], [], []>} : vector<8x192xf32>, vector<192x32xf32>, vector<8x32xf32> -> vector<8x32xf32>
    %c0_3 = arith.constant 0 : index
    %c0_4 = arith.constant 0 : index
    %3 = vector.load %arg2[%c0_3, %c0_4] : memref<1x32xf32, #tpu.memory_space<vmem>>, vector<1x32xf32>
    %4 = vector.broadcast %3 : vector<1x32xf32> to vector<8x32xf32>
    %5 = arith.addf %2, %4 : vector<8x32xf32>
    %c0_5 = arith.constant 0 : index
    %c0_6 = arith.constant 0 : index
    %6 = vector.load %arg3[%c0_5, %c0_6] : memref<1x32xf32, #tpu.memory_space<vmem>>, vector<1x32xf32>
    %c0_7 = arith.constant 0 : index
    %c0_8 = arith.constant 0 : index
    %7 = vector.load %arg4[%c0_7, %c0_8] : memref<5x32xf32, #tpu.memory_space<vmem>>, vector<1x32xf32>
    %8 = arith.addf %6, %7 : vector<1x32xf32>
    %c1 = arith.constant 1 : index
    %c0_9 = arith.constant 0 : index
    %9 = vector.load %arg4[%c1, %c0_9] : memref<5x32xf32, #tpu.memory_space<vmem>>, vector<4x32xf32>
    %c0_10 = arith.constant 0 : index
    %c0_11 = arith.constant 0 : index
    %10 = vector.load %arg22[%c0_10, %c0_11] : memref<10x32xf32, #tpu.memory_space<vmem>>, vector<1x32xf32>
    tpu.vector_store %arg22[%c0_10, %c0_11], %8 {strides = array<i32>} : memref<10x32xf32, #tpu.memory_space<vmem>>, vector<1x32xf32>,
    %11 = vector.extract_strided_slice %5 {offsets = [0, 0], sizes = [4, 32], strides = [1, 1]} : vector<8x32xf32> to vector<4x32xf32>
    %12 = arith.addf %11, %9 : vector<4x32xf32>
    %c1_12 = arith.constant 1 : index
    %c0_13 = arith.constant 0 : index
    %13 = vector.load %arg22[%c1_12, %c0_13] : memref<10x32xf32, #tpu.memory_space<vmem>>, vector<4x32xf32>
    tpu.vector_store %arg22[%c1_12, %c0_13], %12 {strides = array<i32>} : memref<10x32xf32, #tpu.memory_space<vmem>>, vector<4x32xf32>,
    %c5 = arith.constant 5 : index
    %c0_14 = arith.constant 0 : index
    %14 = vector.load %arg22[%c5, %c0_14] : memref<10x32xf32, #tpu.memory_space<vmem>>, vector<1x32xf32>
    tpu.vector_store %arg22[%c5, %c0_14], %8 {strides = array<i32>} : memref<10x32xf32, #tpu.memory_space<vmem>>, vector<1x32xf32>,
    %15 = vector.extract_strided_slice %5 {offsets = [4, 0], sizes = [4, 32], strides = [1, 1]} : vector<8x32xf32> to vector<4x32xf32>
    %16 = arith.addf %15, %9 : vector<4x32xf32>
    %c6 = arith.constant 6 : index
    %c0_15 = arith.constant 0 : index
    %17 = vector.load %arg22[%c6, %c0_15] : memref<10x32xf32, #tpu.memory_space<vmem>>, vector<4x32xf32>
    tpu.vector_store %arg22[%c6, %c0_15], %16 {strides = array<i32>} : memref<10x32xf32, #tpu.memory_space<vmem>>, vector<4x32xf32>,
    %c0_16 = arith.constant 0 : index
    %c0_17 = arith.constant 0 : index
    %18 = vector.load %arg22[%c0_16, %c0_17] : memref<10x32xf32, #tpu.memory_space<vmem>>, vector<10x32xf32>
    %c0_18 = arith.constant 0 : index
    %c0_19 = arith.constant 0 : index
    %c0_20 = arith.constant 0 : index
    %19 = vector.load %arg5[%c0_18, %c0_19, %c0_20] : memref<2x1x32xf32, #tpu.memory_space<vmem>>, vector<1x1x32xf32>
    %20 = vector.shape_cast %19 : vector<1x1x32xf32> to vector<1x32xf32>
    %c0_21 = arith.constant 0 : index
    %c0_22 = arith.constant 0 : index
    %c0_23 = arith.constant 0 : index
    %21 = vector.load %arg6[%c0_21, %c0_22, %c0_23] : memref<2x1x32xf32, #tpu.memory_space<vmem>>, vector<1x1x32xf32>
    %22 = vector.shape_cast %21 : vector<1x1x32xf32> to vector<1x32xf32>
    %cst_24 = arith.constant dense<0.000000e+00> : vector<10xf32>
    %23 = vector.multi_reduction <add>, %18, %cst_24 [1] : vector<10x32xf32> to vector<10xf32>
    %24 = vector.shape_cast %23 : vector<10xf32> to vector<10x1xf32>
    %cst_25 = arith.constant 3.200000e+01 : f32
    %25 = vector.broadcast %cst_25 : f32 to vector<10x1xf32>
    %26 = arith.divf %24, %25 : vector<10x1xf32>
    %27 = vector.broadcast %26 : vector<10x1xf32> to vector<10x32xf32>
    %28 = arith.subf %18, %27 : vector<10x32xf32>
    %29 = arith.mulf %28, %28 : vector<10x32xf32>
    %cst_26 = arith.constant dense<0.000000e+00> : vector<10xf32>
    %30 = vector.multi_reduction <add>, %29, %cst_26 [1] : vector<10x32xf32> to vector<10xf32>
    %31 = vector.shape_cast %30 : vector<10xf32> to vector<10x1xf32>
    %cst_27 = arith.constant 3.200000e+01 : f32
    %32 = vector.broadcast %cst_27 : f32 to vector<10x1xf32>
    %33 = arith.divf %31, %32 : vector<10x1xf32>
    %34 = vector.broadcast %26 : vector<10x1xf32> to vector<10x32xf32>
    %35 = arith.subf %18, %34 : vector<10x32xf32>
    %cst_28 = arith.constant 9.99999997E-7 : f32
    %36 = vector.broadcast %cst_28 : f32 to vector<10x1xf32>
    %37 = arith.addf %33, %36 : vector<10x1xf32>
    %38 = math.rsqrt %37 : vector<10x1xf32>
    %39 = vector.broadcast %38 : vector<10x1xf32> to vector<10x32xf32>
    %40 = arith.mulf %35, %39 : vector<10x32xf32>
    %41 = vector.broadcast %20 : vector<1x32xf32> to vector<10x32xf32>
    %42 = arith.mulf %40, %41 : vector<10x32xf32>
    %43 = vector.broadcast %22 : vector<1x32xf32> to vector<10x32xf32>
    %44 = arith.addf %42, %43 : vector<10x32xf32>
    %c0_29 = arith.constant 0 : index
    %c0_30 = arith.constant 0 : index
    %c0_31 = arith.constant 0 : index
    %45 = vector.load %arg7[%c0_29, %c0_30, %c0_31] : memref<2x32x96xf32, #tpu.memory_space<vmem>>, vector<1x32x96xf32>
    %46 = vector.shape_cast %45 : vector<1x32x96xf32> to vector<32x96xf32>
    %cst_32 = arith.constant dense<0.000000e+00> : vector<10x96xf32>
    %47 = tpu.matmul %44, %46, %cst_32 {dimension_numbers = #tpu.dot_dimension_numbers<[1], [0], [0], [1], [0, 0, 1, 1], [], []>} : vector<10x32xf32>, vector<32x96xf32>, vector<10x96xf32> -> vector<10x96xf32>
    %c0_33 = arith.constant 0 : index
    %c0_34 = arith.constant 0 : index
    %c0_35 = arith.constant 0 : index
    %48 = vector.load %arg8[%c0_33, %c0_34, %c0_35] : memref<2x1x96xf32, #tpu.memory_space<vmem>>, vector<1x1x96xf32>
    %49 = vector.shape_cast %48 : vector<1x1x96xf32> to vector<1x96xf32>
    %50 = vector.broadcast %49 : vector<1x96xf32> to vector<10x96xf32>
    %51 = arith.addf %47, %50 : vector<10x96xf32>
    %52 = vector.extract_strided_slice %51 {offsets = [0, 0], sizes = [5, 8], strides = [1, 1]} : vector<10x96xf32> to vector<5x8xf32>
    %cst_36 = arith.constant 0.353553385 : f32
    %53 = vector.broadcast %cst_36 : f32 to vector<5x8xf32>
    %54 = arith.mulf %52, %53 : vector<5x8xf32>
    %55 = vector.extract_strided_slice %51 {offsets = [0, 32], sizes = [5, 8], strides = [1, 1]} : vector<10x96xf32> to vector<5x8xf32>
    %56 = vector.extract_strided_slice %51 {offsets = [0, 64], sizes = [5, 8], strides = [1, 1]} : vector<10x96xf32> to vector<5x8xf32>
    "tpu.trace_start"() <{level = 10 : i32, message = "nd,md->nm"}> : () -> ()
    %cst_37 = arith.constant dense<0.000000e+00> : vector<5x5xf32>
    %57 = tpu.matmul %54, %55, %cst_37 {dimension_numbers = #tpu.dot_dimension_numbers<[1], [1], [0], [0], [0, 0, 1, 0], [], []>} : vector<5x8xf32>, vector<5x8xf32>, vector<5x5xf32> -> vector<5x5xf32>
    "tpu.trace_stop"() : () -> ()
    %cst_38 = arith.constant dense<0xFF800000> : vector<5xf32>
    %58 = vector.multi_reduction <maximumf>, %57, %cst_38 [1] : vector<5x5xf32> to vector<5xf32>
    %59 = vector.shape_cast %58 : vector<5xf32> to vector<5x1xf32>
    %60 = vector.broadcast %59 : vector<5x1xf32> to vector<5x5xf32>
    %61 = arith.subf %57, %60 : vector<5x5xf32>
    %62 = math.exp %61 : vector<5x5xf32>
    %cst_39 = arith.constant dense<0.000000e+00> : vector<5xf32>
    %63 = vector.multi_reduction <add>, %62, %cst_39 [1] : vector<5x5xf32> to vector<5xf32>
    %64 = vector.shape_cast %63 : vector<5xf32> to vector<5x1xf32>
    %65 = tpu.reciprocal %64 {approx = true} : vector<5x1xf32> -> vector<5x1xf32>
    %66 = vector.broadcast %65 : vector<5x1xf32> to vector<5x5xf32>
    %67 = arith.mulf %62, %66 : vector<5x5xf32>
    %cst_40 = arith.constant dense<0.000000e+00> : vector<5x8xf32>
    %68 = tpu.matmul %67, %56, %cst_40 {dimension_numbers = #tpu.dot_dimension_numbers<[1], [0], [0], [1], [0, 0, 1, 1], [], []>} : vector<5x5xf32>, vector<5x8xf32>, vector<5x8xf32> -> vector<5x8xf32>
    %c0_41 = arith.constant 0 : index
    %c0_42 = arith.constant 0 : index
    %69 = vector.load %arg22[%c0_41, %c0_42] : memref<10x32xf32, #tpu.memory_space<vmem>>, vector<5x8xf32>
    tpu.vector_store %arg22[%c0_41, %c0_42], %68 {strides = array<i32>} : memref<10x32xf32, #tpu.memory_space<vmem>>, vector<5x8xf32>,
    %70 = vector.extract_strided_slice %51 {offsets = [0, 8], sizes = [5, 8], strides = [1, 1]} : vector<10x96xf32> to vector<5x8xf32>
    %cst_43 = arith.constant 0.353553385 : f32
    %71 = vector.broadcast %cst_43 : f32 to vector<5x8xf32>
    %72 = arith.mulf %70, %71 : vector<5x8xf32>
    %73 = vector.extract_strided_slice %51 {offsets = [0, 40], sizes = [5, 8], strides = [1, 1]} : vector<10x96xf32> to vector<5x8xf32>
    %74 = vector.extract_strided_slice %51 {offsets = [0, 72], sizes = [5, 8], strides = [1, 1]} : vector<10x96xf32> to vector<5x8xf32>
    "tpu.trace_start"() <{level = 10 : i32, message = "nd,md->nm"}> : () -> ()
    %cst_44 = arith.constant dense<0.000000e+00> : vector<5x5xf32>
    %75 = tpu.matmul %72, %73, %cst_44 {dimension_numbers = #tpu.dot_dimension_numbers<[1], [1], [0], [0], [0, 0, 1, 0], [], []>} : vector<5x8xf32>, vector<5x8xf32>, vector<5x5xf32> -> vector<5x5xf32>
    "tpu.trace_stop"() : () -> ()
    %cst_45 = arith.constant dense<0xFF800000> : vector<5xf32>
    %76 = vector.multi_reduction <maximumf>, %75, %cst_45 [1] : vector<5x5xf32> to vector<5xf32>
    %77 = vector.shape_cast %76 : vector<5xf32> to vector<5x1xf32>
    %78 = vector.broadcast %77 : vector<5x1xf32> to vector<5x5xf32>
    %79 = arith.subf %75, %78 : vector<5x5xf32>
    %80 = math.exp %79 : vector<5x5xf32>
    %cst_46 = arith.constant dense<0.000000e+00> : vector<5xf32>
    %81 = vector.multi_reduction <add>, %80, %cst_46 [1] : vector<5x5xf32> to vector<5xf32>
    %82 = vector.shape_cast %81 : vector<5xf32> to vector<5x1xf32>
    %83 = tpu.reciprocal %82 {approx = true} : vector<5x1xf32> -> vector<5x1xf32>
    %84 = vector.broadcast %83 : vector<5x1xf32> to vector<5x5xf32>
    %85 = arith.mulf %80, %84 : vector<5x5xf32>
    %cst_47 = arith.constant dense<0.000000e+00> : vector<5x8xf32>
    %86 = tpu.matmul %85, %74, %cst_47 {dimension_numbers = #tpu.dot_dimension_numbers<[1], [0], [0], [1], [0, 0, 1, 1], [], []>} : vector<5x5xf32>, vector<5x8xf32>, vector<5x8xf32> -> vector<5x8xf32>
    %c0_48 = arith.constant 0 : index
    %c8 = arith.constant 8 : index
    %87 = vector.load %arg22[%c0_48, %c8] : memref<10x32xf32, #tpu.memory_space<vmem>>, vector<5x8xf32>
    tpu.vector_store %arg22[%c0_48, %c8], %86 {strides = array<i32>} : memref<10x32xf32, #tpu.memory_space<vmem>>, vector<5x8xf32>,
    %88 = vector.extract_strided_slice %51 {offsets = [0, 16], sizes = [5, 8], strides = [1, 1]} : vector<10x96xf32> to vector<5x8xf32>
    %cst_49 = arith.constant 0.353553385 : f32
    %89 = vector.broadcast %cst_49 : f32 to vector<5x8xf32>
    %90 = arith.mulf %88, %89 : vector<5x8xf32>
    %91 = vector.extract_strided_slice %51 {offsets = [0, 48], sizes = [5, 8], strides = [1, 1]} : vector<10x96xf32> to vector<5x8xf32>
    %92 = vector.extract_strided_slice %51 {offsets = [0, 80], sizes = [5, 8], strides = [1, 1]} : vector<10x96xf32> to vector<5x8xf32>
    "tpu.trace_start"() <{level = 10 : i32, message = "nd,md->nm"}> : () -> ()
    %cst_50 = arith.constant dense<0.000000e+00> : vector<5x5xf32>
    %93 = tpu.matmul %90, %91, %cst_50 {dimension_numbers = #tpu.dot_dimension_numbers<[1], [1], [0], [0], [0, 0, 1, 0], [], []>} : vector<5x8xf32>, vector<5x8xf32>, vector<5x5xf32> -> vector<5x5xf32>
    "tpu.trace_stop"() : () -> ()
    %cst_51 = arith.constant dense<0xFF800000> : vector<5xf32>
    %94 = vector.multi_reduction <maximumf>, %93, %cst_51 [1] : vector<5x5xf32> to vector<5xf32>
    %95 = vector.shape_cast %94 : vector<5xf32> to vector<5x1xf32>
    %96 = vector.broadcast %95 : vector<5x1xf32> to vector<5x5xf32>
    %97 = arith.subf %93, %96 : vector<5x5xf32>
    %98 = math.exp %97 : vector<5x5xf32>
    %cst_52 = arith.constant dense<0.000000e+00> : vector<5xf32>
    %99 = vector.multi_reduction <add>, %98, %cst_52 [1] : vector<5x5xf32> to vector<5xf32>
    %100 = vector.shape_cast %99 : vector<5xf32> to vector<5x1xf32>
    %101 = tpu.reciprocal %100 {approx = true} : vector<5x1xf32> -> vector<5x1xf32>
    %102 = vector.broadcast %101 : vector<5x1xf32> to vector<5x5xf32>
    %103 = arith.mulf %98, %102 : vector<5x5xf32>
    %cst_53 = arith.constant dense<0.000000e+00> : vector<5x8xf32>
    %104 = tpu.matmul %103, %92, %cst_53 {dimension_numbers = #tpu.dot_dimension_numbers<[1], [0], [0], [1], [0, 0, 1, 1], [], []>} : vector<5x5xf32>, vector<5x8xf32>, vector<5x8xf32> -> vector<5x8xf32>
    %c0_54 = arith.constant 0 : index
    %c16 = arith.constant 16 : index
    %105 = vector.load %arg22[%c0_54, %c16] : memref<10x32xf32, #tpu.memory_space<vmem>>, vector<5x8xf32>
    tpu.vector_store %arg22[%c0_54, %c16], %104 {strides = array<i32>} : memref<10x32xf32, #tpu.memory_space<vmem>>, vector<5x8xf32>,
    %106 = vector.extract_strided_slice %51 {offsets = [0, 24], sizes = [5, 8], strides = [1, 1]} : vector<10x96xf32> to vector<5x8xf32>
    %cst_55 = arith.constant 0.353553385 : f32
    %107 = vector.broadcast %cst_55 : f32 to vector<5x8xf32>
    %108 = arith.mulf %106, %107 : vector<5x8xf32>
    %109 = vector.extract_strided_slice %51 {offsets = [0, 56], sizes = [5, 8], strides = [1, 1]} : vector<10x96xf32> to vector<5x8xf32>
    %110 = vector.extract_strided_slice %51 {offsets = [0, 88], sizes = [5, 8], strides = [1, 1]} : vector<10x96xf32> to vector<5x8xf32>
    "tpu.trace_start"() <{level = 10 : i32, message = "nd,md->nm"}> : () -> ()
    %cst_56 = arith.constant dense<0.000000e+00> : vector<5x5xf32>
    %111 = tpu.matmul %108, %109, %cst_56 {dimension_numbers = #tpu.dot_dimension_numbers<[1], [1], [0], [0], [0, 0, 1, 0], [], []>} : vector<5x8xf32>, vector<5x8xf32>, vector<5x5xf32> -> vector<5x5xf32>
    "tpu.trace_stop"() : () -> ()
    %cst_57 = arith.constant dense<0xFF800000> : vector<5xf32>
    %112 = vector.multi_reduction <maximumf>, %111, %cst_57 [1] : vector<5x5xf32> to vector<5xf32>
    %113 = vector.shape_cast %112 : vector<5xf32> to vector<5x1xf32>
    %114 = vector.broadcast %113 : vector<5x1xf32> to vector<5x5xf32>
    %115 = arith.subf %111, %114 : vector<5x5xf32>
    %116 = math.exp %115 : vector<5x5xf32>
    %cst_58 = arith.constant dense<0.000000e+00> : vector<5xf32>
    %117 = vector.multi_reduction <add>, %116, %cst_58 [1] : vector<5x5xf32> to vector<5xf32>
    %118 = vector.shape_cast %117 : vector<5xf32> to vector<5x1xf32>
    %119 = tpu.reciprocal %118 {approx = true} : vector<5x1xf32> -> vector<5x1xf32>
    %120 = vector.broadcast %119 : vector<5x1xf32> to vector<5x5xf32>
    %121 = arith.mulf %116, %120 : vector<5x5xf32>
    %cst_59 = arith.constant dense<0.000000e+00> : vector<5x8xf32>
    %122 = tpu.matmul %121, %110, %cst_59 {dimension_numbers = #tpu.dot_dimension_numbers<[1], [0], [0], [1], [0, 0, 1, 1], [], []>} : vector<5x5xf32>, vector<5x8xf32>, vector<5x8xf32> -> vector<5x8xf32>
    %c0_60 = arith.constant 0 : index
    %c24 = arith.constant 24 : index
    %123 = vector.load %arg22[%c0_60, %c24] : memref<10x32xf32, #tpu.memory_space<vmem>>, vector<5x8xf32>
    tpu.vector_store %arg22[%c0_60, %c24], %122 {strides = array<i32>} : memref<10x32xf32, #tpu.memory_space<vmem>>, vector<5x8xf32>,
    %124 = vector.extract_strided_slice %51 {offsets = [5, 0], sizes = [5, 8], strides = [1, 1]} : vector<10x96xf32> to vector<5x8xf32>
    %cst_61 = arith.constant 0.353553385 : f32
    %125 = vector.broadcast %cst_61 : f32 to vector<5x8xf32>
    %126 = arith.mulf %124, %125 : vector<5x8xf32>
    %127 = vector.extract_strided_slice %51 {offsets = [5, 32], sizes = [5, 8], strides = [1, 1]} : vector<10x96xf32> to vector<5x8xf32>
    %128 = vector.extract_strided_slice %51 {offsets = [5, 64], sizes = [5, 8], strides = [1, 1]} : vector<10x96xf32> to vector<5x8xf32>
    "tpu.trace_start"() <{level = 10 : i32, message = "nd,md->nm"}> : () -> ()
    %cst_62 = arith.constant dense<0.000000e+00> : vector<5x5xf32>
    %129 = tpu.matmul %126, %127, %cst_62 {dimension_numbers = #tpu.dot_dimension_numbers<[1], [1], [0], [0], [0, 0, 1, 0], [], []>} : vector<5x8xf32>, vector<5x8xf32>, vector<5x5xf32> -> vector<5x5xf32>
    "tpu.trace_stop"() : () -> ()
    %cst_63 = arith.constant dense<0xFF800000> : vector<5xf32>
    %130 = vector.multi_reduction <maximumf>, %129, %cst_63 [1] : vector<5x5xf32> to vector<5xf32>
    %131 = vector.shape_cast %130 : vector<5xf32> to vector<5x1xf32>
    %132 = vector.broadcast %131 : vector<5x1xf32> to vector<5x5xf32>
    %133 = arith.subf %129, %132 : vector<5x5xf32>
    %134 = math.exp %133 : vector<5x5xf32>
    %cst_64 = arith.constant dense<0.000000e+00> : vector<5xf32>
    %135 = vector.multi_reduction <add>, %134, %cst_64 [1] : vector<5x5xf32> to vector<5xf32>
    %136 = vector.shape_cast %135 : vector<5xf32> to vector<5x1xf32>
    %137 = tpu.reciprocal %136 {approx = true} : vector<5x1xf32> -> vector<5x1xf32>
    %138 = vector.broadcast %137 : vector<5x1xf32> to vector<5x5xf32>
    %139 = arith.mulf %134, %138 : vector<5x5xf32>
    %cst_65 = arith.constant dense<0.000000e+00> : vector<5x8xf32>
    %140 = tpu.matmul %139, %128, %cst_65 {dimension_numbers = #tpu.dot_dimension_numbers<[1], [0], [0], [1], [0, 0, 1, 1], [], []>} : vector<5x5xf32>, vector<5x8xf32>, vector<5x8xf32> -> vector<5x8xf32>
    %c5_66 = arith.constant 5 : index
    %c0_67 = arith.constant 0 : index
    %141 = vector.load %arg22[%c5_66, %c0_67] : memref<10x32xf32, #tpu.memory_space<vmem>>, vector<5x8xf32>
    tpu.vector_store %arg22[%c5_66, %c0_67], %140 {strides = array<i32>} : memref<10x32xf32, #tpu.memory_space<vmem>>, vector<5x8xf32>,
    %142 = vector.extract_strided_slice %51 {offsets = [5, 8], sizes = [5, 8], strides = [1, 1]} : vector<10x96xf32> to vector<5x8xf32>
    %cst_68 = arith.constant 0.353553385 : f32
    %143 = vector.broadcast %cst_68 : f32 to vector<5x8xf32>
    %144 = arith.mulf %142, %143 : vector<5x8xf32>
    %145 = vector.extract_strided_slice %51 {offsets = [5, 40], sizes = [5, 8], strides = [1, 1]} : vector<10x96xf32> to vector<5x8xf32>
    %146 = vector.extract_strided_slice %51 {offsets = [5, 72], sizes = [5, 8], strides = [1, 1]} : vector<10x96xf32> to vector<5x8xf32>
    "tpu.trace_start"() <{level = 10 : i32, message = "nd,md->nm"}> : () -> ()
    %cst_69 = arith.constant dense<0.000000e+00> : vector<5x5xf32>
    %147 = tpu.matmul %144, %145, %cst_69 {dimension_numbers = #tpu.dot_dimension_numbers<[1], [1], [0], [0], [0, 0, 1, 0], [], []>} : vector<5x8xf32>, vector<5x8xf32>, vector<5x5xf32> -> vector<5x5xf32>
    "tpu.trace_stop"() : () -> ()
    %cst_70 = arith.constant dense<0xFF800000> : vector<5xf32>
    %148 = vector.multi_reduction <maximumf>, %147, %cst_70 [1] : vector<5x5xf32> to vector<5xf32>
    %149 = vector.shape_cast %148 : vector<5xf32> to vector<5x1xf32>
    %150 = vector.broadcast %149 : vector<5x1xf32> to vector<5x5xf32>
    %151 = arith.subf %147, %150 : vector<5x5xf32>
    %152 = math.exp %151 : vector<5x5xf32>
    %cst_71 = arith.constant dense<0.000000e+00> : vector<5xf32>
    %153 = vector.multi_reduction <add>, %152, %cst_71 [1] : vector<5x5xf32> to vector<5xf32>
    %154 = vector.shape_cast %153 : vector<5xf32> to vector<5x1xf32>
    %155 = tpu.reciprocal %154 {approx = true} : vector<5x1xf32> -> vector<5x1xf32>
    %156 = vector.broadcast %155 : vector<5x1xf32> to vector<5x5xf32>
    %157 = arith.mulf %152, %156 : vector<5x5xf32>
    %cst_72 = arith.constant dense<0.000000e+00> : vector<5x8xf32>
    %158 = tpu.matmul %157, %146, %cst_72 {dimension_numbers = #tpu.dot_dimension_numbers<[1], [0], [0], [1], [0, 0, 1, 1], [], []>} : vector<5x5xf32>, vector<5x8xf32>, vector<5x8xf32> -> vector<5x8xf32>
    %c5_73 = arith.constant 5 : index
    %c8_74 = arith.constant 8 : index
    %159 = vector.load %arg22[%c5_73, %c8_74] : memref<10x32xf32, #tpu.memory_space<vmem>>, vector<5x8xf32>
    tpu.vector_store %arg22[%c5_73, %c8_74], %158 {strides = array<i32>} : memref<10x32xf32, #tpu.memory_space<vmem>>, vector<5x8xf32>,
    %160 = vector.extract_strided_slice %51 {offsets = [5, 16], sizes = [5, 8], strides = [1, 1]} : vector<10x96xf32> to vector<5x8xf32>
    %cst_75 = arith.constant 0.353553385 : f32
    %161 = vector.broadcast %cst_75 : f32 to vector<5x8xf32>
    %162 = arith.mulf %160, %161 : vector<5x8xf32>
    %163 = vector.extract_strided_slice %51 {offsets = [5, 48], sizes = [5, 8], strides = [1, 1]} : vector<10x96xf32> to vector<5x8xf32>
    %164 = vector.extract_strided_slice %51 {offsets = [5, 80], sizes = [5, 8], strides = [1, 1]} : vector<10x96xf32> to vector<5x8xf32>
    "tpu.trace_start"() <{level = 10 : i32, message = "nd,md->nm"}> : () -> ()
    %cst_76 = arith.constant dense<0.000000e+00> : vector<5x5xf32>
    %165 = tpu.matmul %162, %163, %cst_76 {dimension_numbers = #tpu.dot_dimension_numbers<[1], [1], [0], [0], [0, 0, 1, 0], [], []>} : vector<5x8xf32>, vector<5x8xf32>, vector<5x5xf32> -> vector<5x5xf32>
    "tpu.trace_stop"() : () -> ()
    %cst_77 = arith.constant dense<0xFF800000> : vector<5xf32>
    %166 = vector.multi_reduction <maximumf>, %165, %cst_77 [1] : vector<5x5xf32> to vector<5xf32>
    %167 = vector.shape_cast %166 : vector<5xf32> to vector<5x1xf32>
    %168 = vector.broadcast %167 : vector<5x1xf32> to vector<5x5xf32>
    %169 = arith.subf %165, %168 : vector<5x5xf32>
    %170 = math.exp %169 : vector<5x5xf32>
    %cst_78 = arith.constant dense<0.000000e+00> : vector<5xf32>
    %171 = vector.multi_reduction <add>, %170, %cst_78 [1] : vector<5x5xf32> to vector<5xf32>
    %172 = vector.shape_cast %171 : vector<5xf32> to vector<5x1xf32>
    %173 = tpu.reciprocal %172 {approx = true} : vector<5x1xf32> -> vector<5x1xf32>
    %174 = vector.broadcast %173 : vector<5x1xf32> to vector<5x5xf32>
    %175 = arith.mulf %170, %174 : vector<5x5xf32>
    %cst_79 = arith.constant dense<0.000000e+00> : vector<5x8xf32>
    %176 = tpu.matmul %175, %164, %cst_79 {dimension_numbers = #tpu.dot_dimension_numbers<[1], [0], [0], [1], [0, 0, 1, 1], [], []>} : vector<5x5xf32>, vector<5x8xf32>, vector<5x8xf32> -> vector<5x8xf32>
    %c5_80 = arith.constant 5 : index
    %c16_81 = arith.constant 16 : index
    %177 = vector.load %arg22[%c5_80, %c16_81] : memref<10x32xf32, #tpu.memory_space<vmem>>, vector<5x8xf32>
    tpu.vector_store %arg22[%c5_80, %c16_81], %176 {strides = array<i32>} : memref<10x32xf32, #tpu.memory_space<vmem>>, vector<5x8xf32>,
    %178 = vector.extract_strided_slice %51 {offsets = [5, 24], sizes = [5, 8], strides = [1, 1]} : vector<10x96xf32> to vector<5x8xf32>
    %cst_82 = arith.constant 0.353553385 : f32
    %179 = vector.broadcast %cst_82 : f32 to vector<5x8xf32>
    %180 = arith.mulf %178, %179 : vector<5x8xf32>
    %181 = vector.extract_strided_slice %51 {offsets = [5, 56], sizes = [5, 8], strides = [1, 1]} : vector<10x96xf32> to vector<5x8xf32>
    %182 = vector.extract_strided_slice %51 {offsets = [5, 88], sizes = [5, 8], strides = [1, 1]} : vector<10x96xf32> to vector<5x8xf32>
    "tpu.trace_start"() <{level = 10 : i32, message = "nd,md->nm"}> : () -> ()
    %cst_83 = arith.constant dense<0.000000e+00> : vector<5x5xf32>
    %183 = tpu.matmul %180, %181, %cst_83 {dimension_numbers = #tpu.dot_dimension_numbers<[1], [1], [0], [0], [0, 0, 1, 0], [], []>} : vector<5x8xf32>, vector<5x8xf32>, vector<5x5xf32> -> vector<5x5xf32>
    "tpu.trace_stop"() : () -> ()
    %cst_84 = arith.constant dense<0xFF800000> : vector<5xf32>
    %184 = vector.multi_reduction <maximumf>, %183, %cst_84 [1] : vector<5x5xf32> to vector<5xf32>
    %185 = vector.shape_cast %184 : vector<5xf32> to vector<5x1xf32>
    %186 = vector.broadcast %185 : vector<5x1xf32> to vector<5x5xf32>
    %187 = arith.subf %183, %186 : vector<5x5xf32>
    %188 = math.exp %187 : vector<5x5xf32>
    %cst_85 = arith.constant dense<0.000000e+00> : vector<5xf32>
    %189 = vector.multi_reduction <add>, %188, %cst_85 [1] : vector<5x5xf32> to vector<5xf32>
    %190 = vector.shape_cast %189 : vector<5xf32> to vector<5x1xf32>
    %191 = tpu.reciprocal %190 {approx = true} : vector<5x1xf32> -> vector<5x1xf32>
    %192 = vector.broadcast %191 : vector<5x1xf32> to vector<5x5xf32>
    %193 = arith.mulf %188, %192 : vector<5x5xf32>
    %cst_86 = arith.constant dense<0.000000e+00> : vector<5x8xf32>
    %194 = tpu.matmul %193, %182, %cst_86 {dimension_numbers = #tpu.dot_dimension_numbers<[1], [0], [0], [1], [0, 0, 1, 1], [], []>} : vector<5x5xf32>, vector<5x8xf32>, vector<5x8xf32> -> vector<5x8xf32>
    %c5_87 = arith.constant 5 : index
    %c24_88 = arith.constant 24 : index
    %195 = vector.load %arg22[%c5_87, %c24_88] : memref<10x32xf32, #tpu.memory_space<vmem>>, vector<5x8xf32>
    tpu.vector_store %arg22[%c5_87, %c24_88], %194 {strides = array<i32>} : memref<10x32xf32, #tpu.memory_space<vmem>>, vector<5x8xf32>,
    %c0_89 = arith.constant 0 : index
    %c0_90 = arith.constant 0 : index
    %196 = vector.load %arg22[%c0_89, %c0_90] : memref<10x32xf32, #tpu.memory_space<vmem>>, vector<10x32xf32>
    %c0_91 = arith.constant 0 : index
    %c0_92 = arith.constant 0 : index
    %c0_93 = arith.constant 0 : index
    %197 = vector.load %arg9[%c0_91, %c0_92, %c0_93] : memref<2x32x32xf32, #tpu.memory_space<vmem>>, vector<1x32x32xf32>
    %198 = vector.shape_cast %197 : vector<1x32x32xf32> to vector<32x32xf32>
    %cst_94 = arith.constant dense<0.000000e+00> : vector<10x32xf32>
    %199 = tpu.matmul %196, %198, %cst_94 {dimension_numbers = #tpu.dot_dimension_numbers<[1], [0], [0], [1], [0, 0, 1, 1], [], []>} : vector<10x32xf32>, vector<32x32xf32>, vector<10x32xf32> -> vector<10x32xf32>
    %c0_95 = arith.constant 0 : index
    %c0_96 = arith.constant 0 : index
    %c0_97 = arith.constant 0 : index
    %200 = vector.load %arg10[%c0_95, %c0_96, %c0_97] : memref<2x1x32xf32, #tpu.memory_space<vmem>>, vector<1x1x32xf32>
    %201 = vector.shape_cast %200 : vector<1x1x32xf32> to vector<1x32xf32>
    %202 = vector.broadcast %201 : vector<1x32xf32> to vector<10x32xf32>
    %203 = arith.addf %199, %202 : vector<10x32xf32>
    %204 = arith.addf %18, %203 : vector<10x32xf32>
    %c0_98 = arith.constant 0 : index
    %c0_99 = arith.constant 0 : index
    %c0_100 = arith.constant 0 : index
    %205 = vector.load %arg11[%c0_98, %c0_99, %c0_100] : memref<2x1x32xf32, #tpu.memory_space<vmem>>, vector<1x1x32xf32>
    %206 = vector.shape_cast %205 : vector<1x1x32xf32> to vector<1x32xf32>
    %c0_101 = arith.constant 0 : index
    %c0_102 = arith.constant 0 : index
    %c0_103 = arith.constant 0 : index
    %207 = vector.load %arg12[%c0_101, %c0_102, %c0_103] : memref<2x1x32xf32, #tpu.memory_space<vmem>>, vector<1x1x32xf32>
    %208 = vector.shape_cast %207 : vector<1x1x32xf32> to vector<1x32xf32>
    %cst_104 = arith.constant dense<0.000000e+00> : vector<10xf32>
    %209 = vector.multi_reduction <add>, %204, %cst_104 [1] : vector<10x32xf32> to vector<10xf32>
    %210 = vector.shape_cast %209 : vector<10xf32> to vector<10x1xf32>
    %cst_105 = arith.constant 3.200000e+01 : f32
    %211 = vector.broadcast %cst_105 : f32 to vector<10x1xf32>
    %212 = arith.divf %210, %211 : vector<10x1xf32>
    %213 = vector.broadcast %212 : vector<10x1xf32> to vector<10x32xf32>
    %214 = arith.subf %204, %213 : vector<10x32xf32>
    %215 = arith.mulf %214, %214 : vector<10x32xf32>
    %cst_106 = arith.constant dense<0.000000e+00> : vector<10xf32>
    %216 = vector.multi_reduction <add>, %215, %cst_106 [1] : vector<10x32xf32> to vector<10xf32>
    %217 = vector.shape_cast %216 : vector<10xf32> to vector<10x1xf32>
    %cst_107 = arith.constant 3.200000e+01 : f32
    %218 = vector.broadcast %cst_107 : f32 to vector<10x1xf32>
    %219 = arith.divf %217, %218 : vector<10x1xf32>
    %220 = vector.broadcast %212 : vector<10x1xf32> to vector<10x32xf32>
    %221 = arith.subf %204, %220 : vector<10x32xf32>
    %cst_108 = arith.constant 9.99999997E-7 : f32
    %222 = vector.broadcast %cst_108 : f32 to vector<10x1xf32>
    %223 = arith.addf %219, %222 : vector<10x1xf32>
    %224 = math.rsqrt %223 : vector<10x1xf32>
    %225 = vector.broadcast %224 : vector<10x1xf32> to vector<10x32xf32>
    %226 = arith.mulf %221, %225 : vector<10x32xf32>
    %227 = vector.broadcast %206 : vector<1x32xf32> to vector<10x32xf32>
    %228 = arith.mulf %226, %227 : vector<10x32xf32>
    %229 = vector.broadcast %208 : vector<1x32xf32> to vector<10x32xf32>
    %230 = arith.addf %228, %229 : vector<10x32xf32>
    %c0_109 = arith.constant 0 : index
    %c0_110 = arith.constant 0 : index
    %c0_111 = arith.constant 0 : index
    %231 = vector.load %arg13[%c0_109, %c0_110, %c0_111] : memref<2x32x128xf32, #tpu.memory_space<vmem>>, vector<1x32x128xf32>
    %232 = vector.shape_cast %231 : vector<1x32x128xf32> to vector<32x128xf32>
    %cst_112 = arith.constant dense<0.000000e+00> : vector<10x128xf32>
    %233 = tpu.matmul %230, %232, %cst_112 {dimension_numbers = #tpu.dot_dimension_numbers<[1], [0], [0], [1], [0, 0, 1, 1], [], []>} : vector<10x32xf32>, vector<32x128xf32>, vector<10x128xf32> -> vector<10x128xf32>
    %c0_113 = arith.constant 0 : index
    %c0_114 = arith.constant 0 : index
    %c0_115 = arith.constant 0 : index
    %234 = vector.load %arg14[%c0_113, %c0_114, %c0_115] : memref<2x1x128xf32, #tpu.memory_space<vmem>>, vector<1x1x128xf32>
    %235 = vector.shape_cast %234 : vector<1x1x128xf32> to vector<1x128xf32>
    %236 = vector.broadcast %235 : vector<1x128xf32> to vector<10x128xf32>
    %237 = arith.addf %233, %236 : vector<10x128xf32>
    %cst_116 = arith.constant 5.000000e-01 : f32
    %238 = vector.broadcast %cst_116 : f32 to vector<10x128xf32>
    %239 = arith.mulf %238, %237 : vector<10x128xf32>
    %cst_117 = arith.constant 0.707106769 : f32
    %240 = vector.broadcast %cst_117 : f32 to vector<10x128xf32>
    %241 = arith.mulf %237, %240 : vector<10x128xf32>
    %242 = math.erf %241 : vector<10x128xf32>
    %cst_118 = arith.constant 1.000000e+00 : f32
    %243 = vector.broadcast %cst_118 : f32 to vector<10x128xf32>
    %244 = arith.addf %243, %242 : vector<10x128xf32>
    %245 = arith.mulf %239, %244 : vector<10x128xf32>
    %c0_119 = arith.constant 0 : index
    %c0_120 = arith.constant 0 : index
    %c0_121 = arith.constant 0 : index
    %246 = vector.load %arg15[%c0_119, %c0_120, %c0_121] : memref<2x128x32xf32, #tpu.memory_space<vmem>>, vector<1x128x32xf32>
    %247 = vector.shape_cast %246 : vector<1x128x32xf32> to vector<128x32xf32>
    %cst_122 = arith.constant dense<0.000000e+00> : vector<10x32xf32>
    %248 = tpu.matmul %245, %247, %cst_122 {dimension_numbers = #tpu.dot_dimension_numbers<[1], [0], [0], [1], [0, 0, 1, 1], [], []>} : vector<10x128xf32>, vector<128x32xf32>, vector<10x32xf32> -> vector<10x32xf32>
    %c0_123 = arith.constant 0 : index
    %c0_124 = arith.constant 0 : index
    %c0_125 = arith.constant 0 : index
    %249 = vector.load %arg16[%c0_123, %c0_124, %c0_125] : memref<2x1x32xf32, #tpu.memory_space<vmem>>, vector<1x1x32xf32>
    %250 = vector.shape_cast %249 : vector<1x1x32xf32> to vector<1x32xf32>
    %251 = vector.broadcast %250 : vector<1x32xf32> to vector<10x32xf32>
    %252 = arith.addf %248, %251 : vector<10x32xf32>
    %253 = arith.addf %204, %252 : vector<10x32xf32>
    %c1_126 = arith.constant 1 : index
    %c0_127 = arith.constant 0 : index
    %c0_128 = arith.constant 0 : index
    %254 = vector.load %arg5[%c1_126, %c0_127, %c0_128] : memref<2x1x32xf32, #tpu.memory_space<vmem>>, vector<1x1x32xf32>
    %255 = vector.shape_cast %254 : vector<1x1x32xf32> to vector<1x32xf32>
    %c1_129 = arith.constant 1 : index
    %c0_130 = arith.constant 0 : index
    %c0_131 = arith.constant 0 : index
    %256 = vector.load %arg6[%c1_129, %c0_130, %c0_131] : memref<2x1x32xf32, #tpu.memory_space<vmem>>, vector<1x1x32xf32>
    %257 = vector.shape_cast %256 : vector<1x1x32xf32> to vector<1x32xf32>
    %cst_132 = arith.constant dense<0.000000e+00> : vector<10xf32>
    %258 = vector.multi_reduction <add>, %253, %cst_132 [1] : vector<10x32xf32> to vector<10xf32>
    %259 = vector.shape_cast %258 : vector<10xf32> to vector<10x1xf32>
    %cst_133 = arith.constant 3.200000e+01 : f32
    %260 = vector.broadcast %cst_133 : f32 to vector<10x1xf32>
    %261 = arith.divf %259, %260 : vector<10x1xf32>
    %262 = vector.broadcast %261 : vector<10x1xf32> to vector<10x32xf32>
    %263 = arith.subf %253, %262 : vector<10x32xf32>
    %264 = arith.mulf %263, %263 : vector<10x32xf32>
    %cst_134 = arith.constant dense<0.000000e+00> : vector<10xf32>
    %265 = vector.multi_reduction <add>, %264, %cst_134 [1] : vector<10x32xf32> to vector<10xf32>
    %266 = vector.shape_cast %265 : vector<10xf32> to vector<10x1xf32>
    %cst_135 = arith.constant 3.200000e+01 : f32
    %267 = vector.broadcast %cst_135 : f32 to vector<10x1xf32>
    %268 = arith.divf %266, %267 : vector<10x1xf32>
    %269 = vector.broadcast %261 : vector<10x1xf32> to vector<10x32xf32>
    %270 = arith.subf %253, %269 : vector<10x32xf32>
    %cst_136 = arith.constant 9.99999997E-7 : f32
    %271 = vector.broadcast %cst_136 : f32 to vector<10x1xf32>
    %272 = arith.addf %268, %271 : vector<10x1xf32>
    %273 = math.rsqrt %272 : vector<10x1xf32>
    %274 = vector.broadcast %273 : vector<10x1xf32> to vector<10x32xf32>
    %275 = arith.mulf %270, %274 : vector<10x32xf32>
    %276 = vector.broadcast %255 : vector<1x32xf32> to vector<10x32xf32>
    %277 = arith.mulf %275, %276 : vector<10x32xf32>
    %278 = vector.broadcast %257 : vector<1x32xf32> to vector<10x32xf32>
    %279 = arith.addf %277, %278 : vector<10x32xf32>
    %c1_137 = arith.constant 1 : index
    %c0_138 = arith.constant 0 : index
    %c0_139 = arith.constant 0 : index
    %280 = vector.load %arg7[%c1_137, %c0_138, %c0_139] : memref<2x32x96xf32, #tpu.memory_space<vmem>>, vector<1x32x96xf32>
    %281 = vector.shape_cast %280 : vector<1x32x96xf32> to vector<32x96xf32>
    %cst_140 = arith.constant dense<0.000000e+00> : vector<10x96xf32>
    %282 = tpu.matmul %279, %281, %cst_140 {dimension_numbers = #tpu.dot_dimension_numbers<[1], [0], [0], [1], [0, 0, 1, 1], [], []>} : vector<10x32xf32>, vector<32x96xf32>, vector<10x96xf32> -> vector<10x96xf32>
    %c1_141 = arith.constant 1 : index
    %c0_142 = arith.constant 0 : index
    %c0_143 = arith.constant 0 : index
    %283 = vector.load %arg8[%c1_141, %c0_142, %c0_143] : memref<2x1x96xf32, #tpu.memory_space<vmem>>, vector<1x1x96xf32>
    %284 = vector.shape_cast %283 : vector<1x1x96xf32> to vector<1x96xf32>
    %285 = vector.broadcast %284 : vector<1x96xf32> to vector<10x96xf32>
    %286 = arith.addf %282, %285 : vector<10x96xf32>
    %287 = vector.extract_strided_slice %286 {offsets = [0, 0], sizes = [5, 8], strides = [1, 1]} : vector<10x96xf32> to vector<5x8xf32>
    %cst_144 = arith.constant 0.353553385 : f32
    %288 = vector.broadcast %cst_144 : f32 to vector<5x8xf32>
    %289 = arith.mulf %287, %288 : vector<5x8xf32>
    %290 = vector.extract_strided_slice %286 {offsets = [0, 32], sizes = [5, 8], strides = [1, 1]} : vector<10x96xf32> to vector<5x8xf32>
    %291 = vector.extract_strided_slice %286 {offsets = [0, 64], sizes = [5, 8], strides = [1, 1]} : vector<10x96xf32> to vector<5x8xf32>
    "tpu.trace_start"() <{level = 10 : i32, message = "nd,md->nm"}> : () -> ()
    %cst_145 = arith.constant dense<0.000000e+00> : vector<5x5xf32>
    %292 = tpu.matmul %289, %290, %cst_145 {dimension_numbers = #tpu.dot_dimension_numbers<[1], [1], [0], [0], [0, 0, 1, 0], [], []>} : vector<5x8xf32>, vector<5x8xf32>, vector<5x5xf32> -> vector<5x5xf32>
    "tpu.trace_stop"() : () -> ()
    %cst_146 = arith.constant dense<0xFF800000> : vector<5xf32>
    %293 = vector.multi_reduction <maximumf>, %292, %cst_146 [1] : vector<5x5xf32> to vector<5xf32>
    %294 = vector.shape_cast %293 : vector<5xf32> to vector<5x1xf32>
    %295 = vector.broadcast %294 : vector<5x1xf32> to vector<5x5xf32>
    %296 = arith.subf %292, %295 : vector<5x5xf32>
    %297 = math.exp %296 : vector<5x5xf32>
    %cst_147 = arith.constant dense<0.000000e+00> : vector<5xf32>
    %298 = vector.multi_reduction <add>, %297, %cst_147 [1] : vector<5x5xf32> to vector<5xf32>
    %299 = vector.shape_cast %298 : vector<5xf32> to vector<5x1xf32>
    %300 = tpu.reciprocal %299 {approx = true} : vector<5x1xf32> -> vector<5x1xf32>
    %301 = vector.broadcast %300 : vector<5x1xf32> to vector<5x5xf32>
    %302 = arith.mulf %297, %301 : vector<5x5xf32>
    %cst_148 = arith.constant dense<0.000000e+00> : vector<5x8xf32>
    %303 = tpu.matmul %302, %291, %cst_148 {dimension_numbers = #tpu.dot_dimension_numbers<[1], [0], [0], [1], [0, 0, 1, 1], [], []>} : vector<5x5xf32>, vector<5x8xf32>, vector<5x8xf32> -> vector<5x8xf32>
    %c0_149 = arith.constant 0 : index
    %c0_150 = arith.constant 0 : index
    %304 = vector.load %arg22[%c0_149, %c0_150] : memref<10x32xf32, #tpu.memory_space<vmem>>, vector<5x8xf32>
    tpu.vector_store %arg22[%c0_149, %c0_150], %303 {strides = array<i32>} : memref<10x32xf32, #tpu.memory_space<vmem>>, vector<5x8xf32>,
    %305 = vector.extract_strided_slice %286 {offsets = [0, 8], sizes = [5, 8], strides = [1, 1]} : vector<10x96xf32> to vector<5x8xf32>
    %cst_151 = arith.constant 0.353553385 : f32
    %306 = vector.broadcast %cst_151 : f32 to vector<5x8xf32>
    %307 = arith.mulf %305, %306 : vector<5x8xf32>
    %308 = vector.extract_strided_slice %286 {offsets = [0, 40], sizes = [5, 8], strides = [1, 1]} : vector<10x96xf32> to vector<5x8xf32>
    %309 = vector.extract_strided_slice %286 {offsets = [0, 72], sizes = [5, 8], strides = [1, 1]} : vector<10x96xf32> to vector<5x8xf32>
    "tpu.trace_start"() <{level = 10 : i32, message = "nd,md->nm"}> : () -> ()
    %cst_152 = arith.constant dense<0.000000e+00> : vector<5x5xf32>
    %310 = tpu.matmul %307, %308, %cst_152 {dimension_numbers = #tpu.dot_dimension_numbers<[1], [1], [0], [0], [0, 0, 1, 0], [], []>} : vector<5x8xf32>, vector<5x8xf32>, vector<5x5xf32> -> vector<5x5xf32>
    "tpu.trace_stop"() : () -> ()
    %cst_153 = arith.constant dense<0xFF800000> : vector<5xf32>
    %311 = vector.multi_reduction <maximumf>, %310, %cst_153 [1] : vector<5x5xf32> to vector<5xf32>
    %312 = vector.shape_cast %311 : vector<5xf32> to vector<5x1xf32>
    %313 = vector.broadcast %312 : vector<5x1xf32> to vector<5x5xf32>
    %314 = arith.subf %310, %313 : vector<5x5xf32>
    %315 = math.exp %314 : vector<5x5xf32>
    %cst_154 = arith.constant dense<0.000000e+00> : vector<5xf32>
    %316 = vector.multi_reduction <add>, %315, %cst_154 [1] : vector<5x5xf32> to vector<5xf32>
    %317 = vector.shape_cast %316 : vector<5xf32> to vector<5x1xf32>
    %318 = tpu.reciprocal %317 {approx = true} : vector<5x1xf32> -> vector<5x1xf32>
    %319 = vector.broadcast %318 : vector<5x1xf32> to vector<5x5xf32>
    %320 = arith.mulf %315, %319 : vector<5x5xf32>
    %cst_155 = arith.constant dense<0.000000e+00> : vector<5x8xf32>
    %321 = tpu.matmul %320, %309, %cst_155 {dimension_numbers = #tpu.dot_dimension_numbers<[1], [0], [0], [1], [0, 0, 1, 1], [], []>} : vector<5x5xf32>, vector<5x8xf32>, vector<5x8xf32> -> vector<5x8xf32>
    %c0_156 = arith.constant 0 : index
    %c8_157 = arith.constant 8 : index
    %322 = vector.load %arg22[%c0_156, %c8_157] : memref<10x32xf32, #tpu.memory_space<vmem>>, vector<5x8xf32>
    tpu.vector_store %arg22[%c0_156, %c8_157], %321 {strides = array<i32>} : memref<10x32xf32, #tpu.memory_space<vmem>>, vector<5x8xf32>,
    %323 = vector.extract_strided_slice %286 {offsets = [0, 16], sizes = [5, 8], strides = [1, 1]} : vector<10x96xf32> to vector<5x8xf32>
    %cst_158 = arith.constant 0.353553385 : f32
    %324 = vector.broadcast %cst_158 : f32 to vector<5x8xf32>
    %325 = arith.mulf %323, %324 : vector<5x8xf32>
    %326 = vector.extract_strided_slice %286 {offsets = [0, 48], sizes = [5, 8], strides = [1, 1]} : vector<10x96xf32> to vector<5x8xf32>
    %327 = vector.extract_strided_slice %286 {offsets = [0, 80], sizes = [5, 8], strides = [1, 1]} : vector<10x96xf32> to vector<5x8xf32>
    "tpu.trace_start"() <{level = 10 : i32, message = "nd,md->nm"}> : () -> ()
    %cst_159 = arith.constant dense<0.000000e+00> : vector<5x5xf32>
    %328 = tpu.matmul %325, %326, %cst_159 {dimension_numbers = #tpu.dot_dimension_numbers<[1], [1], [0], [0], [0, 0, 1, 0], [], []>} : vector<5x8xf32>, vector<5x8xf32>, vector<5x5xf32> -> vector<5x5xf32>
    "tpu.trace_stop"() : () -> ()
    %cst_160 = arith.constant dense<0xFF800000> : vector<5xf32>
    %329 = vector.multi_reduction <maximumf>, %328, %cst_160 [1] : vector<5x5xf32> to vector<5xf32>
    %330 = vector.shape_cast %329 : vector<5xf32> to vector<5x1xf32>
    %331 = vector.broadcast %330 : vector<5x1xf32> to vector<5x5xf32>
    %332 = arith.subf %328, %331 : vector<5x5xf32>
    %333 = math.exp %332 : vector<5x5xf32>
    %cst_161 = arith.constant dense<0.000000e+00> : vector<5xf32>
    %334 = vector.multi_reduction <add>, %333, %cst_161 [1] : vector<5x5xf32> to vector<5xf32>
    %335 = vector.shape_cast %334 : vector<5xf32> to vector<5x1xf32>
    %336 = tpu.reciprocal %335 {approx = true} : vector<5x1xf32> -> vector<5x1xf32>
    %337 = vector.broadcast %336 : vector<5x1xf32> to vector<5x5xf32>
    %338 = arith.mulf %333, %337 : vector<5x5xf32>
    %cst_162 = arith.constant dense<0.000000e+00> : vector<5x8xf32>
    %339 = tpu.matmul %338, %327, %cst_162 {dimension_numbers = #tpu.dot_dimension_numbers<[1], [0], [0], [1], [0, 0, 1, 1], [], []>} : vector<5x5xf32>, vector<5x8xf32>, vector<5x8xf32> -> vector<5x8xf32>
    %c0_163 = arith.constant 0 : index
    %c16_164 = arith.constant 16 : index
    %340 = vector.load %arg22[%c0_163, %c16_164] : memref<10x32xf32, #tpu.memory_space<vmem>>, vector<5x8xf32>
    tpu.vector_store %arg22[%c0_163, %c16_164], %339 {strides = array<i32>} : memref<10x32xf32, #tpu.memory_space<vmem>>, vector<5x8xf32>,
    %341 = vector.extract_strided_slice %286 {offsets = [0, 24], sizes = [5, 8], strides = [1, 1]} : vector<10x96xf32> to vector<5x8xf32>
    %cst_165 = arith.constant 0.353553385 : f32
    %342 = vector.broadcast %cst_165 : f32 to vector<5x8xf32>
    %343 = arith.mulf %341, %342 : vector<5x8xf32>
    %344 = vector.extract_strided_slice %286 {offsets = [0, 56], sizes = [5, 8], strides = [1, 1]} : vector<10x96xf32> to vector<5x8xf32>
    %345 = vector.extract_strided_slice %286 {offsets = [0, 88], sizes = [5, 8], strides = [1, 1]} : vector<10x96xf32> to vector<5x8xf32>
    "tpu.trace_start"() <{level = 10 : i32, message = "nd,md->nm"}> : () -> ()
    %cst_166 = arith.constant dense<0.000000e+00> : vector<5x5xf32>
    %346 = tpu.matmul %343, %344, %cst_166 {dimension_numbers = #tpu.dot_dimension_numbers<[1], [1], [0], [0], [0, 0, 1, 0], [], []>} : vector<5x8xf32>, vector<5x8xf32>, vector<5x5xf32> -> vector<5x5xf32>
    "tpu.trace_stop"() : () -> ()
    %cst_167 = arith.constant dense<0xFF800000> : vector<5xf32>
    %347 = vector.multi_reduction <maximumf>, %346, %cst_167 [1] : vector<5x5xf32> to vector<5xf32>
    %348 = vector.shape_cast %347 : vector<5xf32> to vector<5x1xf32>
    %349 = vector.broadcast %348 : vector<5x1xf32> to vector<5x5xf32>
    %350 = arith.subf %346, %349 : vector<5x5xf32>
    %351 = math.exp %350 : vector<5x5xf32>
    %cst_168 = arith.constant dense<0.000000e+00> : vector<5xf32>
    %352 = vector.multi_reduction <add>, %351, %cst_168 [1] : vector<5x5xf32> to vector<5xf32>
    %353 = vector.shape_cast %352 : vector<5xf32> to vector<5x1xf32>
    %354 = tpu.reciprocal %353 {approx = true} : vector<5x1xf32> -> vector<5x1xf32>
    %355 = vector.broadcast %354 : vector<5x1xf32> to vector<5x5xf32>
    %356 = arith.mulf %351, %355 : vector<5x5xf32>
    %cst_169 = arith.constant dense<0.000000e+00> : vector<5x8xf32>
    %357 = tpu.matmul %356, %345, %cst_169 {dimension_numbers = #tpu.dot_dimension_numbers<[1], [0], [0], [1], [0, 0, 1, 1], [], []>} : vector<5x5xf32>, vector<5x8xf32>, vector<5x8xf32> -> vector<5x8xf32>
    %c0_170 = arith.constant 0 : index
    %c24_171 = arith.constant 24 : index
    %358 = vector.load %arg22[%c0_170, %c24_171] : memref<10x32xf32, #tpu.memory_space<vmem>>, vector<5x8xf32>
    tpu.vector_store %arg22[%c0_170, %c24_171], %357 {strides = array<i32>} : memref<10x32xf32, #tpu.memory_space<vmem>>, vector<5x8xf32>,
    %359 = vector.extract_strided_slice %286 {offsets = [5, 0], sizes = [5, 8], strides = [1, 1]} : vector<10x96xf32> to vector<5x8xf32>
    %cst_172 = arith.constant 0.353553385 : f32
    %360 = vector.broadcast %cst_172 : f32 to vector<5x8xf32>
    %361 = arith.mulf %359, %360 : vector<5x8xf32>
    %362 = vector.extract_strided_slice %286 {offsets = [5, 32], sizes = [5, 8], strides = [1, 1]} : vector<10x96xf32> to vector<5x8xf32>
    %363 = vector.extract_strided_slice %286 {offsets = [5, 64], sizes = [5, 8], strides = [1, 1]} : vector<10x96xf32> to vector<5x8xf32>
    "tpu.trace_start"() <{level = 10 : i32, message = "nd,md->nm"}> : () -> ()
    %cst_173 = arith.constant dense<0.000000e+00> : vector<5x5xf32>
    %364 = tpu.matmul %361, %362, %cst_173 {dimension_numbers = #tpu.dot_dimension_numbers<[1], [1], [0], [0], [0, 0, 1, 0], [], []>} : vector<5x8xf32>, vector<5x8xf32>, vector<5x5xf32> -> vector<5x5xf32>
    "tpu.trace_stop"() : () -> ()
    %cst_174 = arith.constant dense<0xFF800000> : vector<5xf32>
    %365 = vector.multi_reduction <maximumf>, %364, %cst_174 [1] : vector<5x5xf32> to vector<5xf32>
    %366 = vector.shape_cast %365 : vector<5xf32> to vector<5x1xf32>
    %367 = vector.broadcast %366 : vector<5x1xf32> to vector<5x5xf32>
    %368 = arith.subf %364, %367 : vector<5x5xf32>
    %369 = math.exp %368 : vector<5x5xf32>
    %cst_175 = arith.constant dense<0.000000e+00> : vector<5xf32>
    %370 = vector.multi_reduction <add>, %369, %cst_175 [1] : vector<5x5xf32> to vector<5xf32>
    %371 = vector.shape_cast %370 : vector<5xf32> to vector<5x1xf32>
    %372 = tpu.reciprocal %371 {approx = true} : vector<5x1xf32> -> vector<5x1xf32>
    %373 = vector.broadcast %372 : vector<5x1xf32> to vector<5x5xf32>
    %374 = arith.mulf %369, %373 : vector<5x5xf32>
    %cst_176 = arith.constant dense<0.000000e+00> : vector<5x8xf32>
    %375 = tpu.matmul %374, %363, %cst_176 {dimension_numbers = #tpu.dot_dimension_numbers<[1], [0], [0], [1], [0, 0, 1, 1], [], []>} : vector<5x5xf32>, vector<5x8xf32>, vector<5x8xf32> -> vector<5x8xf32>
    %c5_177 = arith.constant 5 : index
    %c0_178 = arith.constant 0 : index
    %376 = vector.load %arg22[%c5_177, %c0_178] : memref<10x32xf32, #tpu.memory_space<vmem>>, vector<5x8xf32>
    tpu.vector_store %arg22[%c5_177, %c0_178], %375 {strides = array<i32>} : memref<10x32xf32, #tpu.memory_space<vmem>>, vector<5x8xf32>,
    %377 = vector.extract_strided_slice %286 {offsets = [5, 8], sizes = [5, 8], strides = [1, 1]} : vector<10x96xf32> to vector<5x8xf32>
    %cst_179 = arith.constant 0.353553385 : f32
    %378 = vector.broadcast %cst_179 : f32 to vector<5x8xf32>
    %379 = arith.mulf %377, %378 : vector<5x8xf32>
    %380 = vector.extract_strided_slice %286 {offsets = [5, 40], sizes = [5, 8], strides = [1, 1]} : vector<10x96xf32> to vector<5x8xf32>
    %381 = vector.extract_strided_slice %286 {offsets = [5, 72], sizes = [5, 8], strides = [1, 1]} : vector<10x96xf32> to vector<5x8xf32>
    "tpu.trace_start"() <{level = 10 : i32, message = "nd,md->nm"}> : () -> ()
    %cst_180 = arith.constant dense<0.000000e+00> : vector<5x5xf32>
    %382 = tpu.matmul %379, %380, %cst_180 {dimension_numbers = #tpu.dot_dimension_numbers<[1], [1], [0], [0], [0, 0, 1, 0], [], []>} : vector<5x8xf32>, vector<5x8xf32>, vector<5x5xf32> -> vector<5x5xf32>
    "tpu.trace_stop"() : () -> ()
    %cst_181 = arith.constant dense<0xFF800000> : vector<5xf32>
    %383 = vector.multi_reduction <maximumf>, %382, %cst_181 [1] : vector<5x5xf32> to vector<5xf32>
    %384 = vector.shape_cast %383 : vector<5xf32> to vector<5x1xf32>
    %385 = vector.broadcast %384 : vector<5x1xf32> to vector<5x5xf32>
    %386 = arith.subf %382, %385 : vector<5x5xf32>
    %387 = math.exp %386 : vector<5x5xf32>
    %cst_182 = arith.constant dense<0.000000e+00> : vector<5xf32>
    %388 = vector.multi_reduction <add>, %387, %cst_182 [1] : vector<5x5xf32> to vector<5xf32>
    %389 = vector.shape_cast %388 : vector<5xf32> to vector<5x1xf32>
    %390 = tpu.reciprocal %389 {approx = true} : vector<5x1xf32> -> vector<5x1xf32>
    %391 = vector.broadcast %390 : vector<5x1xf32> to vector<5x5xf32>
    %392 = arith.mulf %387, %391 : vector<5x5xf32>
    %cst_183 = arith.constant dense<0.000000e+00> : vector<5x8xf32>
    %393 = tpu.matmul %392, %381, %cst_183 {dimension_numbers = #tpu.dot_dimension_numbers<[1], [0], [0], [1], [0, 0, 1, 1], [], []>} : vector<5x5xf32>, vector<5x8xf32>, vector<5x8xf32> -> vector<5x8xf32>
    %c5_184 = arith.constant 5 : index
    %c8_185 = arith.constant 8 : index
    %394 = vector.load %arg22[%c5_184, %c8_185] : memref<10x32xf32, #tpu.memory_space<vmem>>, vector<5x8xf32>
    tpu.vector_store %arg22[%c5_184, %c8_185], %393 {strides = array<i32>} : memref<10x32xf32, #tpu.memory_space<vmem>>, vector<5x8xf32>,
    %395 = vector.extract_strided_slice %286 {offsets = [5, 16], sizes = [5, 8], strides = [1, 1]} : vector<10x96xf32> to vector<5x8xf32>
    %cst_186 = arith.constant 0.353553385 : f32
    %396 = vector.broadcast %cst_186 : f32 to vector<5x8xf32>
    %397 = arith.mulf %395, %396 : vector<5x8xf32>
    %398 = vector.extract_strided_slice %286 {offsets = [5, 48], sizes = [5, 8], strides = [1, 1]} : vector<10x96xf32> to vector<5x8xf32>
    %399 = vector.extract_strided_slice %286 {offsets = [5, 80], sizes = [5, 8], strides = [1, 1]} : vector<10x96xf32> to vector<5x8xf32>
    "tpu.trace_start"() <{level = 10 : i32, message = "nd,md->nm"}> : () -> ()
    %cst_187 = arith.constant dense<0.000000e+00> : vector<5x5xf32>
    %400 = tpu.matmul %397, %398, %cst_187 {dimension_numbers = #tpu.dot_dimension_numbers<[1], [1], [0], [0], [0, 0, 1, 0], [], []>} : vector<5x8xf32>, vector<5x8xf32>, vector<5x5xf32> -> vector<5x5xf32>
    "tpu.trace_stop"() : () -> ()
    %cst_188 = arith.constant dense<0xFF800000> : vector<5xf32>
    %401 = vector.multi_reduction <maximumf>, %400, %cst_188 [1] : vector<5x5xf32> to vector<5xf32>
    %402 = vector.shape_cast %401 : vector<5xf32> to vector<5x1xf32>
    %403 = vector.broadcast %402 : vector<5x1xf32> to vector<5x5xf32>
    %404 = arith.subf %400, %403 : vector<5x5xf32>
    %405 = math.exp %404 : vector<5x5xf32>
    %cst_189 = arith.constant dense<0.000000e+00> : vector<5xf32>
    %406 = vector.multi_reduction <add>, %405, %cst_189 [1] : vector<5x5xf32> to vector<5xf32>
    %407 = vector.shape_cast %406 : vector<5xf32> to vector<5x1xf32>
    %408 = tpu.reciprocal %407 {approx = true} : vector<5x1xf32> -> vector<5x1xf32>
    %409 = vector.broadcast %408 : vector<5x1xf32> to vector<5x5xf32>
    %410 = arith.mulf %405, %409 : vector<5x5xf32>
    %cst_190 = arith.constant dense<0.000000e+00> : vector<5x8xf32>
    %411 = tpu.matmul %410, %399, %cst_190 {dimension_numbers = #tpu.dot_dimension_numbers<[1], [0], [0], [1], [0, 0, 1, 1], [], []>} : vector<5x5xf32>, vector<5x8xf32>, vector<5x8xf32> -> vector<5x8xf32>
    %c5_191 = arith.constant 5 : index
    %c16_192 = arith.constant 16 : index
    %412 = vector.load %arg22[%c5_191, %c16_192] : memref<10x32xf32, #tpu.memory_space<vmem>>, vector<5x8xf32>
    tpu.vector_store %arg22[%c5_191, %c16_192], %411 {strides = array<i32>} : memref<10x32xf32, #tpu.memory_space<vmem>>, vector<5x8xf32>,
    %413 = vector.extract_strided_slice %286 {offsets = [5, 24], sizes = [5, 8], strides = [1, 1]} : vector<10x96xf32> to vector<5x8xf32>
    %cst_193 = arith.constant 0.353553385 : f32
    %414 = vector.broadcast %cst_193 : f32 to vector<5x8xf32>
    %415 = arith.mulf %413, %414 : vector<5x8xf32>
    %416 = vector.extract_strided_slice %286 {offsets = [5, 56], sizes = [5, 8], strides = [1, 1]} : vector<10x96xf32> to vector<5x8xf32>
    %417 = vector.extract_strided_slice %286 {offsets = [5, 88], sizes = [5, 8], strides = [1, 1]} : vector<10x96xf32> to vector<5x8xf32>
    "tpu.trace_start"() <{level = 10 : i32, message = "nd,md->nm"}> : () -> ()
    %cst_194 = arith.constant dense<0.000000e+00> : vector<5x5xf32>
    %418 = tpu.matmul %415, %416, %cst_194 {dimension_numbers = #tpu.dot_dimension_numbers<[1], [1], [0], [0], [0, 0, 1, 0], [], []>} : vector<5x8xf32>, vector<5x8xf32>, vector<5x5xf32> -> vector<5x5xf32>
    "tpu.trace_stop"() : () -> ()
    %cst_195 = arith.constant dense<0xFF800000> : vector<5xf32>
    %419 = vector.multi_reduction <maximumf>, %418, %cst_195 [1] : vector<5x5xf32> to vector<5xf32>
    %420 = vector.shape_cast %419 : vector<5xf32> to vector<5x1xf32>
    %421 = vector.broadcast %420 : vector<5x1xf32> to vector<5x5xf32>
    %422 = arith.subf %418, %421 : vector<5x5xf32>
    %423 = math.exp %422 : vector<5x5xf32>
    %cst_196 = arith.constant dense<0.000000e+00> : vector<5xf32>
    %424 = vector.multi_reduction <add>, %423, %cst_196 [1] : vector<5x5xf32> to vector<5xf32>
    %425 = vector.shape_cast %424 : vector<5xf32> to vector<5x1xf32>
    %426 = tpu.reciprocal %425 {approx = true} : vector<5x1xf32> -> vector<5x1xf32>
    %427 = vector.broadcast %426 : vector<5x1xf32> to vector<5x5xf32>
    %428 = arith.mulf %423, %427 : vector<5x5xf32>
    %cst_197 = arith.constant dense<0.000000e+00> : vector<5x8xf32>
    %429 = tpu.matmul %428, %417, %cst_197 {dimension_numbers = #tpu.dot_dimension_numbers<[1], [0], [0], [1], [0, 0, 1, 1], [], []>} : vector<5x5xf32>, vector<5x8xf32>, vector<5x8xf32> -> vector<5x8xf32>
    %c5_198 = arith.constant 5 : index
    %c24_199 = arith.constant 24 : index
    %430 = vector.load %arg22[%c5_198, %c24_199] : memref<10x32xf32, #tpu.memory_space<vmem>>, vector<5x8xf32>
    tpu.vector_store %arg22[%c5_198, %c24_199], %429 {strides = array<i32>} : memref<10x32xf32, #tpu.memory_space<vmem>>, vector<5x8xf32>,
    %c0_200 = arith.constant 0 : index
    %c0_201 = arith.constant 0 : index
    %431 = vector.load %arg22[%c0_200, %c0_201] : memref<10x32xf32, #tpu.memory_space<vmem>>, vector<10x32xf32>
    %c1_202 = arith.constant 1 : index
    %c0_203 = arith.constant 0 : index
    %c0_204 = arith.constant 0 : index
    %432 = vector.load %arg9[%c1_202, %c0_203, %c0_204] : memref<2x32x32xf32, #tpu.memory_space<vmem>>, vector<1x32x32xf32>
    %433 = vector.shape_cast %432 : vector<1x32x32xf32> to vector<32x32xf32>
    %cst_205 = arith.constant dense<0.000000e+00> : vector<10x32xf32>
    %434 = tpu.matmul %431, %433, %cst_205 {dimension_numbers = #tpu.dot_dimension_numbers<[1], [0], [0], [1], [0, 0, 1, 1], [], []>} : vector<10x32xf32>, vector<32x32xf32>, vector<10x32xf32> -> vector<10x32xf32>
    %c1_206 = arith.constant 1 : index
    %c0_207 = arith.constant 0 : index
    %c0_208 = arith.constant 0 : index
    %435 = vector.load %arg10[%c1_206, %c0_207, %c0_208] : memref<2x1x32xf32, #tpu.memory_space<vmem>>, vector<1x1x32xf32>
    %436 = vector.shape_cast %435 : vector<1x1x32xf32> to vector<1x32xf32>
    %437 = vector.broadcast %436 : vector<1x32xf32> to vector<10x32xf32>
    %438 = arith.addf %434, %437 : vector<10x32xf32>
    %439 = arith.addf %253, %438 : vector<10x32xf32>
    %c1_209 = arith.constant 1 : index
    %c0_210 = arith.constant 0 : index
    %c0_211 = arith.constant 0 : index
    %440 = vector.load %arg11[%c1_209, %c0_210, %c0_211] : memref<2x1x32xf32, #tpu.memory_space<vmem>>, vector<1x1x32xf32>
    %441 = vector.shape_cast %440 : vector<1x1x32xf32> to vector<1x32xf32>
    %c1_212 = arith.constant 1 : index
    %c0_213 = arith.constant 0 : index
    %c0_214 = arith.constant 0 : index
    %442 = vector.load %arg12[%c1_212, %c0_213, %c0_214] : memref<2x1x32xf32, #tpu.memory_space<vmem>>, vector<1x1x32xf32>
    %443 = vector.shape_cast %442 : vector<1x1x32xf32> to vector<1x32xf32>
    %cst_215 = arith.constant dense<0.000000e+00> : vector<10xf32>
    %444 = vector.multi_reduction <add>, %439, %cst_215 [1] : vector<10x32xf32> to vector<10xf32>
    %445 = vector.shape_cast %444 : vector<10xf32> to vector<10x1xf32>
    %cst_216 = arith.constant 3.200000e+01 : f32
    %446 = vector.broadcast %cst_216 : f32 to vector<10x1xf32>
    %447 = arith.divf %445, %446 : vector<10x1xf32>
    %448 = vector.broadcast %447 : vector<10x1xf32> to vector<10x32xf32>
    %449 = arith.subf %439, %448 : vector<10x32xf32>
    %450 = arith.mulf %449, %449 : vector<10x32xf32>
    %cst_217 = arith.constant dense<0.000000e+00> : vector<10xf32>
    %451 = vector.multi_reduction <add>, %450, %cst_217 [1] : vector<10x32xf32> to vector<10xf32>
    %452 = vector.shape_cast %451 : vector<10xf32> to vector<10x1xf32>
    %cst_218 = arith.constant 3.200000e+01 : f32
    %453 = vector.broadcast %cst_218 : f32 to vector<10x1xf32>
    %454 = arith.divf %452, %453 : vector<10x1xf32>
    %455 = vector.broadcast %447 : vector<10x1xf32> to vector<10x32xf32>
    %456 = arith.subf %439, %455 : vector<10x32xf32>
    %cst_219 = arith.constant 9.99999997E-7 : f32
    %457 = vector.broadcast %cst_219 : f32 to vector<10x1xf32>
    %458 = arith.addf %454, %457 : vector<10x1xf32>
    %459 = math.rsqrt %458 : vector<10x1xf32>
    %460 = vector.broadcast %459 : vector<10x1xf32> to vector<10x32xf32>
    %461 = arith.mulf %456, %460 : vector<10x32xf32>
    %462 = vector.broadcast %441 : vector<1x32xf32> to vector<10x32xf32>
    %463 = arith.mulf %461, %462 : vector<10x32xf32>
    %464 = vector.broadcast %443 : vector<1x32xf32> to vector<10x32xf32>
    %465 = arith.addf %463, %464 : vector<10x32xf32>
    %c1_220 = arith.constant 1 : index
    %c0_221 = arith.constant 0 : index
    %c0_222 = arith.constant 0 : index
    %466 = vector.load %arg13[%c1_220, %c0_221, %c0_222] : memref<2x32x128xf32, #tpu.memory_space<vmem>>, vector<1x32x128xf32>
    %467 = vector.shape_cast %466 : vector<1x32x128xf32> to vector<32x128xf32>
    %cst_223 = arith.constant dense<0.000000e+00> : vector<10x128xf32>
    %468 = tpu.matmul %465, %467, %cst_223 {dimension_numbers = #tpu.dot_dimension_numbers<[1], [0], [0], [1], [0, 0, 1, 1], [], []>} : vector<10x32xf32>, vector<32x128xf32>, vector<10x128xf32> -> vector<10x128xf32>
    %c1_224 = arith.constant 1 : index
    %c0_225 = arith.constant 0 : index
    %c0_226 = arith.constant 0 : index
    %469 = vector.load %arg14[%c1_224, %c0_225, %c0_226] : memref<2x1x128xf32, #tpu.memory_space<vmem>>, vector<1x1x128xf32>
    %470 = vector.shape_cast %469 : vector<1x1x128xf32> to vector<1x128xf32>
    %471 = vector.broadcast %470 : vector<1x128xf32> to vector<10x128xf32>
    %472 = arith.addf %468, %471 : vector<10x128xf32>
    %cst_227 = arith.constant 5.000000e-01 : f32
    %473 = vector.broadcast %cst_227 : f32 to vector<10x128xf32>
    %474 = arith.mulf %473, %472 : vector<10x128xf32>
    %cst_228 = arith.constant 0.707106769 : f32
    %475 = vector.broadcast %cst_228 : f32 to vector<10x128xf32>
    %476 = arith.mulf %472, %475 : vector<10x128xf32>
    %477 = math.erf %476 : vector<10x128xf32>
    %cst_229 = arith.constant 1.000000e+00 : f32
    %478 = vector.broadcast %cst_229 : f32 to vector<10x128xf32>
    %479 = arith.addf %478, %477 : vector<10x128xf32>
    %480 = arith.mulf %474, %479 : vector<10x128xf32>
    %c1_230 = arith.constant 1 : index
    %c0_231 = arith.constant 0 : index
    %c0_232 = arith.constant 0 : index
    %481 = vector.load %arg15[%c1_230, %c0_231, %c0_232] : memref<2x128x32xf32, #tpu.memory_space<vmem>>, vector<1x128x32xf32>
    %482 = vector.shape_cast %481 : vector<1x128x32xf32> to vector<128x32xf32>
    %cst_233 = arith.constant dense<0.000000e+00> : vector<10x32xf32>
    %483 = tpu.matmul %480, %482, %cst_233 {dimension_numbers = #tpu.dot_dimension_numbers<[1], [0], [0], [1], [0, 0, 1, 1], [], []>} : vector<10x128xf32>, vector<128x32xf32>, vector<10x32xf32> -> vector<10x32xf32>
    %c1_234 = arith.constant 1 : index
    %c0_235 = arith.constant 0 : index
    %c0_236 = arith.constant 0 : index
    %484 = vector.load %arg16[%c1_234, %c0_235, %c0_236] : memref<2x1x32xf32, #tpu.memory_space<vmem>>, vector<1x1x32xf32>
    %485 = vector.shape_cast %484 : vector<1x1x32xf32> to vector<1x32xf32>
    %486 = vector.broadcast %485 : vector<1x32xf32> to vector<10x32xf32>
    %487 = arith.addf %483, %486 : vector<10x32xf32>
    %488 = arith.addf %439, %487 : vector<10x32xf32>
    %489 = tpu.iota {dimensions = array<i32: 0>} : vector<2x10xi32>
    %490 = tpu.iota {dimensions = array<i32: 1>} : vector<2x10xi32>
    %c5_i32 = arith.constant 5 : i32
    %491 = vector.broadcast %c5_i32 : i32 to vector<2x10xi32>
    %492 = arith.muli %489, %491 : vector<2x10xi32>
    %493 = arith.subi %490, %492 : vector<2x10xi32>
    %c1_i32 = arith.constant 1 : i32
    %494 = vector.broadcast %c1_i32 : i32 to vector<2x10xi32>
    %495 = arith.cmpi sge, %493, %494 : vector<2x10xi32>
    %c5_i32_237 = arith.constant 5 : i32
    %496 = vector.broadcast %c5_i32_237 : i32 to vector<2x10xi32>
    %497 = arith.cmpi slt, %493, %496 : vector<2x10xi32>
    %498 = arith.andi %495, %497 : vector<2x10xi1>
    %cst_238 = arith.constant 2.500000e-01 : f32
    %cst_239 = arith.constant 0.000000e+00 : f32
    %499 = vector.broadcast %cst_238 : f32 to vector<2x10xf32>
    %500 = vector.broadcast %cst_239 : f32 to vector<2x10xf32>
    %501 = arith.select %498, %499, %500 : vector<2x10xi1>, vector<2x10xf32>
    %cst_240 = arith.constant dense<0.000000e+00> : vector<2x32xf32>
    %502 = tpu.matmul %501, %488, %cst_240 {dimension_numbers = #tpu.dot_dimension_numbers<[1], [0], [0], [1], [0, 0, 1, 1], [], []>} : vector<2x10xf32>, vector<10x32xf32>, vector<2x32xf32> -> vector<2x32xf32>
    %c0_241 = arith.constant 0 : index
    %c0_242 = arith.constant 0 : index
    %503 = vector.load %arg17[%c0_241, %c0_242] : memref<1x32xf32, #tpu.memory_space<vmem>>, vector<1x32xf32>
    %c0_243 = arith.constant 0 : index
    %c0_244 = arith.constant 0 : index
    %504 = vector.load %arg18[%c0_243, %c0_244] : memref<1x32xf32, #tpu.memory_space<vmem>>, vector<1x32xf32>
    %cst_245 = arith.constant dense<0.000000e+00> : vector<2xf32>
    %505 = vector.multi_reduction <add>, %502, %cst_245 [1] : vector<2x32xf32> to vector<2xf32>
    %506 = vector.shape_cast %505 : vector<2xf32> to vector<2x1xf32>
    %cst_246 = arith.constant 3.200000e+01 : f32
    %507 = vector.broadcast %cst_246 : f32 to vector<2x1xf32>
    %508 = arith.divf %506, %507 : vector<2x1xf32>
    %509 = vector.broadcast %508 : vector<2x1xf32> to vector<2x32xf32>
    %510 = arith.subf %502, %509 : vector<2x32xf32>
    %511 = arith.mulf %510, %510 : vector<2x32xf32>
    %cst_247 = arith.constant dense<0.000000e+00> : vector<2xf32>
    %512 = vector.multi_reduction <add>, %511, %cst_247 [1] : vector<2x32xf32> to vector<2xf32>
    %513 = vector.shape_cast %512 : vector<2xf32> to vector<2x1xf32>
    %cst_248 = arith.constant 3.200000e+01 : f32
    %514 = vector.broadcast %cst_248 : f32 to vector<2x1xf32>
    %515 = arith.divf %513, %514 : vector<2x1xf32>
    %516 = vector.broadcast %508 : vector<2x1xf32> to vector<2x32xf32>
    %517 = arith.subf %502, %516 : vector<2x32xf32>
    %cst_249 = arith.constant 9.99999997E-7 : f32
    %518 = vector.broadcast %cst_249 : f32 to vector<2x1xf32>
    %519 = arith.addf %515, %518 : vector<2x1xf32>
    %520 = math.rsqrt %519 : vector<2x1xf32>
    %521 = vector.broadcast %520 : vector<2x1xf32> to vector<2x32xf32>
    %522 = arith.mulf %517, %521 : vector<2x32xf32>
    %523 = vector.broadcast %503 : vector<1x32xf32> to vector<2x32xf32>
    %524 = arith.mulf %522, %523 : vector<2x32xf32>
    %525 = vector.broadcast %504 : vector<1x32xf32> to vector<2x32xf32>
    %526 = arith.addf %524, %525 : vector<2x32xf32>
    %c0_250 = arith.constant 0 : index
    %c0_251 = arith.constant 0 : index
    %527 = vector.load %arg19[%c0_250, %c0_251] : memref<32x4xf32, #tpu.memory_space<vmem>>, vector<32x4xf32>
    %cst_252 = arith.constant dense<0.000000e+00> : vector<2x4xf32>
    %528 = tpu.matmul %526, %527, %cst_252 {dimension_numbers = #tpu.dot_dimension_numbers<[1], [0], [0], [1], [0, 0, 1, 1], [], []>} : vector<2x32xf32>, vector<32x4xf32>, vector<2x4xf32> -> vector<2x4xf32>
    %c0_253 = arith.constant 0 : index
    %c0_254 = arith.constant 0 : index
    %529 = vector.load %arg20[%c0_253, %c0_254] : memref<1x4xf32, #tpu.memory_space<vmem>>, vector<1x4xf32>
    %530 = vector.broadcast %529 : vector<1x4xf32> to vector<2x4xf32>
    %531 = arith.addf %528, %530 : vector<2x4xf32>
    %c0_255 = arith.constant 0 : index
    %c0_256 = arith.constant 0 : index
    %532 = vector.load %arg21[%c0_255, %c0_256] : memref<2x4xf32, #tpu.memory_space<vmem>>, vector<2x4xf32>
    tpu.vector_store %arg21[%c0_255, %c0_256], %531 {strides = array<i32>} : memref<2x4xf32, #tpu.memory_space<vmem>>, vector<2x4xf32>,
    return
  }
}

</mosaic_0001>

<llo_original>
// kernel: vit_forward.1
$region0: #{vit_forward.1}
  #allocation0 [shape = 'u32[]', space=smem, size = 0x4, offset = 0x4, fixed_abs, tag = 'smem constant byte address 0x4 - core index']
  #allocation1 [shape = 'u32[72,128]{1,0:T(1,128)}', space=vmem, size = 0x9000, scoped, tag = 'internal scratch']
  #allocation2 [shape = 'f32[10,32]{1,0:T(8,128)}', space=vmem, size = 0x2000, scoped, tag = 'scratch operand']
  %s0 = inlined_call_operand.vmem [shape: f32[8,192], index: 0, kind: input, shape index: {}]
  %s1 = inlined_call_operand.vmem [shape: f32[192,32], index: 1, kind: input, shape index: {}]
  %s2 = inlined_call_operand.vmem [shape: f32[1,32], index: 2, kind: input, shape index: {}]
  %s3 = inlined_call_operand.vmem [shape: f32[1,32], index: 3, kind: input, shape index: {}]
  %s4 = inlined_call_operand.vmem [shape: f32[5,32], index: 4, kind: input, shape index: {}]
  %s5 = inlined_call_operand.vmem [shape: f32[2,1,32], index: 5, kind: input, shape index: {}]
  %s6 = inlined_call_operand.vmem [shape: f32[2,1,32], index: 6, kind: input, shape index: {}]
  %s7 = inlined_call_operand.vmem [shape: f32[2,32,96], index: 7, kind: input, shape index: {}]
  %s8 = inlined_call_operand.vmem [shape: f32[2,1,96], index: 8, kind: input, shape index: {}]
  %s9 = inlined_call_operand.vmem [shape: f32[2,32,32], index: 9, kind: input, shape index: {}]
  %s10 = inlined_call_operand.vmem [shape: f32[2,1,32], index: 10, kind: input, shape index: {}]
  %s11 = inlined_call_operand.vmem [shape: f32[2,1,32], index: 11, kind: input, shape index: {}]
  %s12 = inlined_call_operand.vmem [shape: f32[2,1,32], index: 12, kind: input, shape index: {}]
  %s13 = inlined_call_operand.vmem [shape: f32[2,32,128], index: 13, kind: input, shape index: {}]
  %s14 = inlined_call_operand.vmem [shape: f32[2,1,128], index: 14, kind: input, shape index: {}]
  %s15 = inlined_call_operand.vmem [shape: f32[2,128,32], index: 15, kind: input, shape index: {}]
  %s16 = inlined_call_operand.vmem [shape: f32[2,1,32], index: 16, kind: input, shape index: {}]
  %s17 = inlined_call_operand.vmem [shape: f32[1,32], index: 17, kind: input, shape index: {}]
  %s18 = inlined_call_operand.vmem [shape: f32[1,32], index: 18, kind: input, shape index: {}]
  %s19 = inlined_call_operand.vmem [shape: f32[32,4], index: 19, kind: input, shape index: {}]
  %s20 = inlined_call_operand.vmem [shape: f32[1,4], index: 20, kind: input, shape index: {}]
  %s21 = inlined_call_operand.hbm [shape: f32[2,4], index: 21, kind: output, shape index: {}]
  %s22 = sld [smem:[#allocation0]]
  $region94: #{vit_forward.1} parent=0
    _
  %s24 = ssub.s32 1, %s22
  %s25 = scalar_select 0, %s24, %s22
  $region1: #{vit_forward.1} parent=0
    #allocation3 [shape = 'u8[1024]{0}', space=vmem, size = 0x400, scoped, tag = 'output window, operand 0, single buffered']
    #allocation4 [shape = 's32[1]{0}', space=sflag, size = 0x4, scoped, tag = 'scoped memory for vit_forward.1']
    %26 = vsyncpa [#allocation4], 0
    // Predicated region
    $region2: #{vit_forward.1} parent=1 // pred_check
      _
    $region3: #{vit_forward.1} parent=1 // pred_check_branch
      %28 = sbr.rel (0) target = $region5
    $region4: #{vit_forward.1} parent=1 // pred_region
      _
    $region5: #{vit_forward.1} parent=1 // pred_fallthru
      _
    // Predicated region
    $region6: #{vit_forward.1} parent=1 // pred_check
      _
    $region7: #{vit_forward.1} parent=1 // pred_check_branch
      %30 = sbr.rel (0) target = $region9
    $region8: #{vit_forward.1} parent=1 // pred_region
      _
    $region9: #{vit_forward.1} parent=1 // pred_fallthru
      _
    // Predicated region
    $region10: #{vit_forward.1} parent=1 // pred_check
      _
    $region11: #{vit_forward.1} parent=1 // pred_check_branch
      %32 = sbr.rel (0) target = $region13
    $region12: #{vit_forward.1} parent=1 // pred_region
      _
    $region13: #{vit_forward.1} parent=1 // pred_fallthru
      _
    // Predicated region
    $region14: #{vit_forward.1} parent=1 // pred_check
      _
    $region15: #{vit_forward.1} parent=1 // pred_check_branch
      %34 = sbr.rel (0) target = $region17
    $region16: #{vit_forward.1} parent=1 // pred_region
      _
    $region17: #{vit_forward.1} parent=1 // pred_fallthru
      _
    // Predicated region
    $region18: #{vit_forward.1} parent=1 // pred_check
      _
    $region19: #{vit_forward.1} parent=1 // pred_check_branch
      %36 = sbr.rel (0) target = $region21
    $region20: #{vit_forward.1} parent=1 // pred_region
      _
    $region21: #{vit_forward.1} parent=1 // pred_fallthru
      _
    // Predicated region
    $region22: #{vit_forward.1} parent=1 // pred_check
      _
    $region23: #{vit_forward.1} parent=1 // pred_check_branch
      %38 = sbr.rel (0) target = $region25
    $region24: #{vit_forward.1} parent=1 // pred_region
      _
    $region25: #{vit_forward.1} parent=1 // pred_fallthru
      _
    // Predicated region
    $region26: #{vit_forward.1} parent=1 // pred_check
      _
    $region27: #{vit_forward.1} parent=1 // pred_check_branch
      %40 = sbr.rel (0) target = $region29
    $region28: #{vit_forward.1} parent=1 // pred_region
      _
    $region29: #{vit_forward.1} parent=1 // pred_fallthru
      _
    // Predicated region
    $region30: #{vit_forward.1} parent=1 // pred_check
      _
    $region31: #{vit_forward.1} parent=1 // pred_check_branch
      %42 = sbr.rel (0) target = $region33
    $region32: #{vit_forward.1} parent=1 // pred_region
      _
    $region33: #{vit_forward.1} parent=1 // pred_fallthru
      _
    // Predicated region
    $region34: #{vit_forward.1} parent=1 // pred_check
      _
    $region35: #{vit_forward.1} parent=1 // pred_check_branch
      %44 = sbr.rel (0) target = $region37
    $region36: #{vit_forward.1} parent=1 // pred_region
      _
    $region37: #{vit_forward.1} parent=1 // pred_fallthru
      _
    // Predicated region
    $region38: #{vit_forward.1} parent=1 // pred_check
      _
    $region39: #{vit_forward.1} parent=1 // pred_check_branch
      %46 = sbr.rel (0) target = $region41
    $region40: #{vit_forward.1} parent=1 // pred_region
      _
    $region41: #{vit_forward.1} parent=1 // pred_fallthru
      _
    // Predicated region
    $region42: #{vit_forward.1} parent=1 // pred_check
      _
    $region43: #{vit_forward.1} parent=1 // pred_check_branch
      %48 = sbr.rel (0) target = $region45
    $region44: #{vit_forward.1} parent=1 // pred_region
      _
    $region45: #{vit_forward.1} parent=1 // pred_fallthru
      _
    // Predicated region
    $region46: #{vit_forward.1} parent=1 // pred_check
      _
    $region47: #{vit_forward.1} parent=1 // pred_check_branch
      %50 = sbr.rel (0) target = $region49
    $region48: #{vit_forward.1} parent=1 // pred_region
      _
    $region49: #{vit_forward.1} parent=1 // pred_fallthru
      _
    // Predicated region
    $region50: #{vit_forward.1} parent=1 // pred_check
      _
    $region51: #{vit_forward.1} parent=1 // pred_check_branch
      %52 = sbr.rel (0) target = $region53
    $region52: #{vit_forward.1} parent=1 // pred_region
      _
    $region53: #{vit_forward.1} parent=1 // pred_fallthru
      _
    // Predicated region
    $region54: #{vit_forward.1} parent=1 // pred_check
      _
    $region55: #{vit_forward.1} parent=1 // pred_check_branch
      %54 = sbr.rel (0) target = $region57
    $region56: #{vit_forward.1} parent=1 // pred_region
      _
    $region57: #{vit_forward.1} parent=1 // pred_fallthru
      _
    // Predicated region
    $region58: #{vit_forward.1} parent=1 // pred_check
      _
    $region59: #{vit_forward.1} parent=1 // pred_check_branch
      %56 = sbr.rel (0) target = $region61
    $region60: #{vit_forward.1} parent=1 // pred_region
      _
    $region61: #{vit_forward.1} parent=1 // pred_fallthru
      _
    // Predicated region
    $region62: #{vit_forward.1} parent=1 // pred_check
      _
    $region63: #{vit_forward.1} parent=1 // pred_check_branch
      %58 = sbr.rel (0) target = $region65
    $region64: #{vit_forward.1} parent=1 // pred_region
      _
    $region65: #{vit_forward.1} parent=1 // pred_fallthru
      _
    // Predicated region
    $region66: #{vit_forward.1} parent=1 // pred_check
      _
    $region67: #{vit_forward.1} parent=1 // pred_check_branch
      %60 = sbr.rel (0) target = $region69
    $region68: #{vit_forward.1} parent=1 // pred_region
      _
    $region69: #{vit_forward.1} parent=1 // pred_fallthru
      _
    // Predicated region
    $region70: #{vit_forward.1} parent=1 // pred_check
      _
    $region71: #{vit_forward.1} parent=1 // pred_check_branch
      %62 = sbr.rel (0) target = $region73
    $region72: #{vit_forward.1} parent=1 // pred_region
      _
    $region73: #{vit_forward.1} parent=1 // pred_fallthru
      _
    // Predicated region
    $region74: #{vit_forward.1} parent=1 // pred_check
      _
    $region75: #{vit_forward.1} parent=1 // pred_check_branch
      %64 = sbr.rel (0) target = $region77
    $region76: #{vit_forward.1} parent=1 // pred_region
      _
    $region77: #{vit_forward.1} parent=1 // pred_fallthru
      _
    // Predicated region
    $region78: #{vit_forward.1} parent=1 // pred_check
      _
    $region79: #{vit_forward.1} parent=1 // pred_check_branch
      %66 = sbr.rel (0) target = $region81
    $region80: #{vit_forward.1} parent=1 // pred_region
      _
    $region81: #{vit_forward.1} parent=1 // pred_fallthru
      _
    // Predicated region
    $region82: #{vit_forward.1} parent=1 // pred_check
      _
    $region83: #{vit_forward.1} parent=1 // pred_check_branch
      %68 = sbr.rel (0) target = $region85
    $region84: #{vit_forward.1} parent=1 // pred_region
      _
    $region85: #{vit_forward.1} parent=1 // pred_fallthru
      _
    %v69 = vld [vmem:[%s0] sm:$0xff]
    %v70 = vld [vmem:[%s0 + $0x8] sm:$0xff]
    %v71 = vld [vmem:[%s1] sm:$0xff]
    %v72 = vld [vmem:[%s1 + $0x8] sm:$0xff]
    %v73 = vld [vmem:[%s1 + $0x10] sm:$0xff]
    %v74 = vld [vmem:[%s1 + $0x18] sm:$0xff]
    %v75 = vld [vmem:[%s1 + $0x20] sm:$0xff]
    %v76 = vld [vmem:[%s1 + $0x28] sm:$0xff]
    %v77 = vld [vmem:[%s1 + $0x30] sm:$0xff]
    %v78 = vld [vmem:[%s1 + $0x38] sm:$0xff]
    %v79 = vld [vmem:[%s1 + $0x40] sm:$0xff]
    %v80 = vld [vmem:[%s1 + $0x48] sm:$0xff]
    %v81 = vld [vmem:[%s1 + $0x50] sm:$0xff]
    %v82 = vld [vmem:[%s1 + $0x58] sm:$0xff]
    %v83 = vld [vmem:[%s1 + $0x60] sm:$0xff]
    %v84 = vld [vmem:[%s1 + $0x68] sm:$0xff]
    %v85 = vld [vmem:[%s1 + $0x70] sm:$0xff]
    %v86 = vld [vmem:[%s1 + $0x78] sm:$0xff]
    %v87 = vld [vmem:[%s1 + $0x80] sm:$0xff]
    %v88 = vld [vmem:[%s1 + $0x88] sm:$0xff]
    %v89 = vld [vmem:[%s1 + $0x90] sm:$0xff]
    %v90 = vld [vmem:[%s1 + $0x98] sm:$0xff]
    %v91 = vld [vmem:[%s1 + $0xa0] sm:$0xff]
    %v92 = vld [vmem:[%s1 + $0xa8] sm:$0xff]
    %v93 = vld [vmem:[%s1 + $0xb0] sm:$0xff]
    %v94 = vld [vmem:[%s1 + $0xb8] sm:$0xff]
    %v95 = vld [vmem:[%s2] sm:$0x1]
    %v97 = vperm.slane %v95, 0
    %vm99 = vcmask 523264
    %v101 = vsel %vm99, %v70, 0
    %103 = vmatpush.msra.mxu0 %v86
    %104 = vmatpush.msra.mxu0 %v85
    %105 = vmatpush.msra.mxu0 %v84
    %106 = vmatpush.msra.mxu0 %v83
    %107 = vmatpush.msra.mxu0 %v82
    %108 = vmatpush.msra.mxu0 %v81
    %109 = vmatpush.msra.mxu0 %v80
    %110 = vmatpush.msra.mxu0 %v79
    %111 = vmatpush.msra.mxu0 %v78
    %112 = vmatpush.msra.mxu0 %v77
    %113 = vmatpush.msra.mxu0 %v76
    %114 = vmatpush.msra.mxu0 %v75
    %115 = vmatpush.msra.mxu0 %v74
    %116 = vmatpush.msra.mxu0 %v73
    %117 = vmatpush.msra.mxu0 %v72
    %118 = vmatpush.msra.mxu0 %v71
    %119 = vmatmul.f32.gmra.mxu0 %v69
    %v120 = vpop.f32.mrf.mxu0
    %v121 = vadd.f32 %v97, %v120
    %122 = vdwg.mxu0
    %123 = vmatpush.msra.mxu0 0.0
    %124 = vmatpush.msra.mxu0 0.0
    %125 = vmatpush.msra.mxu0 0.0
    %126 = vmatpush.msra.mxu0 0.0
    %127 = vmatpush.msra.mxu0 0.0
    %128 = vmatpush.msra.mxu0 0.0
    %129 = vmatpush.msra.mxu0 0.0
    %130 = vmatpush.msra.mxu0 0.0
    %131 = vmatpush.msra.mxu0 %v94
    %132 = vmatpush.msra.mxu0 %v93
    %133 = vmatpush.msra.mxu0 %v92
    %134 = vmatpush.msra.mxu0 %v91
    %135 = vmatpush.msra.mxu0 %v90
    %136 = vmatpush.msra.mxu0 %v89
    %137 = vmatpush.msra.mxu0 %v88
    %138 = vmatpush.msra.mxu0 %v87
    %139 = vmatmul.f32.gmra.mxu0 %v101
    %v140 = vpop.f32.mrf.mxu0
    %v141 = vadd.f32 %v121, %v140
    %142 = vdwg.mxu0
    %v143 = vld [vmem:[%s3] sm:$0x1]
    %v144 = vld [vmem:[%s4] sm:$0x1]
    %v145 = vadd.f32 %v143, %v144
    %v146 = vld [vmem:[%s4 + $0x1] sm:$0xf]
    %vm147 = vcmask 253952
    %148 = vst.msk [vmem:[#allocation2] sm:$0x1] %vm147, %v145
    %v149 = vadd.f32 %v141, %v146
    %vm150 = vcmask 257024
    %151 = vst.msk [vmem:[#allocation2 + $0x1] sm:$0xf] %vm150, %v149
    %152 = vst.msk [vmem:[#allocation2 + $0x5] sm:$0x1] %vm147, %v145
    %v154 = vrot.slane %v146, 4
    %v156 = vadd.f32 %v141, %v154
    %vm157 = vcmask 261124
    %158 = vst.msk [vmem:[#allocation2 + $0x2] sm:$0xf0] %vm157, %v156
    %v159 = vld [vmem:[#allocation2] sm:$0xff]
    %v160 = vld [vmem:[#allocation2 + $0x8] sm:$0x3]
    %v161 = vld [vmem:[%s5] sm:$0x1]
    %v162 = vld [vmem:[%s6] sm:$0x1]
    %vm163 = vcmask 261120
    %v164 = vsel %vm163, %v159, 0.0
    %165 = vadd.xlane.f32.xlu0 %v164
    %v166 = vpop.xlane.xlu0 %165
    %vm167 = vcmask 254976
    %v168 = vsel %vm167, %v160, 0.0
    %169 = vadd.xlane.f32.xlu0 %v168
    %v170 = vpop.xlane.xlu0 %169
    %v171 = vrcp.pop 32.0
    %v172 = vmul.f32 32.0, %v171
    %v173 = vsub.f32 1.0, %v172
    %v174 = vmul.f32 %v171, %v173
    %v175 = vadd.f32 %v171, %v174
    %vm176 = vweird.f32 %v171
    %v177 = vsel %vm176, %v171, %v175
    %v178 = vmul.f32 %v166, %v177
    %v179 = vmul.f32 %v170, %v177
    %v180 = vsub.f32 %v159, %v178
    %v181 = vsub.f32 %v160, %v179
    %v182 = vmul.f32 %v180, %v180
    %v183 = vmul.f32 %v181, %v181
    %v184 = vsel %vm163, %v182, 0.0
    %185 = vadd.xlane.f32.xlu0 %v184
    %v186 = vpop.xlane.xlu0 %185
    %v187 = vsel %vm167, %v183, 0.0
    %188 = vadd.xlane.f32.xlu0 %v187
    %v189 = vpop.xlane.xlu0 %188
    %v190 = vmul.f32 %v186, %v177
    %v191 = vmul.f32 %v189, %v177
    %v192 = vadd.f32 %v190, 1e-06
    %v193 = vadd.f32 %v191, 1e-06
    %v194 = vrsqrt.pop %v192
    %v195 = vmul.f32 %v194, %v192
    %v196 = vmul.f32 %v195, %v194
    %v197 = vmul.f32 0.5, %v196
    %v198 = vsub.f32 1.5, %v197
    %v199 = vmul.f32 %v194, %v198
    %vm200 = vweird.f32 %v192
    %vm201 = vweird.f32 %v194
    %vm202 = vmor %vm200, %vm201
    %v203 = vsel %vm202, %v194, %v199
    %v204 = vrsqrt.pop %v193
    %v205 = vmul.f32 %v204, %v193
    %v206 = vmul.f32 %v205, %v204
    %v207 = vmul.f32 0.5, %v206
    %v208 = vsub.f32 1.5, %v207
    %v209 = vmul.f32 %v204, %v208
    %vm210 = vweird.f32 %v193
    %vm211 = vweird.f32 %v204
    %vm212 = vmor %vm210, %vm211
    %v213 = vsel %vm212, %v204, %v209
    %v214 = vmul.f32 %v180, %v203
    %v215 = vmul.f32 %v181, %v213
    %v217 = vperm.slane %v161, 0
    %v219 = vmul.f32 %v214, %v217
    %v220 = vmul.f32 %v215, %v217
    %v222 = vperm.slane %v162, 0
    %v224 = vadd.f32 %v219, %v222
    %v225 = vadd.f32 %v220, %v222
    %v226 = vld [vmem:[%s7] sm:$0xff]
    %v227 = vld [vmem:[%s7 + $0x8] sm:$0xff]
    %v228 = vld [vmem:[%s7 + $0x10] sm:$0xff]
    %v229 = vld [vmem:[%s7 + $0x18] sm:$0xff]
    %v230 = vld [vmem:[%s8] sm:$0x1]
    %v232 = vperm.slane %v230, 0
    %v235 = vsel %vm163, %v224, 0
    %v238 = vsel %vm163, %v225, 0
    %240 = vmatpush.msra.mxu0 0.0
    %241 = vmatpush.msra.mxu0 0.0
    %242 = vmatpush.msra.mxu0 0.0
    %243 = vmatpush.msra.mxu0 0.0
    %244 = vmatpush.msra.mxu0 0.0
    %245 = vmatpush.msra.mxu0 0.0
    %246 = vmatpush.msra.mxu0 0.0
    %247 = vmatpush.msra.mxu0 0.0
    %248 = vmatpush.msra.mxu0 0.0
    %249 = vmatpush.msra.mxu0 0.0
    %250 = vmatpush.msra.mxu0 0.0
    %251 = vmatpush.msra.mxu0 0.0
    %252 = vmatpush.msra.mxu0 %v229
    %253 = vmatpush.msra.mxu0 %v228
    %254 = vmatpush.msra.mxu0 %v227
    %255 = vmatpush.msra.mxu0 %v226
    %256 = vmatmul.f32.gmra.mxu0 %v235
    %v257 = vpop.f32.mrf.mxu0
    %v258 = vadd.f32 %v232, %v257
    %259 = vmatmul.f32.gmra.mxu0 %v238
    %v260 = vpop.f32.mrf.mxu0
    %v261 = vadd.f32 %v232, %v260
    %262 = vdwg.mxu0
    %v263 = vmul.f32 %v258, 0.35355338
    %265 = vrot.lane.b32.xlu0 %v258, 96
    %v266 = vpop.permute.xlu0 %265
    %vm267 = vcmask 64512
    %v269 = vsel %vm267, %v263, 0
    %v271 = vsel %vm267, %v266, 0
    %273 = vmatpush.xpose.msra.mxu0 0.0
    %274 = vmatpush.xpose.msra.mxu0 0.0
    %275 = vmatpush.xpose.msra.mxu0 0.0
    %276 = vmatpush.xpose.msra.mxu0 0.0
    %277 = vmatpush.xpose.msra.mxu0 0.0
    %278 = vmatpush.xpose.msra.mxu0 0.0
    %279 = vmatpush.xpose.msra.mxu0 0.0
    %280 = vmatpush.xpose.msra.mxu0 0.0
    %281 = vmatpush.xpose.msra.mxu0 0.0
    %282 = vmatpush.xpose.msra.mxu0 0.0
    %283 = vmatpush.xpose.msra.mxu0 0.0
    %284 = vmatpush.xpose.msra.mxu0 0.0
    %285 = vmatpush.xpose.msra.mxu0 0.0
    %286 = vmatpush.xpose.msra.mxu0 0.0
    %287 = vmatpush.xpose.msra.mxu0 0.0
    %288 = vmatpush.xpose.msra.mxu0 %v271
    %289 = vmatmul.f32.gmra.mxu0 %v269
    %v290 = vpop.f32.mrf.mxu0
    %v291 = vadd.f32 0.0, %v290
    %292 = vdwg.mxu0
    %vm293 = vcmask 36864
    %v294 = vsel %vm293, %v291, -inf
    %295 = vmax.xlane.f32.xlu0 %v294
    %v296 = vpop.xlane.xlu0 %295
    %v297 = vsub.f32 %v291, %v296
    %v298 = vmul.f32 %v297, 1.442695
    %v299 = vpow.pop %v298
    %v300 = vsel %vm293, %v299, 0.0
    %301 = vadd.xlane.f32.xlu0 %v300
    %v302 = vpop.xlane.xlu0 %301
    %v303 = vrcp.pop %v302
    %v304 = vmul.f32 %v299, %v303
    %305 = vrot.lane.b32.xlu0 %v258, 64
    %v306 = vpop.permute.xlu0 %305
    %vm307 = vcmask 39936
    %v309 = vsel %vm307, %v304, 0
    %vm311 = vcmask 1044480
    %v312 = vsel %vm311, %v306, 0
    %314 = vmatpush.msra.mxu0 0.0
    %315 = vmatpush.msra.mxu0 0.0
    %316 = vmatpush.msra.mxu0 0.0
    %317 = vmatpush.msra.mxu0 0.0
    %318 = vmatpush.msra.mxu0 0.0
    %319 = vmatpush.msra.mxu0 0.0
    %320 = vmatpush.msra.mxu0 0.0
    %321 = vmatpush.msra.mxu0 0.0
    %322 = vmatpush.msra.mxu0 0.0
    %323 = vmatpush.msra.mxu0 0.0
    %324 = vmatpush.msra.mxu0 0.0
    %325 = vmatpush.msra.mxu0 0.0
    %326 = vmatpush.msra.mxu0 0.0
    %327 = vmatpush.msra.mxu0 0.0
    %328 = vmatpush.msra.mxu0 0.0
    %329 = vmatpush.msra.mxu0 %v312
    %330 = vmatmul.f32.gmra.mxu0 %v309
    %v331 = vpop.f32.mrf.mxu0
    %v332 = vadd.f32 0.0, %v331
    %333 = vdwg.mxu0
    %vm334 = vcmask 61440
    %335 = vst.msk [vmem:[#allocation2] sm:$0x1f] %vm334, %v332
    %336 = vrot.lane.b32.xlu0 %v263, 120
    %v337 = vpop.permute.xlu0 %336
    %338 = vrot.lane.b32.xlu0 %v258, 88
    %v339 = vpop.permute.xlu0 %338
    %v340 = vsel %vm267, %v337, 0
    %v342 = vsel %vm267, %v339, 0
    %344 = vmatpush.xpose.msra.mxu0 0.0
    %345 = vmatpush.xpose.msra.mxu0 0.0
    %346 = vmatpush.xpose.msra.mxu0 0.0
    %347 = vmatpush.xpose.msra.mxu0 0.0
    %348 = vmatpush.xpose.msra.mxu0 0.0
    %349 = vmatpush.xpose.msra.mxu0 0.0
    %350 = vmatpush.xpose.msra.mxu0 0.0
    %351 = vmatpush.xpose.msra.mxu0 0.0
    %352 = vmatpush.xpose.msra.mxu0 0.0
    %353 = vmatpush.xpose.msra.mxu0 0.0
    %354 = vmatpush.xpose.msra.mxu0 0.0
    %355 = vmatpush.xpose.msra.mxu0 0.0
    %356 = vmatpush.xpose.msra.mxu0 0.0
    %357 = vmatpush.xpose.msra.mxu0 0.0
    %358 = vmatpush.xpose.msra.mxu0 0.0
    %359 = vmatpush.xpose.msra.mxu0 %v342
    %360 = vmatmul.f32.gmra.mxu0 %v340
    %v361 = vpop.f32.mrf.mxu0
    %v362 = vadd.f32 0.0, %v361
    %363 = vdwg.mxu0
    %v364 = vsel %vm293, %v362, -inf
    %365 = vmax.xlane.f32.xlu0 %v364
    %v366 = vpop.xlane.xlu0 %365
    %v367 = vsub.f32 %v362, %v366
    %v368 = vmul.f32 %v367, 1.442695
    %v369 = vpow.pop %v368
    %v370 = vsel %vm293, %v369, 0.0
    %371 = vadd.xlane.f32.xlu0 %v370
    %v372 = vpop.xlane.xlu0 %371
    %v373 = vrcp.pop %v372
    %v374 = vmul.f32 %v369, %v373
    %375 = vrot.lane.b32.xlu0 %v258, 56
    %v376 = vpop.permute.xlu0 %375
    %v378 = vsel %vm307, %v374, 0
    %v380 = vsel %vm311, %v376, 0
    %382 = vmatpush.msra.mxu0 0.0
    %383 = vmatpush.msra.mxu0 0.0
    %384 = vmatpush.msra.mxu0 0.0
    %385 = vmatpush.msra.mxu0 0.0
    %386 = vmatpush.msra.mxu0 0.0
    %387 = vmatpush.msra.mxu0 0.0
    %388 = vmatpush.msra.mxu0 0.0
    %389 = vmatpush.msra.mxu0 0.0
    %390 = vmatpush.msra.mxu0 0.0
    %391 = vmatpush.msra.mxu0 0.0
    %392 = vmatpush.msra.mxu0 0.0
    %393 = vmatpush.msra.mxu0 0.0
    %394 = vmatpush.msra.mxu0 0.0
    %395 = vmatpush.msra.mxu0 0.0
    %396 = vmatpush.msra.mxu0 0.0
    %397 = vmatpush.msra.mxu0 %v380
    %398 = vmatmul.f32.gmra.mxu0 %v378
    %v399 = vpop.f32.mrf.mxu0
    %v400 = vadd.f32 0.0, %v399
    %401 = vdwg.mxu0
    %403 = vrot.lane.b32.xlu0 %v400, 8
    %v404 = vpop.permute.xlu0 %403
    %vm406 = vcmask 127040
    %407 = vst.msk [vmem:[#allocation2] sm:$0x1f] %vm406, %v404
    %408 = vrot.lane.b32.xlu0 %v263, 112
    %v409 = vpop.permute.xlu0 %408
    %410 = vrot.lane.b32.xlu0 %v258, 80
    %v411 = vpop.permute.xlu0 %410
    %v412 = vsel %vm267, %v409, 0
    %v414 = vsel %vm267, %v411, 0
    %416 = vmatpush.xpose.msra.mxu0 0.0
    %417 = vmatpush.xpose.msra.mxu0 0.0
    %418 = vmatpush.xpose.msra.mxu0 0.0
    %419 = vmatpush.xpose.msra.mxu0 0.0
    %420 = vmatpush.xpose.msra.mxu0 0.0
    %421 = vmatpush.xpose.msra.mxu0 0.0
    %422 = vmatpush.xpose.msra.mxu0 0.0
    %423 = vmatpush.xpose.msra.mxu0 0.0
    %424 = vmatpush.xpose.msra.mxu0 0.0
    %425 = vmatpush.xpose.msra.mxu0 0.0
    %426 = vmatpush.xpose.msra.mxu0 0.0
    %427 = vmatpush.xpose.msra.mxu0 0.0
    %428 = vmatpush.xpose.msra.mxu0 0.0
    %429 = vmatpush.xpose.msra.mxu0 0.0
    %430 = vmatpush.xpose.msra.mxu0 0.0
    %431 = vmatpush.xpose.msra.mxu0 %v414
    %432 = vmatmul.f32.gmra.mxu0 %v412
    %v433 = vpop.f32.mrf.mxu0
    %v434 = vadd.f32 0.0, %v433
    %435 = vdwg.mxu0
    %v436 = vsel %vm293, %v434, -inf
    %437 = vmax.xlane.f32.xlu0 %v436
    %v438 = vpop.xlane.xlu0 %437
    %v439 = vsub.f32 %v434, %v438
    %v440 = vmul.f32 %v439, 1.442695
    %v441 = vpow.pop %v440
    %v442 = vsel %vm293, %v441, 0.0
    %443 = vadd.xlane.f32.xlu0 %v442
    %v444 = vpop.xlane.xlu0 %443
    %v445 = vrcp.pop %v444
    %v446 = vmul.f32 %v441, %v445
    %447 = vrot.lane.b32.xlu0 %v258, 48
    %v448 = vpop.permute.xlu0 %447
    %v450 = vsel %vm307, %v446, 0
    %v452 = vsel %vm311, %v448, 0
    %454 = vmatpush.msra.mxu0 0.0
    %455 = vmatpush.msra.mxu0 0.0
    %456 = vmatpush.msra.mxu0 0.0
    %457 = vmatpush.msra.mxu0 0.0
    %458 = vmatpush.msra.mxu0 0.0
    %459 = vmatpush.msra.mxu0 0.0
    %460 = vmatpush.msra.mxu0 0.0
    %461 = vmatpush.msra.mxu0 0.0
    %462 = vmatpush.msra.mxu0 0.0
    %463 = vmatpush.msra.mxu0 0.0
    %464 = vmatpush.msra.mxu0 0.0
    %465 = vmatpush.msra.mxu0 0.0
    %466 = vmatpush.msra.mxu0 0.0
    %467 = vmatpush.msra.mxu0 0.0
    %468 = vmatpush.msra.mxu0 0.0
    %469 = vmatpush.msra.mxu0 %v452
    %470 = vmatmul.f32.gmra.mxu0 %v450
    %v471 = vpop.f32.mrf.mxu0
    %v472 = vadd.f32 0.0, %v471
    %473 = vdwg.mxu0
    %475 = vrot.lane.b32.xlu0 %v472, 16
    %v476 = vpop.permute.xlu0 %475
    %vm478 = vcmask 192640
    %479 = vst.msk [vmem:[#allocation2] sm:$0x1f] %vm478, %v476
    %480 = vrot.lane.b32.xlu0 %v263, 104
    %v481 = vpop.permute.xlu0 %480
    %482 = vrot.lane.b32.xlu0 %v258, 72
    %v483 = vpop.permute.xlu0 %482
    %v484 = vsel %vm267, %v481, 0
    %v486 = vsel %vm267, %v483, 0
    %488 = vmatpush.xpose.msra.mxu0 0.0
    %489 = vmatpush.xpose.msra.mxu0 0.0
    %490 = vmatpush.xpose.msra.mxu0 0.0
    %491 = vmatpush.xpose.msra.mxu0 0.0
    %492 = vmatpush.xpose.msra.mxu0 0.0
    %493 = vmatpush.xpose.msra.mxu0 0.0
    %494 = vmatpush.xpose.msra.mxu0 0.0
    %495 = vmatpush.xpose.msra.mxu0 0.0
    %496 = vmatpush.xpose.msra.mxu0 0.0
    %497 = vmatpush.xpose.msra.mxu0 0.0
    %498 = vmatpush.xpose.msra.mxu0 0.0
    %499 = vmatpush.xpose.msra.mxu0 0.0
    %500 = vmatpush.xpose.msra.mxu0 0.0
    %501 = vmatpush.xpose.msra.mxu0 0.0
    %502 = vmatpush.xpose.msra.mxu0 0.0
    %503 = vmatpush.xpose.msra.mxu0 %v486
    %504 = vmatmul.f32.gmra.mxu0 %v484
    %v505 = vpop.f32.mrf.mxu0
    %v506 = vadd.f32 0.0, %v505
    %507 = vdwg.mxu0
    %v508 = vsel %vm293, %v506, -inf
    %509 = vmax.xlane.f32.xlu0 %v508
    %v510 = vpop.xlane.xlu0 %509
    %v511 = vsub.f32 %v506, %v510
    %v512 = vmul.f32 %v511, 1.442695
    %v513 = vpow.pop %v512
    %v514 = vsel %vm293, %v513, 0.0
    %515 = vadd.xlane.f32.xlu0 %v514
    %v516 = vpop.xlane.xlu0 %515
    %v517 = vrcp.pop %v516
    %v518 = vmul.f32 %v513, %v517
    %519 = vrot.lane.b32.xlu0 %v258, 40
    %v520 = vpop.permute.xlu0 %519
    %v522 = vsel %vm307, %v518, 0
    %v524 = vsel %vm311, %v520, 0
    %526 = vmatpush.msra.mxu0 0.0
    %527 = vmatpush.msra.mxu0 0.0
    %528 = vmatpush.msra.mxu0 0.0
    %529 = vmatpush.msra.mxu0 0.0
    %530 = vmatpush.msra.mxu0 0.0
    %531 = vmatpush.msra.mxu0 0.0
    %532 = vmatpush.msra.mxu0 0.0
    %533 = vmatpush.msra.mxu0 0.0
    %534 = vmatpush.msra.mxu0 0.0
    %535 = vmatpush.msra.mxu0 0.0
    %536 = vmatpush.msra.mxu0 0.0
    %537 = vmatpush.msra.mxu0 0.0
    %538 = vmatpush.msra.mxu0 0.0
    %539 = vmatpush.msra.mxu0 0.0
    %540 = vmatpush.msra.mxu0 0.0
    %541 = vmatpush.msra.mxu0 %v524
    %542 = vmatmul.f32.gmra.mxu0 %v522
    %v543 = vpop.f32.mrf.mxu0
    %v544 = vadd.f32 0.0, %v543
    %545 = vdwg.mxu0
    %547 = vrot.lane.b32.xlu0 %v544, 24
    %v548 = vpop.permute.xlu0 %547
    %vm550 = vcmask 258240
    %551 = vst.msk [vmem:[#allocation2] sm:$0x1f] %vm550, %v548
    %v552 = vmul.f32 %v261, 0.35355338
    %vm554 = vcmask 1042432
    %v555 = vrot.slane %v263, 5
    %v556 = vrot.slane %v552, 5
    %v557 = vsel %vm554, %v555, %v556
    %v559 = vrot.slane %v258, 5
    %v560 = vrot.slane %v261, 5
    %v561 = vsel %vm554, %v559, %v560
    %562 = vrot.lane.b32.xlu0 %v561, 96
    %v563 = vpop.permute.xlu0 %562
    %v564 = vsel %vm267, %v557, 0
    %v566 = vsel %vm267, %v563, 0
    %568 = vmatpush.xpose.msra.mxu0 0.0
    %569 = vmatpush.xpose.msra.mxu0 0.0
    %570 = vmatpush.xpose.msra.mxu0 0.0
    %571 = vmatpush.xpose.msra.mxu0 0.0
    %572 = vmatpush.xpose.msra.mxu0 0.0
    %573 = vmatpush.xpose.msra.mxu0 0.0
    %574 = vmatpush.xpose.msra.mxu0 0.0
    %575 = vmatpush.xpose.msra.mxu0 0.0
    %576 = vmatpush.xpose.msra.mxu0 0.0
    %577 = vmatpush.xpose.msra.mxu0 0.0
    %578 = vmatpush.xpose.msra.mxu0 0.0
    %579 = vmatpush.xpose.msra.mxu0 0.0
    %580 = vmatpush.xpose.msra.mxu0 0.0
    %581 = vmatpush.xpose.msra.mxu0 0.0
    %582 = vmatpush.xpose.msra.mxu0 0.0
    %583 = vmatpush.xpose.msra.mxu0 %v566
    %584 = vmatmul.f32.gmra.mxu0 %v564
    %v585 = vpop.f32.mrf.mxu0
    %v586 = vadd.f32 0.0, %v585
    %587 = vdwg.mxu0
    %v588 = vsel %vm293, %v586, -inf
    %589 = vmax.xlane.f32.xlu0 %v588
    %v590 = vpop.xlane.xlu0 %589
    %v591 = vsub.f32 %v586, %v590
    %v592 = vmul.f32 %v591, 1.442695
    %v593 = vpow.pop %v592
    %v594 = vsel %vm293, %v593, 0.0
    %595 = vadd.xlane.f32.xlu0 %v594
    %v596 = vpop.xlane.xlu0 %595
    %v597 = vrcp.pop %v596
    %v598 = vmul.f32 %v593, %v597
    %599 = vrot.lane.b32.xlu0 %v561, 64
    %v600 = vpop.permute.xlu0 %599
    %v602 = vsel %vm307, %v598, 0
    %v604 = vsel %vm311, %v600, 0
    %606 = vmatpush.msra.mxu0 0.0
    %607 = vmatpush.msra.mxu0 0.0
    %608 = vmatpush.msra.mxu0 0.0
    %609 = vmatpush.msra.mxu0 0.0
    %610 = vmatpush.msra.mxu0 0.0
    %611 = vmatpush.msra.mxu0 0.0
    %612 = vmatpush.msra.mxu0 0.0
    %613 = vmatpush.msra.mxu0 0.0
    %614 = vmatpush.msra.mxu0 0.0
    %615 = vmatpush.msra.mxu0 0.0
    %616 = vmatpush.msra.mxu0 0.0
    %617 = vmatpush.msra.mxu0 0.0
    %618 = vmatpush.msra.mxu0 0.0
    %619 = vmatpush.msra.mxu0 0.0
    %620 = vmatpush.msra.mxu0 0.0
    %621 = vmatpush.msra.mxu0 %v604
    %622 = vmatmul.f32.gmra.mxu0 %v602
    %v623 = vpop.f32.mrf.mxu0
    %v624 = vadd.f32 0.0, %v623
    %625 = vdwg.mxu0
    %626 = vst.msk [vmem:[#allocation2 + $0x5] sm:$0x1f] %vm334, %v624
    %627 = vrot.lane.b32.xlu0 %v557, 120
    %v628 = vpop.permute.xlu0 %627
    %629 = vrot.lane.b32.xlu0 %v561, 88
    %v630 = vpop.permute.xlu0 %629
    %v631 = vsel %vm267, %v628, 0
    %v633 = vsel %vm267, %v630, 0
    %635 = vmatpush.xpose.msra.mxu0 0.0
    %636 = vmatpush.xpose.msra.mxu0 0.0
    %637 = vmatpush.xpose.msra.mxu0 0.0
    %638 = vmatpush.xpose.msra.mxu0 0.0
    %639 = vmatpush.xpose.msra.mxu0 0.0
    %640 = vmatpush.xpose.msra.mxu0 0.0
    %641 = vmatpush.xpose.msra.mxu0 0.0
    %642 = vmatpush.xpose.msra.mxu0 0.0
    %643 = vmatpush.xpose.msra.mxu0 0.0
    %644 = vmatpush.xpose.msra.mxu0 0.0
    %645 = vmatpush.xpose.msra.mxu0 0.0
    %646 = vmatpush.xpose.msra.mxu0 0.0
    %647 = vmatpush.xpose.msra.mxu0 0.0
    %648 = vmatpush.xpose.msra.mxu0 0.0
    %649 = vmatpush.xpose.msra.mxu0 0.0
    %650 = vmatpush.xpose.msra.mxu0 %v633
    %651 = vmatmul.f32.gmra.mxu0 %v631
    %v652 = vpop.f32.mrf.mxu0
    %v653 = vadd.f32 0.0, %v652
    %654 = vdwg.mxu0
    %v655 = vsel %vm293, %v653, -inf
    %656 = vmax.xlane.f32.xlu0 %v655
    %v657 = vpop.xlane.xlu0 %656
    %v658 = vsub.f32 %v653, %v657
    %v659 = vmul.f32 %v658, 1.442695
    %v660 = vpow.pop %v659
    %v661 = vsel %vm293, %v660, 0.0
    %662 = vadd.xlane.f32.xlu0 %v661
    %v663 = vpop.xlane.xlu0 %662
    %v664 = vrcp.pop %v663
    %v665 = vmul.f32 %v660, %v664
    %666 = vrot.lane.b32.xlu0 %v561, 56
    %v667 = vpop.permute.xlu0 %666
    %v669 = vsel %vm307, %v665, 0
    %v671 = vsel %vm311, %v667, 0
    %673 = vmatpush.msra.mxu0 0.0
    %674 = vmatpush.msra.mxu0 0.0
    %675 = vmatpush.msra.mxu0 0.0
    %676 = vmatpush.msra.mxu0 0.0
    %677 = vmatpush.msra.mxu0 0.0
    %678 = vmatpush.msra.mxu0 0.0
    %679 = vmatpush.msra.mxu0 0.0
    %680 = vmatpush.msra.mxu0 0.0
    %681 = vmatpush.msra.mxu0 0.0
    %682 = vmatpush.msra.mxu0 0.0
    %683 = vmatpush.msra.mxu0 0.0
    %684 = vmatpush.msra.mxu0 0.0
    %685 = vmatpush.msra.mxu0 0.0
    %686 = vmatpush.msra.mxu0 0.0
    %687 = vmatpush.msra.mxu0 0.0
    %688 = vmatpush.msra.mxu0 %v671
    %689 = vmatmul.f32.gmra.mxu0 %v669
    %v690 = vpop.f32.mrf.mxu0
    %v691 = vadd.f32 0.0, %v690
    %692 = vdwg.mxu0
    %694 = vrot.lane.b32.xlu0 %v691, 8
    %v695 = vpop.permute.xlu0 %694
    %697 = vst.msk [vmem:[#allocation2 + $0x5] sm:$0x1f] %vm406, %v695
    %698 = vrot.lane.b32.xlu0 %v557, 112
    %v699 = vpop.permute.xlu0 %698
    %700 = vrot.lane.b32.xlu0 %v561, 80
    %v701 = vpop.permute.xlu0 %700
    %v702 = vsel %vm267, %v699, 0
    %v704 = vsel %vm267, %v701, 0
    %706 = vmatpush.xpose.msra.mxu0 0.0
    %707 = vmatpush.xpose.msra.mxu0 0.0
    %708 = vmatpush.xpose.msra.mxu0 0.0
    %709 = vmatpush.xpose.msra.mxu0 0.0
    %710 = vmatpush.xpose.msra.mxu0 0.0
    %711 = vmatpush.xpose.msra.mxu0 0.0
    %712 = vmatpush.xpose.msra.mxu0 0.0
    %713 = vmatpush.xpose.msra.mxu0 0.0
    %714 = vmatpush.xpose.msra.mxu0 0.0
    %715 = vmatpush.xpose.msra.mxu0 0.0
    %716 = vmatpush.xpose.msra.mxu0 0.0
    %717 = vmatpush.xpose.msra.mxu0 0.0
    %718 = vmatpush.xpose.msra.mxu0 0.0
    %719 = vmatpush.xpose.msra.mxu0 0.0
    %720 = vmatpush.xpose.msra.mxu0 0.0
    %721 = vmatpush.xpose.msra.mxu0 %v704
    %722 = vmatmul.f32.gmra.mxu0 %v702
    %v723 = vpop.f32.mrf.mxu0
    %v724 = vadd.f32 0.0, %v723
    %725 = vdwg.mxu0
    %v726 = vsel %vm293, %v724, -inf
    %727 = vmax.xlane.f32.xlu0 %v726
    %v728 = vpop.xlane.xlu0 %727
    %v729 = vsub.f32 %v724, %v728
    %v730 = vmul.f32 %v729, 1.442695
    %v731 = vpow.pop %v730
    %v732 = vsel %vm293, %v731, 0.0
    %733 = vadd.xlane.f32.xlu0 %v732
    %v734 = vpop.xlane.xlu0 %733
    %v735 = vrcp.pop %v734
    %v736 = vmul.f32 %v731, %v735
    %737 = vrot.lane.b32.xlu0 %v561, 48
    %v738 = vpop.permute.xlu0 %737
    %v740 = vsel %vm307, %v736, 0
    %v742 = vsel %vm311, %v738, 0
    %744 = vmatpush.msra.mxu0 0.0
    %745 = vmatpush.msra.mxu0 0.0
    %746 = vmatpush.msra.mxu0 0.0
    %747 = vmatpush.msra.mxu0 0.0
    %748 = vmatpush.msra.mxu0 0.0
    %749 = vmatpush.msra.mxu0 0.0
    %750 = vmatpush.msra.mxu0 0.0
    %751 = vmatpush.msra.mxu0 0.0
    %752 = vmatpush.msra.mxu0 0.0
    %753 = vmatpush.msra.mxu0 0.0
    %754 = vmatpush.msra.mxu0 0.0
    %755 = vmatpush.msra.mxu0 0.0
    %756 = vmatpush.msra.mxu0 0.0
    %757 = vmatpush.msra.mxu0 0.0
    %758 = vmatpush.msra.mxu0 0.0
    %759 = vmatpush.msra.mxu0 %v742
    %760 = vmatmul.f32.gmra.mxu0 %v740
    %v761 = vpop.f32.mrf.mxu0
    %v762 = vadd.f32 0.0, %v761
    %763 = vdwg.mxu0
    %765 = vrot.lane.b32.xlu0 %v762, 16
    %v766 = vpop.permute.xlu0 %765
    %768 = vst.msk [vmem:[#allocation2 + $0x5] sm:$0x1f] %vm478, %v766
    %769 = vrot.lane.b32.xlu0 %v557, 104
    %v770 = vpop.permute.xlu0 %769
    %771 = vrot.lane.b32.xlu0 %v561, 72
    %v772 = vpop.permute.xlu0 %771
    %v773 = vsel %vm267, %v770, 0
    %v775 = vsel %vm267, %v772, 0
    %777 = vmatpush.xpose.msra.mxu0 0.0
    %778 = vmatpush.xpose.msra.mxu0 0.0
    %779 = vmatpush.xpose.msra.mxu0 0.0
    %780 = vmatpush.xpose.msra.mxu0 0.0
    %781 = vmatpush.xpose.msra.mxu0 0.0
    %782 = vmatpush.xpose.msra.mxu0 0.0
    %783 = vmatpush.xpose.msra.mxu0 0.0
    %784 = vmatpush.xpose.msra.mxu0 0.0
    %785 = vmatpush.xpose.msra.mxu0 0.0
    %786 = vmatpush.xpose.msra.mxu0 0.0
    %787 = vmatpush.xpose.msra.mxu0 0.0
    %788 = vmatpush.xpose.msra.mxu0 0.0
    %789 = vmatpush.xpose.msra.mxu0 0.0
    %790 = vmatpush.xpose.msra.mxu0 0.0
    %791 = vmatpush.xpose.msra.mxu0 0.0
    %792 = vmatpush.xpose.msra.mxu0 %v775
    %793 = vmatmul.f32.gmra.mxu0 %v773
    %v794 = vpop.f32.mrf.mxu0
    %v795 = vadd.f32 0.0, %v794
    %796 = vdwg.mxu0
    %v797 = vsel %vm293, %v795, -inf
    %798 = vmax.xlane.f32.xlu0 %v797
    %v799 = vpop.xlane.xlu0 %798
    %v800 = vsub.f32 %v795, %v799
    %v801 = vmul.f32 %v800, 1.442695
    %v802 = vpow.pop %v801
    %v803 = vsel %vm293, %v802, 0.0
    %804 = vadd.xlane.f32.xlu0 %v803
    %v805 = vpop.xlane.xlu0 %804
    %v806 = vrcp.pop %v805
    %v807 = vmul.f32 %v802, %v806
    %808 = vrot.lane.b32.xlu0 %v561, 40
    %v809 = vpop.permute.xlu0 %808
    %v811 = vsel %vm307, %v807, 0
    %v813 = vsel %vm311, %v809, 0
    %815 = vmatpush.msra.mxu0 0.0
    %816 = vmatpush.msra.mxu0 0.0
    %817 = vmatpush.msra.mxu0 0.0
    %818 = vmatpush.msra.mxu0 0.0
    %819 = vmatpush.msra.mxu0 0.0
    %820 = vmatpush.msra.mxu0 0.0
    %821 = vmatpush.msra.mxu0 0.0
    %822 = vmatpush.msra.mxu0 0.0
    %823 = vmatpush.msra.mxu0 0.0
    %824 = vmatpush.msra.mxu0 0.0
    %825 = vmatpush.msra.mxu0 0.0
    %826 = vmatpush.msra.mxu0 0.0
    %827 = vmatpush.msra.mxu0 0.0
    %828 = vmatpush.msra.mxu0 0.0
    %829 = vmatpush.msra.mxu0 0.0
    %830 = vmatpush.msra.mxu0 %v813
    %831 = vmatmul.f32.gmra.mxu0 %v811
    %v832 = vpop.f32.mrf.mxu0
    %v833 = vadd.f32 0.0, %v832
    %834 = vdwg.mxu0
    %836 = vrot.lane.b32.xlu0 %v833, 24
    %v837 = vpop.permute.xlu0 %836
    %839 = vst.msk [vmem:[#allocation2 + $0x5] sm:$0x1f] %vm550, %v837
    %v840 = vld [vmem:[#allocation2] sm:$0xff]
    %v841 = vld [vmem:[#allocation2 + $0x8] sm:$0x3]
    %v842 = vld [vmem:[%s9] sm:$0xff]
    %v843 = vld [vmem:[%s9 + $0x8] sm:$0xff]
    %v844 = vld [vmem:[%s9 + $0x10] sm:$0xff]
    %v845 = vld [vmem:[%s9 + $0x18] sm:$0xff]
    %v846 = vld [vmem:[%s10] sm:$0x1]
    %v848 = vperm.slane %v846, 0
    %v851 = vsel %vm163, %v840, 0
    %v854 = vsel %vm163, %v841, 0
    %856 = vmatpush.msra.mxu0 0.0
    %857 = vmatpush.msra.mxu0 0.0
    %858 = vmatpush.msra.mxu0 0.0
    %859 = vmatpush.msra.mxu0 0.0
    %860 = vmatpush.msra.mxu0 0.0
    %861 = vmatpush.msra.mxu0 0.0
    %862 = vmatpush.msra.mxu0 0.0
    %863 = vmatpush.msra.mxu0 0.0
    %864 = vmatpush.msra.mxu0 0.0
    %865 = vmatpush.msra.mxu0 0.0
    %866 = vmatpush.msra.mxu0 0.0
    %867 = vmatpush.msra.mxu0 0.0
    %868 = vmatpush.msra.mxu0 %v845
    %869 = vmatpush.msra.mxu0 %v844
    %870 = vmatpush.msra.mxu0 %v843
    %871 = vmatpush.msra.mxu0 %v842
    %872 = vmatmul.f32.gmra.mxu0 %v851
    %v873 = vpop.f32.mrf.mxu0
    %v874 = vadd.f32 %v848, %v873
    %875 = vmatmul.f32.gmra.mxu0 %v854
    %v876 = vpop.f32.mrf.mxu0
    %v877 = vadd.f32 %v848, %v876
    %878 = vdwg.mxu0
    %v879 = vadd.f32 %v159, %v874
    %v880 = vadd.f32 %v160, %v877
    %v881 = vld [vmem:[%s11] sm:$0x1]
    %v882 = vld [vmem:[%s12] sm:$0x1]
    %v883 = vsel %vm163, %v879, 0.0
    %884 = vadd.xlane.f32.xlu0 %v883
    %v885 = vpop.xlane.xlu0 %884
    %v886 = vsel %vm167, %v880, 0.0
    %887 = vadd.xlane.f32.xlu0 %v886
    %v888 = vpop.xlane.xlu0 %887
    %v889 = vmul.f32 %v885, %v177
    %v890 = vmul.f32 %v888, %v177
    %v891 = vsub.f32 %v879, %v889
    %v892 = vsub.f32 %v880, %v890
    %v893 = vmul.f32 %v891, %v891
    %v894 = vmul.f32 %v892, %v892
    %v895 = vsel %vm163, %v893, 0.0
    %896 = vadd.xlane.f32.xlu0 %v895
    %v897 = vpop.xlane.xlu0 %896
    %v898 = vsel %vm167, %v894, 0.0
    %899 = vadd.xlane.f32.xlu0 %v898
    %v900 = vpop.xlane.xlu0 %899
    %v901 = vmul.f32 %v897, %v177
    %v902 = vmul.f32 %v900, %v177
    %v903 = vadd.f32 %v901, 1e-06
    %v904 = vadd.f32 %v902, 1e-06
    %v905 = vrsqrt.pop %v903
    %v906 = vmul.f32 %v905, %v903
    %v907 = vmul.f32 %v906, %v905
    %v908 = vmul.f32 0.5, %v907
    %v909 = vsub.f32 1.5, %v908
    %v910 = vmul.f32 %v905, %v909
    %vm911 = vweird.f32 %v903
    %vm912 = vweird.f32 %v905
    %vm913 = vmor %vm911, %vm912
    %v914 = vsel %vm913, %v905, %v910
    %v915 = vrsqrt.pop %v904
    %v916 = vmul.f32 %v915, %v904
    %v917 = vmul.f32 %v916, %v915
    %v918 = vmul.f32 0.5, %v917
    %v919 = vsub.f32 1.5, %v918
    %v920 = vmul.f32 %v915, %v919
    %vm921 = vweird.f32 %v904
    %vm922 = vweird.f32 %v915
    %vm923 = vmor %vm921, %vm922
    %v924 = vsel %vm923, %v915, %v920
    %v925 = vmul.f32 %v891, %v914
    %v926 = vmul.f32 %v892, %v924
    %v928 = vperm.slane %v881, 0
    %v930 = vmul.f32 %v925, %v928
    %v931 = vmul.f32 %v926, %v928
    %v933 = vperm.slane %v882, 0
    %v935 = vadd.f32 %v930, %v933
    %v936 = vadd.f32 %v931, %v933
    %v937 = vld [vmem:[%s13] sm:$0xff]
    %v938 = vld [vmem:[%s13 + $0x8] sm:$0xff]
    %v939 = vld [vmem:[%s13 + $0x10] sm:$0xff]
    %v940 = vld [vmem:[%s13 + $0x18] sm:$0xff]
    %v941 = vld [vmem:[%s14] sm:$0x1]
    %v943 = vperm.slane %v941, 0
    %v946 = vsel %vm163, %v935, 0
    %v949 = vsel %vm163, %v936, 0
    %951 = vmatpush.msra.mxu0 0.0
    %952 = vmatpush.msra.mxu0 0.0
    %953 = vmatpush.msra.mxu0 0.0
    %954 = vmatpush.msra.mxu0 0.0
    %955 = vmatpush.msra.mxu0 0.0
    %956 = vmatpush.msra.mxu0 0.0
    %957 = vmatpush.msra.mxu0 0.0
    %958 = vmatpush.msra.mxu0 0.0
    %959 = vmatpush.msra.mxu0 0.0
    %960 = vmatpush.msra.mxu0 0.0
    %961 = vmatpush.msra.mxu0 0.0
    %962 = vmatpush.msra.mxu0 0.0
    %963 = vmatpush.msra.mxu0 %v940
    %964 = vmatpush.msra.mxu0 %v939
    %965 = vmatpush.msra.mxu0 %v938
    %966 = vmatpush.msra.mxu0 %v937
    %967 = vmatmul.f32.gmra.mxu0 %v946
    %v968 = vpop.f32.mrf.mxu0
    %v969 = vadd.f32 %v943, %v968
    %970 = vmatmul.f32.gmra.mxu0 %v949
    %v971 = vpop.f32.mrf.mxu0
    %v972 = vadd.f32 %v943, %v971
    %973 = vdwg.mxu0
    %v974 = vmul.f32 %v969, 0.5
    %v975 = vmul.f32 %v972, 0.5
    %v976 = vmul.f32 %v969, 0.70710677
    %v977 = vmul.f32 %v972, 0.70710677
    %v978 = vmul.f32 %v976, %v976
    %v979 = vmin.f32 16.0, %v978
    %v980 = vmul.f32 %v979, 2.1237322e-06
    %v981 = vadd.f32 %v980, 0.00028619796
    %v982 = vmul.f32 %v979, %v981
    %v983 = vadd.f32 %v982, 0.0036580483
    %v984 = vmul.f32 %v979, %v983
    %v985 = vadd.f32 %v984, 0.05243302
    %v986 = vmul.f32 %v979, %v985
    %v987 = vadd.f32 %v986, 0.18741608
    %v988 = vmul.f32 %v979, %v987
    %v989 = vadd.f32 %v988, 1.1283791
    %v990 = vmul.f32 %v976, %v989
    %v991 = vmul.f32 %v979, 3.8918573e-05
    %v992 = vadd.f32 %v991, 0.001143296
    %v993 = vmul.f32 %v979, %v992
    %v994 = vadd.f32 %v993, 0.014752088
    %v995 = vmul.f32 %v979, %v994
    %v996 = vadd.f32 %v995, 0.112945676
    %v997 = vmul.f32 %v979, %v996
    %v998 = vadd.f32 %v997, 0.4994258
    %v999 = vmul.f32 %v979, %v998
    %v1000 = vadd.f32 %v999, 1.0
    %v1001 = vrcp.pop %v1000
    %v1002 = vmul.f32 %v1000, %v1001
    %v1003 = vsub.f32 1.0, %v1002
    %v1004 = vmul.f32 %v1001, %v1003
    %v1005 = vadd.f32 %v1001, %v1004
    %vm1006 = vweird.f32 %v1000
    %vm1007 = vweird.f32 %v1001
    %vm1008 = vmor %vm1006, %vm1007
    %v1009 = vsel %vm1008, %v1001, %v1005
    %v1010 = vand.u32 2147483647, %v1000
    %vm1011 = vcmp.eq.f32.partialorder %v1010, 8.507059e+37
    %v1012 = vand.u32 %v1000, 2147483648
    %v1013 = vor.u32 1.1754944e-38, %v1012
    %v1014 = vsel %vm1011, %v1013, %v1009
    %v1015 = vmul.f32 %v990, %v1014
    %v1016 = vmin.f32 %v1015, 1.0
    %v1017 = vmax.f32 %v1016, -1.0
    %v1018 = vmul.f32 %v977, %v977
    %v1019 = vmin.f32 16.0, %v1018
    %v1020 = vmul.f32 %v1019, 2.1237322e-06
    %v1021 = vadd.f32 %v1020, 0.00028619796
    %v1022 = vmul.f32 %v1019, %v1021
    %v1023 = vadd.f32 %v1022, 0.0036580483
    %v1024 = vmul.f32 %v1019, %v1023
    %v1025 = vadd.f32 %v1024, 0.05243302
    %v1026 = vmul.f32 %v1019, %v1025
    %v1027 = vadd.f32 %v1026, 0.18741608
    %v1028 = vmul.f32 %v1019, %v1027
    %v1029 = vadd.f32 %v1028, 1.1283791
    %v1030 = vmul.f32 %v977, %v1029
    %v1031 = vmul.f32 %v1019, 3.8918573e-05
    %v1032 = vadd.f32 %v1031, 0.001143296
    %v1033 = vmul.f32 %v1019, %v1032
    %v1034 = vadd.f32 %v1033, 0.014752088
    %v1035 = vmul.f32 %v1019, %v1034
    %v1036 = vadd.f32 %v1035, 0.112945676
    %v1037 = vmul.f32 %v1019, %v1036
    %v1038 = vadd.f32 %v1037, 0.4994258
    %v1039 = vmul.f32 %v1019, %v1038
    %v1040 = vadd.f32 %v1039, 1.0
    %v1041 = vrcp.pop %v1040
    %v1042 = vmul.f32 %v1040, %v1041
    %v1043 = vsub.f32 1.0, %v1042
    %v1044 = vmul.f32 %v1041, %v1043
    %v1045 = vadd.f32 %v1041, %v1044
    %vm1046 = vweird.f32 %v1040
    %vm1047 = vweird.f32 %v1041
    %vm1048 = vmor %vm1046, %vm1047
    %v1049 = vsel %vm1048, %v1041, %v1045
    %v1050 = vand.u32 2147483647, %v1040
    %vm1051 = vcmp.eq.f32.partialorder %v1050, 8.507059e+37
    %v1052 = vand.u32 %v1040, 2147483648
    %v1053 = vor.u32 1.1754944e-38, %v1052
    %v1054 = vsel %vm1051, %v1053, %v1049
    %v1055 = vmul.f32 %v1030, %v1054
    %v1056 = vmin.f32 %v1055, 1.0
    %v1057 = vmax.f32 %v1056, -1.0
    %v1058 = vadd.f32 %v1017, 1.0
    %v1059 = vadd.f32 %v1057, 1.0
    %v1060 = vmul.f32 %v974, %v1058
    %v1061 = vmul.f32 %v975, %v1059
    %v1062 = vld [vmem:[%s15] sm:$0xff]
    %v1063 = vld [vmem:[%s15 + $0x8] sm:$0xff]
    %v1064 = vld [vmem:[%s15 + $0x10] sm:$0xff]
    %v1065 = vld [vmem:[%s15 + $0x18] sm:$0xff]
    %v1066 = vld [vmem:[%s15 + $0x20] sm:$0xff]
    %v1067 = vld [vmem:[%s15 + $0x28] sm:$0xff]
    %v1068 = vld [vmem:[%s15 + $0x30] sm:$0xff]
    %v1069 = vld [vmem:[%s15 + $0x38] sm:$0xff]
    %v1070 = vld [vmem:[%s15 + $0x40] sm:$0xff]
    %v1071 = vld [vmem:[%s15 + $0x48] sm:$0xff]
    %v1072 = vld [vmem:[%s15 + $0x50] sm:$0xff]
    %v1073 = vld [vmem:[%s15 + $0x58] sm:$0xff]
    %v1074 = vld [vmem:[%s15 + $0x60] sm:$0xff]
    %v1075 = vld [vmem:[%s15 + $0x68] sm:$0xff]
    %v1076 = vld [vmem:[%s15 + $0x70] sm:$0xff]
    %v1077 = vld [vmem:[%s15 + $0x78] sm:$0xff]
    %v1078 = vld [vmem:[%s16] sm:$0x1]
    %v1080 = vperm.slane %v1078, 0
    %1082 = vmatpush.msra.mxu0 %v1077
    %1083 = vmatpush.msra.mxu0 %v1076
    %1084 = vmatpush.msra.mxu0 %v1075
    %1085 = vmatpush.msra.mxu0 %v1074
    %1086 = vmatpush.msra.mxu0 %v1073
    %1087 = vmatpush.msra.mxu0 %v1072
    %1088 = vmatpush.msra.mxu0 %v1071
    %1089 = vmatpush.msra.mxu0 %v1070
    %1090 = vmatpush.msra.mxu0 %v1069
    %1091 = vmatpush.msra.mxu0 %v1068
    %1092 = vmatpush.msra.mxu0 %v1067
    %1093 = vmatpush.msra.mxu0 %v1066
    %1094 = vmatpush.msra.mxu0 %v1065
    %1095 = vmatpush.msra.mxu0 %v1064
    %1096 = vmatpush.msra.mxu0 %v1063
    %1097 = vmatpush.msra.mxu0 %v1062
    %1098 = vmatmul.f32.gmra.mxu0 %v1060
    %v1099 = vpop.f32.mrf.mxu0
    %v1100 = vadd.f32 %v1080, %v1099
    %1101 = vmatmul.f32.gmra.mxu0 %v1061
    %v1102 = vpop.f32.mrf.mxu0
    %v1103 = vadd.f32 %v1080, %v1102
    %1104 = vdwg.mxu0
    %v1105 = vadd.f32 %v879, %v1100
    %v1106 = vadd.f32 %v880, %v1103
    %s1107 = scalar_lea.vmem %s5, 1
    %v1108 = vld [vmem:[%s1107] sm:$0x1]
    %s1109 = scalar_lea.vmem %s6, 1
    %v1110 = vld [vmem:[%s1109] sm:$0x1]
    %v1111 = vsel %vm163, %v1105, 0.0
    %1112 = vadd.xlane.f32.xlu0 %v1111
    %v1113 = vpop.xlane.xlu0 %1112
    %v1114 = vsel %vm167, %v1106, 0.0
    %1115 = vadd.xlane.f32.xlu0 %v1114
    %v1116 = vpop.xlane.xlu0 %1115
    %v1117 = vmul.f32 %v1113, %v177
    %v1118 = vmul.f32 %v1116, %v177
    %v1119 = vsub.f32 %v1105, %v1117
    %v1120 = vsub.f32 %v1106, %v1118
    %v1121 = vmul.f32 %v1119, %v1119
    %v1122 = vmul.f32 %v1120, %v1120
    %v1123 = vsel %vm163, %v1121, 0.0
    %1124 = vadd.xlane.f32.xlu0 %v1123
    %v1125 = vpop.xlane.xlu0 %1124
    %v1126 = vsel %vm167, %v1122, 0.0
    %1127 = vadd.xlane.f32.xlu0 %v1126
    %v1128 = vpop.xlane.xlu0 %1127
    %v1129 = vmul.f32 %v1125, %v177
    %v1130 = vmul.f32 %v1128, %v177
    %v1131 = vadd.f32 %v1129, 1e-06
    %v1132 = vadd.f32 %v1130, 1e-06
    %v1133 = vrsqrt.pop %v1131
    %v1134 = vmul.f32 %v1133, %v1131
    %v1135 = vmul.f32 %v1134, %v1133
    %v1136 = vmul.f32 0.5, %v1135
    %v1137 = vsub.f32 1.5, %v1136
    %v1138 = vmul.f32 %v1133, %v1137
    %vm1139 = vweird.f32 %v1131
    %vm1140 = vweird.f32 %v1133
    %vm1141 = vmor %vm1139, %vm1140
    %v1142 = vsel %vm1141, %v1133, %v1138
    %v1143 = vrsqrt.pop %v1132
    %v1144 = vmul.f32 %v1143, %v1132
    %v1145 = vmul.f32 %v1144, %v1143
    %v1146 = vmul.f32 0.5, %v1145
    %v1147 = vsub.f32 1.5, %v1146
    %v1148 = vmul.f32 %v1143, %v1147
    %vm1149 = vweird.f32 %v1132
    %vm1150 = vweird.f32 %v1143
    %vm1151 = vmor %vm1149, %vm1150
    %v1152 = vsel %vm1151, %v1143, %v1148
    %v1153 = vmul.f32 %v1119, %v1142
    %v1154 = vmul.f32 %v1120, %v1152
    %v1156 = vperm.slane %v1108, 0
    %v1158 = vmul.f32 %v1153, %v1156
    %v1159 = vmul.f32 %v1154, %v1156
    %v1161 = vperm.slane %v1110, 0
    %v1163 = vadd.f32 %v1158, %v1161
    %v1164 = vadd.f32 %v1159, %v1161
    %s1165 = scalar_lea.vmem %s7, 32
    %v1166 = vld [vmem:[%s1165] sm:$0xff]
    %v1167 = vld [vmem:[%s1165 + $0x8] sm:$0xff]
    %v1168 = vld [vmem:[%s1165 + $0x10] sm:$0xff]
    %v1169 = vld [vmem:[%s1165 + $0x18] sm:$0xff]
    %s1170 = scalar_lea.vmem %s8, 1
    %v1171 = vld [vmem:[%s1170] sm:$0x1]
    %v1173 = vperm.slane %v1171, 0
    %v1176 = vsel %vm163, %v1163, 0
    %v1179 = vsel %vm163, %v1164, 0
    %1181 = vmatpush.msra.mxu0 0.0
    %1182 = vmatpush.msra.mxu0 0.0
    %1183 = vmatpush.msra.mxu0 0.0
    %1184 = vmatpush.msra.mxu0 0.0
    %1185 = vmatpush.msra.mxu0 0.0
    %1186 = vmatpush.msra.mxu0 0.0
    %1187 = vmatpush.msra.mxu0 0.0
    %1188 = vmatpush.msra.mxu0 0.0
    %1189 = vmatpush.msra.mxu0 0.0
    %1190 = vmatpush.msra.mxu0 0.0
    %1191 = vmatpush.msra.mxu0 0.0
    %1192 = vmatpush.msra.mxu0 0.0
    %1193 = vmatpush.msra.mxu0 %v1169
    %1194 = vmatpush.msra.mxu0 %v1168
    %1195 = vmatpush.msra.mxu0 %v1167
    %1196 = vmatpush.msra.mxu0 %v1166
    %1197 = vmatmul.f32.gmra.mxu0 %v1176
    %v1198 = vpop.f32.mrf.mxu0
    %v1199 = vadd.f32 %v1173, %v1198
    %1200 = vmatmul.f32.gmra.mxu0 %v1179
    %v1201 = vpop.f32.mrf.mxu0
    %v1202 = vadd.f32 %v1173, %v1201
    %1203 = vdwg.mxu0
    %v1204 = vmul.f32 %v1199, 0.35355338
    %1206 = vrot.lane.b32.xlu0 %v1199, 96
    %v1207 = vpop.permute.xlu0 %1206
    %v1209 = vsel %vm267, %v1204, 0
    %v1211 = vsel %vm267, %v1207, 0
    %1213 = vmatpush.xpose.msra.mxu0 0.0
    %1214 = vmatpush.xpose.msra.mxu0 0.0
    %1215 = vmatpush.xpose.msra.mxu0 0.0
    %1216 = vmatpush.xpose.msra.mxu0 0.0
    %1217 = vmatpush.xpose.msra.mxu0 0.0
    %1218 = vmatpush.xpose.msra.mxu0 0.0
    %1219 = vmatpush.xpose.msra.mxu0 0.0
    %1220 = vmatpush.xpose.msra.mxu0 0.0
    %1221 = vmatpush.xpose.msra.mxu0 0.0
    %1222 = vmatpush.xpose.msra.mxu0 0.0
    %1223 = vmatpush.xpose.msra.mxu0 0.0
    %1224 = vmatpush.xpose.msra.mxu0 0.0
    %1225 = vmatpush.xpose.msra.mxu0 0.0
    %1226 = vmatpush.xpose.msra.mxu0 0.0
    %1227 = vmatpush.xpose.msra.mxu0 0.0
    %1228 = vmatpush.xpose.msra.mxu0 %v1211
    %1229 = vmatmul.f32.gmra.mxu0 %v1209
    %v1230 = vpop.f32.mrf.mxu0
    %v1231 = vadd.f32 0.0, %v1230
    %1232 = vdwg.mxu0
    %v1233 = vsel %vm293, %v1231, -inf
    %1234 = vmax.xlane.f32.xlu0 %v1233
    %v1235 = vpop.xlane.xlu0 %1234
    %v1236 = vsub.f32 %v1231, %v1235
    %v1237 = vmul.f32 %v1236, 1.442695
    %v1238 = vpow.pop %v1237
    %v1239 = vsel %vm293, %v1238, 0.0
    %1240 = vadd.xlane.f32.xlu0 %v1239
    %v1241 = vpop.xlane.xlu0 %1240
    %v1242 = vrcp.pop %v1241
    %v1243 = vmul.f32 %v1238, %v1242
    %1244 = vrot.lane.b32.xlu0 %v1199, 64
    %v1245 = vpop.permute.xlu0 %1244
    %v1247 = vsel %vm307, %v1243, 0
    %v1249 = vsel %vm311, %v1245, 0
    %1251 = vmatpush.msra.mxu0 0.0
    %1252 = vmatpush.msra.mxu0 0.0
    %1253 = vmatpush.msra.mxu0 0.0
    %1254 = vmatpush.msra.mxu0 0.0
    %1255 = vmatpush.msra.mxu0 0.0
    %1256 = vmatpush.msra.mxu0 0.0
    %1257 = vmatpush.msra.mxu0 0.0
    %1258 = vmatpush.msra.mxu0 0.0
    %1259 = vmatpush.msra.mxu0 0.0
    %1260 = vmatpush.msra.mxu0 0.0
    %1261 = vmatpush.msra.mxu0 0.0
    %1262 = vmatpush.msra.mxu0 0.0
    %1263 = vmatpush.msra.mxu0 0.0
    %1264 = vmatpush.msra.mxu0 0.0
    %1265 = vmatpush.msra.mxu0 0.0
    %1266 = vmatpush.msra.mxu0 %v1249
    %1267 = vmatmul.f32.gmra.mxu0 %v1247
    %v1268 = vpop.f32.mrf.mxu0
    %v1269 = vadd.f32 0.0, %v1268
    %1270 = vdwg.mxu0
    %1271 = vst.msk [vmem:[#allocation2] sm:$0x1f] %vm334, %v1269
    %1272 = vrot.lane.b32.xlu0 %v1204, 120
    %v1273 = vpop.permute.xlu0 %1272
    %1274 = vrot.lane.b32.xlu0 %v1199, 88
    %v1275 = vpop.permute.xlu0 %1274
    %v1276 = vsel %vm267, %v1273, 0
    %v1278 = vsel %vm267, %v1275, 0
    %1280 = vmatpush.xpose.msra.mxu0 0.0
    %1281 = vmatpush.xpose.msra.mxu0 0.0
    %1282 = vmatpush.xpose.msra.mxu0 0.0
    %1283 = vmatpush.xpose.msra.mxu0 0.0
    %1284 = vmatpush.xpose.msra.mxu0 0.0
    %1285 = vmatpush.xpose.msra.mxu0 0.0
    %1286 = vmatpush.xpose.msra.mxu0 0.0
    %1287 = vmatpush.xpose.msra.mxu0 0.0
    %1288 = vmatpush.xpose.msra.mxu0 0.0
    %1289 = vmatpush.xpose.msra.mxu0 0.0
    %1290 = vmatpush.xpose.msra.mxu0 0.0
    %1291 = vmatpush.xpose.msra.mxu0 0.0
    %1292 = vmatpush.xpose.msra.mxu0 0.0
    %1293 = vmatpush.xpose.msra.mxu0 0.0
    %1294 = vmatpush.xpose.msra.mxu0 0.0
    %1295 = vmatpush.xpose.msra.mxu0 %v1278
    %1296 = vmatmul.f32.gmra.mxu0 %v1276
    %v1297 = vpop.f32.mrf.mxu0
    %v1298 = vadd.f32 0.0, %v1297
    %1299 = vdwg.mxu0
    %v1300 = vsel %vm293, %v1298, -inf
    %1301 = vmax.xlane.f32.xlu0 %v1300
    %v1302 = vpop.xlane.xlu0 %1301
    %v1303 = vsub.f32 %v1298, %v1302
    %v1304 = vmul.f32 %v1303, 1.442695
    %v1305 = vpow.pop %v1304
    %v1306 = vsel %vm293, %v1305, 0.0
    %1307 = vadd.xlane.f32.xlu0 %v1306
    %v1308 = vpop.xlane.xlu0 %1307
    %v1309 = vrcp.pop %v1308
    %v1310 = vmul.f32 %v1305, %v1309
    %1311 = vrot.lane.b32.xlu0 %v1199, 56
    %v1312 = vpop.permute.xlu0 %1311
    %v1314 = vsel %vm307, %v1310, 0
    %v1316 = vsel %vm311, %v1312, 0
    %1318 = vmatpush.msra.mxu0 0.0
    %1319 = vmatpush.msra.mxu0 0.0
    %1320 = vmatpush.msra.mxu0 0.0
    %1321 = vmatpush.msra.mxu0 0.0
    %1322 = vmatpush.msra.mxu0 0.0
    %1323 = vmatpush.msra.mxu0 0.0
    %1324 = vmatpush.msra.mxu0 0.0
    %1325 = vmatpush.msra.mxu0 0.0
    %1326 = vmatpush.msra.mxu0 0.0
    %1327 = vmatpush.msra.mxu0 0.0
    %1328 = vmatpush.msra.mxu0 0.0
    %1329 = vmatpush.msra.mxu0 0.0
    %1330 = vmatpush.msra.mxu0 0.0
    %1331 = vmatpush.msra.mxu0 0.0
    %1332 = vmatpush.msra.mxu0 0.0
    %1333 = vmatpush.msra.mxu0 %v1316
    %1334 = vmatmul.f32.gmra.mxu0 %v1314
    %v1335 = vpop.f32.mrf.mxu0
    %v1336 = vadd.f32 0.0, %v1335
    %1337 = vdwg.mxu0
    %1339 = vrot.lane.b32.xlu0 %v1336, 8
    %v1340 = vpop.permute.xlu0 %1339
    %1342 = vst.msk [vmem:[#allocation2] sm:$0x1f] %vm406, %v1340
    %1343 = vrot.lane.b32.xlu0 %v1204, 112
    %v1344 = vpop.permute.xlu0 %1343
    %1345 = vrot.lane.b32.xlu0 %v1199, 80
    %v1346 = vpop.permute.xlu0 %1345
    %v1347 = vsel %vm267, %v1344, 0
    %v1349 = vsel %vm267, %v1346, 0
    %1351 = vmatpush.xpose.msra.mxu0 0.0
    %1352 = vmatpush.xpose.msra.mxu0 0.0
    %1353 = vmatpush.xpose.msra.mxu0 0.0
    %1354 = vmatpush.xpose.msra.mxu0 0.0
    %1355 = vmatpush.xpose.msra.mxu0 0.0
    %1356 = vmatpush.xpose.msra.mxu0 0.0
    %1357 = vmatpush.xpose.msra.mxu0 0.0
    %1358 = vmatpush.xpose.msra.mxu0 0.0
    %1359 = vmatpush.xpose.msra.mxu0 0.0
    %1360 = vmatpush.xpose.msra.mxu0 0.0
    %1361 = vmatpush.xpose.msra.mxu0 0.0
    %1362 = vmatpush.xpose.msra.mxu0 0.0
    %1363 = vmatpush.xpose.msra.mxu0 0.0
    %1364 = vmatpush.xpose.msra.mxu0 0.0
    %1365 = vmatpush.xpose.msra.mxu0 0.0
    %1366 = vmatpush.xpose.msra.mxu0 %v1349
    %1367 = vmatmul.f32.gmra.mxu0 %v1347
    %v1368 = vpop.f32.mrf.mxu0
    %v1369 = vadd.f32 0.0, %v1368
    %1370 = vdwg.mxu0
    %v1371 = vsel %vm293, %v1369, -inf
    %1372 = vmax.xlane.f32.xlu0 %v1371
    %v1373 = vpop.xlane.xlu0 %1372
    %v1374 = vsub.f32 %v1369, %v1373
    %v1375 = vmul.f32 %v1374, 1.442695
    %v1376 = vpow.pop %v1375
    %v1377 = vsel %vm293, %v1376, 0.0
    %1378 = vadd.xlane.f32.xlu0 %v1377
    %v1379 = vpop.xlane.xlu0 %1378
    %v1380 = vrcp.pop %v1379
    %v1381 = vmul.f32 %v1376, %v1380
    %1382 = vrot.lane.b32.xlu0 %v1199, 48
    %v1383 = vpop.permute.xlu0 %1382
    %v1385 = vsel %vm307, %v1381, 0
    %v1387 = vsel %vm311, %v1383, 0
    %1389 = vmatpush.msra.mxu0 0.0
    %1390 = vmatpush.msra.mxu0 0.0
    %1391 = vmatpush.msra.mxu0 0.0
    %1392 = vmatpush.msra.mxu0 0.0
    %1393 = vmatpush.msra.mxu0 0.0
    %1394 = vmatpush.msra.mxu0 0.0
    %1395 = vmatpush.msra.mxu0 0.0
    %1396 = vmatpush.msra.mxu0 0.0
    %1397 = vmatpush.msra.mxu0 0.0
    %1398 = vmatpush.msra.mxu0 0.0
    %1399 = vmatpush.msra.mxu0 0.0
    %1400 = vmatpush.msra.mxu0 0.0
    %1401 = vmatpush.msra.mxu0 0.0
    %1402 = vmatpush.msra.mxu0 0.0
    %1403 = vmatpush.msra.mxu0 0.0
    %1404 = vmatpush.msra.mxu0 %v1387
    %1405 = vmatmul.f32.gmra.mxu0 %v1385
    %v1406 = vpop.f32.mrf.mxu0
    %v1407 = vadd.f32 0.0, %v1406
    %1408 = vdwg.mxu0
    %1410 = vrot.lane.b32.xlu0 %v1407, 16
    %v1411 = vpop.permute.xlu0 %1410
    %1413 = vst.msk [vmem:[#allocation2] sm:$0x1f] %vm478, %v1411
    %1414 = vrot.lane.b32.xlu0 %v1204, 104
    %v1415 = vpop.permute.xlu0 %1414
    %1416 = vrot.lane.b32.xlu0 %v1199, 72
    %v1417 = vpop.permute.xlu0 %1416
    %v1418 = vsel %vm267, %v1415, 0
    %v1420 = vsel %vm267, %v1417, 0
    %1422 = vmatpush.xpose.msra.mxu0 0.0
    %1423 = vmatpush.xpose.msra.mxu0 0.0
    %1424 = vmatpush.xpose.msra.mxu0 0.0
    %1425 = vmatpush.xpose.msra.mxu0 0.0
    %1426 = vmatpush.xpose.msra.mxu0 0.0
    %1427 = vmatpush.xpose.msra.mxu0 0.0
    %1428 = vmatpush.xpose.msra.mxu0 0.0
    %1429 = vmatpush.xpose.msra.mxu0 0.0
    %1430 = vmatpush.xpose.msra.mxu0 0.0
    %1431 = vmatpush.xpose.msra.mxu0 0.0
    %1432 = vmatpush.xpose.msra.mxu0 0.0
    %1433 = vmatpush.xpose.msra.mxu0 0.0
    %1434 = vmatpush.xpose.msra.mxu0 0.0
    %1435 = vmatpush.xpose.msra.mxu0 0.0
    %1436 = vmatpush.xpose.msra.mxu0 0.0
    %1437 = vmatpush.xpose.msra.mxu0 %v1420
    %1438 = vmatmul.f32.gmra.mxu0 %v1418
    %v1439 = vpop.f32.mrf.mxu0
    %v1440 = vadd.f32 0.0, %v1439
    %1441 = vdwg.mxu0
    %v1442 = vsel %vm293, %v1440, -inf
    %1443 = vmax.xlane.f32.xlu0 %v1442
    %v1444 = vpop.xlane.xlu0 %1443
    %v1445 = vsub.f32 %v1440, %v1444
    %v1446 = vmul.f32 %v1445, 1.442695
    %v1447 = vpow.pop %v1446
    %v1448 = vsel %vm293, %v1447, 0.0
    %1449 = vadd.xlane.f32.xlu0 %v1448
    %v1450 = vpop.xlane.xlu0 %1449
    %v1451 = vrcp.pop %v1450
    %v1452 = vmul.f32 %v1447, %v1451
    %1453 = vrot.lane.b32.xlu0 %v1199, 40
    %v1454 = vpop.permute.xlu0 %1453
    %v1456 = vsel %vm307, %v1452, 0
    %v1458 = vsel %vm311, %v1454, 0
    %1460 = vmatpush.msra.mxu0 0.0
    %1461 = vmatpush.msra.mxu0 0.0
    %1462 = vmatpush.msra.mxu0 0.0
    %1463 = vmatpush.msra.mxu0 0.0
    %1464 = vmatpush.msra.mxu0 0.0
    %1465 = vmatpush.msra.mxu0 0.0
    %1466 = vmatpush.msra.mxu0 0.0
    %1467 = vmatpush.msra.mxu0 0.0
    %1468 = vmatpush.msra.mxu0 0.0
    %1469 = vmatpush.msra.mxu0 0.0
    %1470 = vmatpush.msra.mxu0 0.0
    %1471 = vmatpush.msra.mxu0 0.0
    %1472 = vmatpush.msra.mxu0 0.0
    %1473 = vmatpush.msra.mxu0 0.0
    %1474 = vmatpush.msra.mxu0 0.0
    %1475 = vmatpush.msra.mxu0 %v1458
    %1476 = vmatmul.f32.gmra.mxu0 %v1456
    %v1477 = vpop.f32.mrf.mxu0
    %v1478 = vadd.f32 0.0, %v1477
    %1479 = vdwg.mxu0
    %1481 = vrot.lane.b32.xlu0 %v1478, 24
    %v1482 = vpop.permute.xlu0 %1481
    %1484 = vst.msk [vmem:[#allocation2] sm:$0x1f] %vm550, %v1482
    %v1485 = vmul.f32 %v1202, 0.35355338
    %v1487 = vrot.slane %v1204, 5
    %v1488 = vrot.slane %v1485, 5
    %v1489 = vsel %vm554, %v1487, %v1488
    %v1491 = vrot.slane %v1199, 5
    %v1492 = vrot.slane %v1202, 5
    %v1493 = vsel %vm554, %v1491, %v1492
    %1494 = vrot.lane.b32.xlu0 %v1493, 96
    %v1495 = vpop.permute.xlu0 %1494
    %v1496 = vsel %vm267, %v1489, 0
    %v1498 = vsel %vm267, %v1495, 0
    %1500 = vmatpush.xpose.msra.mxu0 0.0
    %1501 = vmatpush.xpose.msra.mxu0 0.0
    %1502 = vmatpush.xpose.msra.mxu0 0.0
    %1503 = vmatpush.xpose.msra.mxu0 0.0
    %1504 = vmatpush.xpose.msra.mxu0 0.0
    %1505 = vmatpush.xpose.msra.mxu0 0.0
    %1506 = vmatpush.xpose.msra.mxu0 0.0
    %1507 = vmatpush.xpose.msra.mxu0 0.0
    %1508 = vmatpush.xpose.msra.mxu0 0.0
    %1509 = vmatpush.xpose.msra.mxu0 0.0
    %1510 = vmatpush.xpose.msra.mxu0 0.0
    %1511 = vmatpush.xpose.msra.mxu0 0.0
    %1512 = vmatpush.xpose.msra.mxu0 0.0
    %1513 = vmatpush.xpose.msra.mxu0 0.0
    %1514 = vmatpush.xpose.msra.mxu0 0.0
    %1515 = vmatpush.xpose.msra.mxu0 %v1498
    %1516 = vmatmul.f32.gmra.mxu0 %v1496
    %v1517 = vpop.f32.mrf.mxu0
    %v1518 = vadd.f32 0.0, %v1517
    %1519 = vdwg.mxu0
    %v1520 = vsel %vm293, %v1518, -inf
    %1521 = vmax.xlane.f32.xlu0 %v1520
    %v1522 = vpop.xlane.xlu0 %1521
    %v1523 = vsub.f32 %v1518, %v1522
    %v1524 = vmul.f32 %v1523, 1.442695
    %v1525 = vpow.pop %v1524
    %v1526 = vsel %vm293, %v1525, 0.0
    %1527 = vadd.xlane.f32.xlu0 %v1526
    %v1528 = vpop.xlane.xlu0 %1527
    %v1529 = vrcp.pop %v1528
    %v1530 = vmul.f32 %v1525, %v1529
    %1531 = vrot.lane.b32.xlu0 %v1493, 64
    %v1532 = vpop.permute.xlu0 %1531
    %v1534 = vsel %vm307, %v1530, 0
    %v1536 = vsel %vm311, %v1532, 0
    %1538 = vmatpush.msra.mxu0 0.0
    %1539 = vmatpush.msra.mxu0 0.0
    %1540 = vmatpush.msra.mxu0 0.0
    %1541 = vmatpush.msra.mxu0 0.0
    %1542 = vmatpush.msra.mxu0 0.0
    %1543 = vmatpush.msra.mxu0 0.0
    %1544 = vmatpush.msra.mxu0 0.0
    %1545 = vmatpush.msra.mxu0 0.0
    %1546 = vmatpush.msra.mxu0 0.0
    %1547 = vmatpush.msra.mxu0 0.0
    %1548 = vmatpush.msra.mxu0 0.0
    %1549 = vmatpush.msra.mxu0 0.0
    %1550 = vmatpush.msra.mxu0 0.0
    %1551 = vmatpush.msra.mxu0 0.0
    %1552 = vmatpush.msra.mxu0 0.0
    %1553 = vmatpush.msra.mxu0 %v1536
    %1554 = vmatmul.f32.gmra.mxu0 %v1534
    %v1555 = vpop.f32.mrf.mxu0
    %v1556 = vadd.f32 0.0, %v1555
    %1557 = vdwg.mxu0
    %1558 = vst.msk [vmem:[#allocation2 + $0x5] sm:$0x1f] %vm334, %v1556
    %1559 = vrot.lane.b32.xlu0 %v1489, 120
    %v1560 = vpop.permute.xlu0 %1559
    %1561 = vrot.lane.b32.xlu0 %v1493, 88
    %v1562 = vpop.permute.xlu0 %1561
    %v1563 = vsel %vm267, %v1560, 0
    %v1565 = vsel %vm267, %v1562, 0
    %1567 = vmatpush.xpose.msra.mxu0 0.0
    %1568 = vmatpush.xpose.msra.mxu0 0.0
    %1569 = vmatpush.xpose.msra.mxu0 0.0
    %1570 = vmatpush.xpose.msra.mxu0 0.0
    %1571 = vmatpush.xpose.msra.mxu0 0.0
    %1572 = vmatpush.xpose.msra.mxu0 0.0
    %1573 = vmatpush.xpose.msra.mxu0 0.0
    %1574 = vmatpush.xpose.msra.mxu0 0.0
    %1575 = vmatpush.xpose.msra.mxu0 0.0
    %1576 = vmatpush.xpose.msra.mxu0 0.0
    %1577 = vmatpush.xpose.msra.mxu0 0.0
    %1578 = vmatpush.xpose.msra.mxu0 0.0
    %1579 = vmatpush.xpose.msra.mxu0 0.0
    %1580 = vmatpush.xpose.msra.mxu0 0.0
    %1581 = vmatpush.xpose.msra.mxu0 0.0
    %1582 = vmatpush.xpose.msra.mxu0 %v1565
    %1583 = vmatmul.f32.gmra.mxu0 %v1563
    %v1584 = vpop.f32.mrf.mxu0
    %v1585 = vadd.f32 0.0, %v1584
    %1586 = vdwg.mxu0
    %v1587 = vsel %vm293, %v1585, -inf
    %1588 = vmax.xlane.f32.xlu0 %v1587
    %v1589 = vpop.xlane.xlu0 %1588
    %v1590 = vsub.f32 %v1585, %v1589
    %v1591 = vmul.f32 %v1590, 1.442695
    %v1592 = vpow.pop %v1591
    %v1593 = vsel %vm293, %v1592, 0.0
    %1594 = vadd.xlane.f32.xlu0 %v1593
    %v1595 = vpop.xlane.xlu0 %1594
    %v1596 = vrcp.pop %v1595
    %v1597 = vmul.f32 %v1592, %v1596
    %1598 = vrot.lane.b32.xlu0 %v1493, 56
    %v1599 = vpop.permute.xlu0 %1598
    %v1601 = vsel %vm307, %v1597, 0
    %v1603 = vsel %vm311, %v1599, 0
    %1605 = vmatpush.msra.mxu0 0.0
    %1606 = vmatpush.msra.mxu0 0.0
    %1607 = vmatpush.msra.mxu0 0.0
    %1608 = vmatpush.msra.mxu0 0.0
    %1609 = vmatpush.msra.mxu0 0.0
    %1610 = vmatpush.msra.mxu0 0.0
    %1611 = vmatpush.msra.mxu0 0.0
    %1612 = vmatpush.msra.mxu0 0.0
    %1613 = vmatpush.msra.mxu0 0.0
    %1614 = vmatpush.msra.mxu0 0.0
    %1615 = vmatpush.msra.mxu0 0.0
    %1616 = vmatpush.msra.mxu0 0.0
    %1617 = vmatpush.msra.mxu0 0.0
    %1618 = vmatpush.msra.mxu0 0.0
    %1619 = vmatpush.msra.mxu0 0.0
    %1620 = vmatpush.msra.mxu0 %v1603
    %1621 = vmatmul.f32.gmra.mxu0 %v1601
    %v1622 = vpop.f32.mrf.mxu0
    %v1623 = vadd.f32 0.0, %v1622
    %1624 = vdwg.mxu0
    %1626 = vrot.lane.b32.xlu0 %v1623, 8
    %v1627 = vpop.permute.xlu0 %1626
    %1629 = vst.msk [vmem:[#allocation2 + $0x5] sm:$0x1f] %vm406, %v1627
    %1630 = vrot.lane.b32.xlu0 %v1489, 112
    %v1631 = vpop.permute.xlu0 %1630
    %1632 = vrot.lane.b32.xlu0 %v1493, 80
    %v1633 = vpop.permute.xlu0 %1632
    %v1634 = vsel %vm267, %v1631, 0
    %v1636 = vsel %vm267, %v1633, 0
    %1638 = vmatpush.xpose.msra.mxu0 0.0
    %1639 = vmatpush.xpose.msra.mxu0 0.0
    %1640 = vmatpush.xpose.msra.mxu0 0.0
    %1641 = vmatpush.xpose.msra.mxu0 0.0
    %1642 = vmatpush.xpose.msra.mxu0 0.0
    %1643 = vmatpush.xpose.msra.mxu0 0.0
    %1644 = vmatpush.xpose.msra.mxu0 0.0
    %1645 = vmatpush.xpose.msra.mxu0 0.0
    %1646 = vmatpush.xpose.msra.mxu0 0.0
    %1647 = vmatpush.xpose.msra.mxu0 0.0
    %1648 = vmatpush.xpose.msra.mxu0 0.0
    %1649 = vmatpush.xpose.msra.mxu0 0.0
    %1650 = vmatpush.xpose.msra.mxu0 0.0
    %1651 = vmatpush.xpose.msra.mxu0 0.0
    %1652 = vmatpush.xpose.msra.mxu0 0.0
    %1653 = vmatpush.xpose.msra.mxu0 %v1636
    %1654 = vmatmul.f32.gmra.mxu0 %v1634
    %v1655 = vpop.f32.mrf.mxu0
    %v1656 = vadd.f32 0.0, %v1655
    %1657 = vdwg.mxu0
    %v1658 = vsel %vm293, %v1656, -inf
    %1659 = vmax.xlane.f32.xlu0 %v1658
    %v1660 = vpop.xlane.xlu0 %1659
    %v1661 = vsub.f32 %v1656, %v1660
    %v1662 = vmul.f32 %v1661, 1.442695
    %v1663 = vpow.pop %v1662
    %v1664 = vsel %vm293, %v1663, 0.0
    %1665 = vadd.xlane.f32.xlu0 %v1664
    %v1666 = vpop.xlane.xlu0 %1665
    %v1667 = vrcp.pop %v1666
    %v1668 = vmul.f32 %v1663, %v1667
    %1669 = vrot.lane.b32.xlu0 %v1493, 48
    %v1670 = vpop.permute.xlu0 %1669
    %v1672 = vsel %vm307, %v1668, 0
    %v1674 = vsel %vm311, %v1670, 0
    %1676 = vmatpush.msra.mxu0 0.0
    %1677 = vmatpush.msra.mxu0 0.0
    %1678 = vmatpush.msra.mxu0 0.0
    %1679 = vmatpush.msra.mxu0 0.0
    %1680 = vmatpush.msra.mxu0 0.0
    %1681 = vmatpush.msra.mxu0 0.0
    %1682 = vmatpush.msra.mxu0 0.0
    %1683 = vmatpush.msra.mxu0 0.0
    %1684 = vmatpush.msra.mxu0 0.0
    %1685 = vmatpush.msra.mxu0 0.0
    %1686 = vmatpush.msra.mxu0 0.0
    %1687 = vmatpush.msra.mxu0 0.0
    %1688 = vmatpush.msra.mxu0 0.0
    %1689 = vmatpush.msra.mxu0 0.0
    %1690 = vmatpush.msra.mxu0 0.0
    %1691 = vmatpush.msra.mxu0 %v1674
    %1692 = vmatmul.f32.gmra.mxu0 %v1672
    %v1693 = vpop.f32.mrf.mxu0
    %v1694 = vadd.f32 0.0, %v1693
    %1695 = vdwg.mxu0
    %1697 = vrot.lane.b32.xlu0 %v1694, 16
    %v1698 = vpop.permute.xlu0 %1697
    %1700 = vst.msk [vmem:[#allocation2 + $0x5] sm:$0x1f] %vm478, %v1698
    %1701 = vrot.lane.b32.xlu0 %v1489, 104
    %v1702 = vpop.permute.xlu0 %1701
    %1703 = vrot.lane.b32.xlu0 %v1493, 72
    %v1704 = vpop.permute.xlu0 %1703
    %v1705 = vsel %vm267, %v1702, 0
    %v1707 = vsel %vm267, %v1704, 0
    %1709 = vmatpush.xpose.msra.mxu0 0.0
    %1710 = vmatpush.xpose.msra.mxu0 0.0
    %1711 = vmatpush.xpose.msra.mxu0 0.0
    %1712 = vmatpush.xpose.msra.mxu0 0.0
    %1713 = vmatpush.xpose.msra.mxu0 0.0
    %1714 = vmatpush.xpose.msra.mxu0 0.0
    %1715 = vmatpush.xpose.msra.mxu0 0.0
    %1716 = vmatpush.xpose.msra.mxu0 0.0
    %1717 = vmatpush.xpose.msra.mxu0 0.0
    %1718 = vmatpush.xpose.msra.mxu0 0.0
    %1719 = vmatpush.xpose.msra.mxu0 0.0
    %1720 = vmatpush.xpose.msra.mxu0 0.0
    %1721 = vmatpush.xpose.msra.mxu0 0.0
    %1722 = vmatpush.xpose.msra.mxu0 0.0
    %1723 = vmatpush.xpose.msra.mxu0 0.0
    %1724 = vmatpush.xpose.msra.mxu0 %v1707
    %1725 = vmatmul.f32.gmra.mxu0 %v1705
    %v1726 = vpop.f32.mrf.mxu0
    %v1727 = vadd.f32 0.0, %v1726
    %1728 = vdwg.mxu0
    %v1729 = vsel %vm293, %v1727, -inf
    %1730 = vmax.xlane.f32.xlu0 %v1729
    %v1731 = vpop.xlane.xlu0 %1730
    %v1732 = vsub.f32 %v1727, %v1731
    %v1733 = vmul.f32 %v1732, 1.442695
    %v1734 = vpow.pop %v1733
    %v1735 = vsel %vm293, %v1734, 0.0
    %1736 = vadd.xlane.f32.xlu0 %v1735
    %v1737 = vpop.xlane.xlu0 %1736
    %v1738 = vrcp.pop %v1737
    %v1739 = vmul.f32 %v1734, %v1738
    %1740 = vrot.lane.b32.xlu0 %v1493, 40
    %v1741 = vpop.permute.xlu0 %1740
    %v1743 = vsel %vm307, %v1739, 0
    %v1745 = vsel %vm311, %v1741, 0
    %1747 = vmatpush.msra.mxu0 0.0
    %1748 = vmatpush.msra.mxu0 0.0
    %1749 = vmatpush.msra.mxu0 0.0
    %1750 = vmatpush.msra.mxu0 0.0
    %1751 = vmatpush.msra.mxu0 0.0
    %1752 = vmatpush.msra.mxu0 0.0
    %1753 = vmatpush.msra.mxu0 0.0
    %1754 = vmatpush.msra.mxu0 0.0
    %1755 = vmatpush.msra.mxu0 0.0
    %1756 = vmatpush.msra.mxu0 0.0
    %1757 = vmatpush.msra.mxu0 0.0
    %1758 = vmatpush.msra.mxu0 0.0
    %1759 = vmatpush.msra.mxu0 0.0
    %1760 = vmatpush.msra.mxu0 0.0
    %1761 = vmatpush.msra.mxu0 0.0
    %1762 = vmatpush.msra.mxu0 %v1745
    %1763 = vmatmul.f32.gmra.mxu0 %v1743
    %v1764 = vpop.f32.mrf.mxu0
    %v1765 = vadd.f32 0.0, %v1764
    %1766 = vdwg.mxu0
    %1768 = vrot.lane.b32.xlu0 %v1765, 24
    %v1769 = vpop.permute.xlu0 %1768
    %1771 = vst.msk [vmem:[#allocation2 + $0x5] sm:$0x1f] %vm550, %v1769
    %v1772 = vld [vmem:[#allocation2] sm:$0xff]
    %v1773 = vld [vmem:[#allocation2 + $0x8] sm:$0x3]
    %s1774 = scalar_lea.vmem %s9, 32
    %v1775 = vld [vmem:[%s1774] sm:$0xff]
    %v1776 = vld [vmem:[%s1774 + $0x8] sm:$0xff]
    %v1777 = vld [vmem:[%s1774 + $0x10] sm:$0xff]
    %v1778 = vld [vmem:[%s1774 + $0x18] sm:$0xff]
    %s1779 = scalar_lea.vmem %s10, 1
    %v1780 = vld [vmem:[%s1779] sm:$0x1]
    %v1782 = vperm.slane %v1780, 0
    %v1785 = vsel %vm163, %v1772, 0
    %v1788 = vsel %vm163, %v1773, 0
    %1790 = vmatpush.msra.mxu0 0.0
    %1791 = vmatpush.msra.mxu0 0.0
    %1792 = vmatpush.msra.mxu0 0.0
    %1793 = vmatpush.msra.mxu0 0.0
    %1794 = vmatpush.msra.mxu0 0.0
    %1795 = vmatpush.msra.mxu0 0.0
    %1796 = vmatpush.msra.mxu0 0.0
    %1797 = vmatpush.msra.mxu0 0.0
    %1798 = vmatpush.msra.mxu0 0.0
    %1799 = vmatpush.msra.mxu0 0.0
    %1800 = vmatpush.msra.mxu0 0.0
    %1801 = vmatpush.msra.mxu0 0.0
    %1802 = vmatpush.msra.mxu0 %v1778
    %1803 = vmatpush.msra.mxu0 %v1777
    %1804 = vmatpush.msra.mxu0 %v1776
    %1805 = vmatpush.msra.mxu0 %v1775
    %1806 = vmatmul.f32.gmra.mxu0 %v1785
    %v1807 = vpop.f32.mrf.mxu0
    %v1808 = vadd.f32 %v1782, %v1807
    %1809 = vmatmul.f32.gmra.mxu0 %v1788
    %v1810 = vpop.f32.mrf.mxu0
    %v1811 = vadd.f32 %v1782, %v1810
    %1812 = vdwg.mxu0
    %v1813 = vadd.f32 %v1105, %v1808
    %v1814 = vadd.f32 %v1106, %v1811
    %s1815 = scalar_lea.vmem %s11, 1
    %v1816 = vld [vmem:[%s1815] sm:$0x1]
    %s1817 = scalar_lea.vmem %s12, 1
    %v1818 = vld [vmem:[%s1817] sm:$0x1]
    %v1819 = vsel %vm163, %v1813, 0.0
    %1820 = vadd.xlane.f32.xlu0 %v1819
    %v1821 = vpop.xlane.xlu0 %1820
    %v1822 = vsel %vm167, %v1814, 0.0
    %1823 = vadd.xlane.f32.xlu0 %v1822
    %v1824 = vpop.xlane.xlu0 %1823
    %v1825 = vmul.f32 %v1821, %v177
    %v1826 = vmul.f32 %v1824, %v177
    %v1827 = vsub.f32 %v1813, %v1825
    %v1828 = vsub.f32 %v1814, %v1826
    %v1829 = vmul.f32 %v1827, %v1827
    %v1830 = vmul.f32 %v1828, %v1828
    %v1831 = vsel %vm163, %v1829, 0.0
    %1832 = vadd.xlane.f32.xlu0 %v1831
    %v1833 = vpop.xlane.xlu0 %1832
    %v1834 = vsel %vm167, %v1830, 0.0
    %1835 = vadd.xlane.f32.xlu0 %v1834
    %v1836 = vpop.xlane.xlu0 %1835
    %v1837 = vmul.f32 %v1833, %v177
    %v1838 = vmul.f32 %v1836, %v177
    %v1839 = vadd.f32 %v1837, 1e-06
    %v1840 = vadd.f32 %v1838, 1e-06
    %v1841 = vrsqrt.pop %v1839
    %v1842 = vmul.f32 %v1841, %v1839
    %v1843 = vmul.f32 %v1842, %v1841
    %v1844 = vmul.f32 0.5, %v1843
    %v1845 = vsub.f32 1.5, %v1844
    %v1846 = vmul.f32 %v1841, %v1845
    %vm1847 = vweird.f32 %v1839
    %vm1848 = vweird.f32 %v1841
    %vm1849 = vmor %vm1847, %vm1848
    %v1850 = vsel %vm1849, %v1841, %v1846
    %v1851 = vrsqrt.pop %v1840
    %v1852 = vmul.f32 %v1851, %v1840
    %v1853 = vmul.f32 %v1852, %v1851
    %v1854 = vmul.f32 0.5, %v1853
    %v1855 = vsub.f32 1.5, %v1854
    %v1856 = vmul.f32 %v1851, %v1855
    %vm1857 = vweird.f32 %v1840
    %vm1858 = vweird.f32 %v1851
    %vm1859 = vmor %vm1857, %vm1858
    %v1860 = vsel %vm1859, %v1851, %v1856
    %v1861 = vmul.f32 %v1827, %v1850
    %v1862 = vmul.f32 %v1828, %v1860
    %v1864 = vperm.slane %v1816, 0
    %v1866 = vmul.f32 %v1861, %v1864
    %v1867 = vmul.f32 %v1862, %v1864
    %v1869 = vperm.slane %v1818, 0
    %v1871 = vadd.f32 %v1866, %v1869
    %v1872 = vadd.f32 %v1867, %v1869
    %s1873 = scalar_lea.vmem %s13, 32
    %v1874 = vld [vmem:[%s1873] sm:$0xff]
    %v1875 = vld [vmem:[%s1873 + $0x8] sm:$0xff]
    %v1876 = vld [vmem:[%s1873 + $0x10] sm:$0xff]
    %v1877 = vld [vmem:[%s1873 + $0x18] sm:$0xff]
    %s1878 = scalar_lea.vmem %s14, 1
    %v1879 = vld [vmem:[%s1878] sm:$0x1]
    %v1881 = vperm.slane %v1879, 0
    %v1884 = vsel %vm163, %v1871, 0
    %v1887 = vsel %vm163, %v1872, 0
    %1889 = vmatpush.msra.mxu0 0.0
    %1890 = vmatpush.msra.mxu0 0.0
    %1891 = vmatpush.msra.mxu0 0.0
    %1892 = vmatpush.msra.mxu0 0.0
    %1893 = vmatpush.msra.mxu0 0.0
    %1894 = vmatpush.msra.mxu0 0.0
    %1895 = vmatpush.msra.mxu0 0.0
    %1896 = vmatpush.msra.mxu0 0.0
    %1897 = vmatpush.msra.mxu0 0.0
    %1898 = vmatpush.msra.mxu0 0.0
    %1899 = vmatpush.msra.mxu0 0.0
    %1900 = vmatpush.msra.mxu0 0.0
    %1901 = vmatpush.msra.mxu0 %v1877
    %1902 = vmatpush.msra.mxu0 %v1876
    %1903 = vmatpush.msra.mxu0 %v1875
    %1904 = vmatpush.msra.mxu0 %v1874
    %1905 = vmatmul.f32.gmra.mxu0 %v1884
    %v1906 = vpop.f32.mrf.mxu0
    %v1907 = vadd.f32 %v1881, %v1906
    %1908 = vmatmul.f32.gmra.mxu0 %v1887
    %v1909 = vpop.f32.mrf.mxu0
    %v1910 = vadd.f32 %v1881, %v1909
    %1911 = vdwg.mxu0
    %v1912 = vmul.f32 %v1907, 0.5
    %v1913 = vmul.f32 %v1910, 0.5
    %v1914 = vmul.f32 %v1907, 0.70710677
    %v1915 = vmul.f32 %v1910, 0.70710677
    %v1916 = vmul.f32 %v1914, %v1914
    %v1917 = vmin.f32 16.0, %v1916
    %v1918 = vmul.f32 %v1917, 2.1237322e-06
    %v1919 = vadd.f32 %v1918, 0.00028619796
    %v1920 = vmul.f32 %v1917, %v1919
    %v1921 = vadd.f32 %v1920, 0.0036580483
    %v1922 = vmul.f32 %v1917, %v1921
    %v1923 = vadd.f32 %v1922, 0.05243302
    %v1924 = vmul.f32 %v1917, %v1923
    %v1925 = vadd.f32 %v1924, 0.18741608
    %v1926 = vmul.f32 %v1917, %v1925
    %v1927 = vadd.f32 %v1926, 1.1283791
    %v1928 = vmul.f32 %v1914, %v1927
    %v1929 = vmul.f32 %v1917, 3.8918573e-05
    %v1930 = vadd.f32 %v1929, 0.001143296
    %v1931 = vmul.f32 %v1917, %v1930
    %v1932 = vadd.f32 %v1931, 0.014752088
    %v1933 = vmul.f32 %v1917, %v1932
    %v1934 = vadd.f32 %v1933, 0.112945676
    %v1935 = vmul.f32 %v1917, %v1934
    %v1936 = vadd.f32 %v1935, 0.4994258
    %v1937 = vmul.f32 %v1917, %v1936
    %v1938 = vadd.f32 %v1937, 1.0
    %v1939 = vrcp.pop %v1938
    %v1940 = vmul.f32 %v1938, %v1939
    %v1941 = vsub.f32 1.0, %v1940
    %v1942 = vmul.f32 %v1939, %v1941
    %v1943 = vadd.f32 %v1939, %v1942
    %vm1944 = vweird.f32 %v1938
    %vm1945 = vweird.f32 %v1939
    %vm1946 = vmor %vm1944, %vm1945
    %v1947 = vsel %vm1946, %v1939, %v1943
    %v1948 = vand.u32 2147483647, %v1938
    %vm1949 = vcmp.eq.f32.partialorder %v1948, 8.507059e+37
    %v1950 = vand.u32 %v1938, 2147483648
    %v1951 = vor.u32 1.1754944e-38, %v1950
    %v1952 = vsel %vm1949, %v1951, %v1947
    %v1953 = vmul.f32 %v1928, %v1952
    %v1954 = vmin.f32 %v1953, 1.0
    %v1955 = vmax.f32 %v1954, -1.0
    %v1956 = vmul.f32 %v1915, %v1915
    %v1957 = vmin.f32 16.0, %v1956
    %v1958 = vmul.f32 %v1957, 2.1237322e-06
    %v1959 = vadd.f32 %v1958, 0.00028619796
    %v1960 = vmul.f32 %v1957, %v1959
    %v1961 = vadd.f32 %v1960, 0.0036580483
    %v1962 = vmul.f32 %v1957, %v1961
    %v1963 = vadd.f32 %v1962, 0.05243302
    %v1964 = vmul.f32 %v1957, %v1963
    %v1965 = vadd.f32 %v1964, 0.18741608
    %v1966 = vmul.f32 %v1957, %v1965
    %v1967 = vadd.f32 %v1966, 1.1283791
    %v1968 = vmul.f32 %v1915, %v1967
    %v1969 = vmul.f32 %v1957, 3.8918573e-05
    %v1970 = vadd.f32 %v1969, 0.001143296
    %v1971 = vmul.f32 %v1957, %v1970
    %v1972 = vadd.f32 %v1971, 0.014752088
    %v1973 = vmul.f32 %v1957, %v1972
    %v1974 = vadd.f32 %v1973, 0.112945676
    %v1975 = vmul.f32 %v1957, %v1974
    %v1976 = vadd.f32 %v1975, 0.4994258
    %v1977 = vmul.f32 %v1957, %v1976
    %v1978 = vadd.f32 %v1977, 1.0
    %v1979 = vrcp.pop %v1978
    %v1980 = vmul.f32 %v1978, %v1979
    %v1981 = vsub.f32 1.0, %v1980
    %v1982 = vmul.f32 %v1979, %v1981
    %v1983 = vadd.f32 %v1979, %v1982
    %vm1984 = vweird.f32 %v1978
    %vm1985 = vweird.f32 %v1979
    %vm1986 = vmor %vm1984, %vm1985
    %v1987 = vsel %vm1986, %v1979, %v1983
    %v1988 = vand.u32 2147483647, %v1978
    %vm1989 = vcmp.eq.f32.partialorder %v1988, 8.507059e+37
    %v1990 = vand.u32 %v1978, 2147483648
    %v1991 = vor.u32 1.1754944e-38, %v1990
    %v1992 = vsel %vm1989, %v1991, %v1987
    %v1993 = vmul.f32 %v1968, %v1992
    %v1994 = vmin.f32 %v1993, 1.0
    %v1995 = vmax.f32 %v1994, -1.0
    %v1996 = vadd.f32 %v1955, 1.0
    %v1997 = vadd.f32 %v1995, 1.0
    %v1998 = vmul.f32 %v1912, %v1996
    %v1999 = vmul.f32 %v1913, %v1997
    %s2000 = scalar_lea.vmem %s15, 128
    %v2001 = vld [vmem:[%s2000] sm:$0xff]
    %v2002 = vld [vmem:[%s2000 + $0x8] sm:$0xff]
    %v2003 = vld [vmem:[%s2000 + $0x10] sm:$0xff]
    %v2004 = vld [vmem:[%s2000 + $0x18] sm:$0xff]
    %v2005 = vld [vmem:[%s2000 + $0x20] sm:$0xff]
    %v2006 = vld [vmem:[%s2000 + $0x28] sm:$0xff]
    %v2007 = vld [vmem:[%s2000 + $0x30] sm:$0xff]
    %v2008 = vld [vmem:[%s2000 + $0x38] sm:$0xff]
    %v2009 = vld [vmem:[%s2000 + $0x40] sm:$0xff]
    %v2010 = vld [vmem:[%s2000 + $0x48] sm:$0xff]
    %v2011 = vld [vmem:[%s2000 + $0x50] sm:$0xff]
    %v2012 = vld [vmem:[%s2000 + $0x58] sm:$0xff]
    %v2013 = vld [vmem:[%s2000 + $0x60] sm:$0xff]
    %v2014 = vld [vmem:[%s2000 + $0x68] sm:$0xff]
    %v2015 = vld [vmem:[%s2000 + $0x70] sm:$0xff]
    %v2016 = vld [vmem:[%s2000 + $0x78] sm:$0xff]
    %s2017 = scalar_lea.vmem %s16, 1
    %v2018 = vld [vmem:[%s2017] sm:$0x1]
    %v2020 = vperm.slane %v2018, 0
    %2022 = vmatpush.msra.mxu0 %v2016
    %2023 = vmatpush.msra.mxu0 %v2015
    %2024 = vmatpush.msra.mxu0 %v2014
    %2025 = vmatpush.msra.mxu0 %v2013
    %2026 = vmatpush.msra.mxu0 %v2012
    %2027 = vmatpush.msra.mxu0 %v2011
    %2028 = vmatpush.msra.mxu0 %v2010
    %2029 = vmatpush.msra.mxu0 %v2009
    %2030 = vmatpush.msra.mxu0 %v2008
    %2031 = vmatpush.msra.mxu0 %v2007
    %2032 = vmatpush.msra.mxu0 %v2006
    %2033 = vmatpush.msra.mxu0 %v2005
    %2034 = vmatpush.msra.mxu0 %v2004
    %2035 = vmatpush.msra.mxu0 %v2003
    %2036 = vmatpush.msra.mxu0 %v2002
    %2037 = vmatpush.msra.mxu0 %v2001
    %2038 = vmatmul.f32.gmra.mxu0 %v1998
    %v2039 = vpop.f32.mrf.mxu0
    %v2040 = vadd.f32 %v2020, %v2039
    %2041 = vmatmul.f32.gmra.mxu0 %v1999
    %v2042 = vpop.f32.mrf.mxu0
    %v2043 = vadd.f32 %v2020, %v2042
    %2044 = vdwg.mxu0
    %v2045 = vadd.f32 %v1813, %v2040
    %v2046 = vadd.f32 %v1814, %v2043
    %v2047 = vlaneseq
    %v2048 = vshrl.u32 %v2047, 7
    %v2049 = vlaneseq
    %v2050 = vand.u32 %v2049, 127
    %v2051 = vmul.u32 %v2048, 5
    %v2052 = vsub.s32 %v2050, %v2051
    %vm2053 = vcmp.ge.s32.totalorder %v2052, 1
    %vm2054 = vcmp.lt.s32.totalorder %v2052, 5
    %vm2055 = vmand %vm2053, %vm2054
    %v2056 = vsel %vm2055, 0.25, 0.0
    %vm2057 = vcmask 80896
    %v2059 = vsel %vm2057, %v2056, 0
    %vm2061 = vcmask 1041408
    %v2063 = vsel %vm2061, %v2046, 0
    %2065 = vmatpush.msra.mxu0 0.0
    %2066 = vmatpush.msra.mxu0 0.0
    %2067 = vmatpush.msra.mxu0 0.0
    %2068 = vmatpush.msra.mxu0 0.0
    %2069 = vmatpush.msra.mxu0 0.0
    %2070 = vmatpush.msra.mxu0 0.0
    %2071 = vmatpush.msra.mxu0 0.0
    %2072 = vmatpush.msra.mxu0 0.0
    %2073 = vmatpush.msra.mxu0 0.0
    %2074 = vmatpush.msra.mxu0 0.0
    %2075 = vmatpush.msra.mxu0 0.0
    %2076 = vmatpush.msra.mxu0 0.0
    %2077 = vmatpush.msra.mxu0 0.0
    %2078 = vmatpush.msra.mxu0 0.0
    %2079 = vmatpush.msra.mxu0 %v2063
    %2080 = vmatpush.msra.mxu0 %v2045
    %2081 = vmatmul.f32.gmra.mxu0 %v2059
    %v2082 = vpop.f32.mrf.mxu0
    %v2083 = vadd.f32 0.0, %v2082
    %2084 = vdwg.mxu0
    %v2085 = vld [vmem:[%s17] sm:$0x1]
    %v2086 = vld [vmem:[%s18] sm:$0x1]
    %v2087 = vsel %vm167, %v2083, 0.0
    %2088 = vadd.xlane.f32.xlu0 %v2087
    %v2089 = vpop.xlane.xlu0 %2088
    %v2090 = vmul.f32 %v2089, %v177
    %v2091 = vsub.f32 %v2083, %v2090
    %v2092 = vmul.f32 %v2091, %v2091
    %v2093 = vsel %vm167, %v2092, 0.0
    %2094 = vadd.xlane.f32.xlu0 %v2093
    %v2095 = vpop.xlane.xlu0 %2094
    %v2096 = vmul.f32 %v2095, %v177
    %v2097 = vadd.f32 %v2096, 1e-06
    %v2098 = vrsqrt.pop %v2097
    %v2099 = vmul.f32 %v2098, %v2097
    %v2100 = vmul.f32 %v2099, %v2098
    %v2101 = vmul.f32 0.5, %v2100
    %v2102 = vsub.f32 1.5, %v2101
    %v2103 = vmul.f32 %v2098, %v2102
    %vm2104 = vweird.f32 %v2097
    %vm2105 = vweird.f32 %v2098
    %vm2106 = vmor %vm2104, %vm2105
    %v2107 = vsel %vm2106, %v2098, %v2103
    %v2108 = vmul.f32 %v2091, %v2107
    %v2110 = vperm.slane %v2085, 0
    %v2112 = vmul.f32 %v2108, %v2110
    %v2114 = vperm.slane %v2086, 0
    %v2116 = vadd.f32 %v2112, %v2114
    %v2117 = vld [vmem:[%s19] sm:$0xff]
    %v2118 = vld [vmem:[%s19 + $0x8] sm:$0xff]
    %v2119 = vld [vmem:[%s19 + $0x10] sm:$0xff]
    %v2120 = vld [vmem:[%s19 + $0x18] sm:$0xff]
    %v2121 = vld [vmem:[%s20] sm:$0x1]
    %v2123 = vperm.slane %v2121, 0
    %v2126 = vsel %vm163, %v2116, 0
    %2128 = vmatpush.msra.mxu0 0.0
    %2129 = vmatpush.msra.mxu0 0.0
    %2130 = vmatpush.msra.mxu0 0.0
    %2131 = vmatpush.msra.mxu0 0.0
    %2132 = vmatpush.msra.mxu0 0.0
    %2133 = vmatpush.msra.mxu0 0.0
    %2134 = vmatpush.msra.mxu0 0.0
    %2135 = vmatpush.msra.mxu0 0.0
    %2136 = vmatpush.msra.mxu0 0.0
    %2137 = vmatpush.msra.mxu0 0.0
    %2138 = vmatpush.msra.mxu0 0.0
    %2139 = vmatpush.msra.mxu0 0.0
    %2140 = vmatpush.msra.mxu0 %v2120
    %2141 = vmatpush.msra.mxu0 %v2119
    %2142 = vmatpush.msra.mxu0 %v2118
    %2143 = vmatpush.msra.mxu0 %v2117
    %2144 = vmatmul.f32.gmra.mxu0 %v2126
    %v2145 = vpop.f32.mrf.mxu0
    %v2146 = vadd.f32 %v2123, %v2145
    %2147 = vdwg.mxu0
    %vm2148 = vcmask 25600
    %2149 = vst.msk [vmem:[#allocation3] sm:$0x3] %vm2148, %v2146
    // Predicated region
    $region86: #{vit_forward.1} parent=1 // pred_check
      _
    $region87: #{vit_forward.1} parent=1 // pred_check_branch
      %2151 = sbr.rel (0) target = $region89
    $region88: #{vit_forward.1} parent=1 // pred_region
      %2153 = vsyncadd [#allocation4], 0
      %s2155 = sshll.u32 [#allocation3], 4
      %s2156 = int_to_ptr.vmem [resolvable:$true] %s2155
      %s2157 = sshll.u32 %s21, 4
      %s2158 = int_to_ptr.hbm [resolvable:$true] %s2157
      %2160 = dma.vmem_to_hbm [thread:$0]  %s2156, 32, %s2158, [#allocation4]
    $region89: #{vit_forward.1} parent=1 // pred_fallthru
      _
    // Predicated region
    $region90: #{vit_forward.1} parent=1 // pred_check
      _
    $region91: #{vit_forward.1} parent=1 // pred_check_branch
      %2162 = sbr.rel (0) target = $region93
    $region92: #{vit_forward.1} parent=1 // pred_region
      %2164 = dma.done [#allocation4], 32
    $region93: #{vit_forward.1} parent=1 // pred_fallthru
      _
    %2165 = vsyncpa [#allocation4], 1

</llo_original>
